<compile_context>
chip_gen: v5e
topology: v5e:2x2
jax: 0.10.0
libtpu: 0.0.40
codegen_flags: <defaults>
</compile_context>

<pallas_src>
import jax
import jax.numpy as jnp
import numpy as np
from jax.experimental import pallas as pl
from jax.experimental.pallas import tpu as pltpu

# ---- config (from the PyTorch Config dataclass) ----
N_EMBD = 128
N_HEADS = 4
HEAD_DIM = N_EMBD // N_HEADS        # 32
SEQ_LEN = 8                         # config.block_size
N_LAYERS = 4
LN_EPS = 1e-5
_SQRT_2_OVER_PI = 0.7978845608028654
_NEG_BIG = -1e30                    # finite masked bias (avoids inf-inf NaN risk)


def _layernorm(x, gamma, beta):
    mu = jnp.mean(x, axis=-1, keepdims=True)
    var = jnp.mean((x - mu) ** 2, axis=-1, keepdims=True)
    return (x - mu) * jax.lax.rsqrt(var + LN_EPS) * gamma + beta


def _gelu_tanh(x):
    # nn.GELU(approximate='tanh')
    return 0.5 * x * (1.0 + jnp.tanh(_SQRT_2_OVER_PI * (x + 0.044715 * x * x * x)))


def gpt_stack_kernel(x_ref, wattn_ref, wcproj_ref, wfc_ref, wmproj_ref,
                     ln_ref, lnf_ref, wlm_ref,
                     logits_ref, res_ref):
    layer = pl.program_id(1)
    n_layers = pl.num_programs(1)
    M, C = res_ref.shape                               # M = b_blk * T
    T = SEQ_LEN
    b_blk = M // T

    # layer 0: load embedded activations into the resident residual stream (VMEM scratch)
    @pl.when(layer == 0)
    def _():
        res_ref[...] = x_ref[...].reshape(M, C)

    x = res_ref[...]                                   # (M, C) f32

    # per-layer LN params (packed as [ln1_g, ln1_b, ln2_g, ln2_b])
    lnp = ln_ref[layer]                                # (4, C)
    g1, b1 = lnp[0:1, :], lnp[1:2, :]
    g2, b2 = lnp[2:3, :], lnp[3:4, :]

    # ---------------- attention branch: x + attn(ln_1(x)) ----------------
    h = _layernorm(x, g1, b1)
    qkv = jnp.dot(h.astype(jnp.bfloat16), wattn_ref[layer],
                  preferred_element_type=jnp.float32)  # (M, 3C) f32 accumulation

    scale = 1.0 / (HEAD_DIM ** 0.5)
    q = (qkv[:, 0 * C:1 * C] * scale).reshape(b_blk, T, C)   # scale folded into q
    k = qkv[:, 1 * C:2 * C].reshape(b_blk, T, C)
    v = qkv[:, 2 * C:3 * C].reshape(b_blk, T, C)

    # stack the 4 heads along the leading batch axis -> (N_HEADS*b_blk, T, HEAD_DIM)
    def _stack_heads(z):
        return jnp.concatenate(
            [z[:, :, hh * HEAD_DIM:(hh + 1) * HEAD_DIM] for hh in range(N_HEADS)],
            axis=0)

    qh, kh, vh = _stack_heads(q), _stack_heads(k), _stack_heads(v)

    # causal additive bias, built once, added once to the batched scores
    row = jax.lax.broadcasted_iota(jnp.int32, (T, T), 0)
    col = jax.lax.broadcasted_iota(jnp.int32, (T, T), 1)
    causal_bias = jnp.where(row >= col, 0.0, _NEG_BIG).astype(jnp.float32)

    s = jnp.einsum('bqd,bkd->bqk', qh, kh,
                   preferred_element_type=jnp.float32) + causal_bias   # (bH, T, T)
    s = s - jnp.max(s, axis=-1, keepdims=True)         # numerical safety (no exp overflow)
    p = jnp.exp(s)
    p = p * pl.reciprocal(jnp.sum(p, axis=-1, keepdims=True), approx=True)
    o = jnp.einsum('bqk,bkd->bqd', p, vh,
                   preferred_element_type=jnp.float32)                 # (bH, T, hd)

    # re-assemble heads along the channel axis -> (M, C), then ONE full-K c_proj matmul
    o = jnp.concatenate(
        [o[hh * b_blk:(hh + 1) * b_blk] for hh in range(N_HEADS)], axis=-1).reshape(M, C)
    x = x + jnp.dot(o.astype(jnp.bfloat16), wcproj_ref[layer],
                    preferred_element_type=jnp.float32)

    # ---------------- MLP branch: x + mlp(ln_2(x)) ----------------
    h2 = _layernorm(x, g2, b2)
    ff = jnp.dot(h2.astype(jnp.bfloat16), wfc_ref[layer],
                 preferred_element_type=jnp.float32)   # (M, 4C)
    # TODO(synk): on v6e/v7x the GELU could run in bf16 (bf16 VPU/EUP); kept f32 so the
    # same kernel is numerically safe on v5e.
    ff = _gelu_tanh(ff)
    x = x + jnp.dot(ff.astype(jnp.bfloat16), wmproj_ref[layer],
                    preferred_element_type=jnp.float32)

    res_ref[...] = x

    # ---------------- final LayerNorm + lm_head (weight-tied to wte) ----------------
    @pl.when(layer == n_layers - 1)
    def _():
        hf = _layernorm(x, lnf_ref[0:1, :], lnf_ref[1:2, :])
        logits = jnp.dot(hf.astype(jnp.bfloat16), wlm_ref[...],
                         preferred_element_type=jnp.float32)        # (M, V), lane-dense
        logits_ref[...] = logits.reshape(logits_ref.shape).astype(logits_ref.dtype)


def gpt_forward(idx, params, *, b_blk=None):
    """idx: (B, T) int32 token ids -> logits (B, T, V) f32.
    # TODO(synk): cross-entropy loss (targets path) and multinomial sampling in
    # GPT.generate are left to plain JAX/host code; only the dense forward is fused.
    """
    (wte, wpe, wattn, wcproj, wfc, wmproj,
     ln1_g, ln1_b, ln2_g, ln2_b, lnf_g, lnf_b) = params
    B, T = idx.shape
    C = N_EMBD
    V = wte.shape[0]
    L = wattn.shape[0]
    assert T == SEQ_LEN

    # embeddings: data-dependent gather stays in plain JAX
    x = wte[idx] + wpe[:T][None, :, :]                 # (B, T, C) f32
    # weight tying: lm_head.weight = wte  ->  logits = h @ wte.T
    # TODO(synk): at a realistic vocab (~50k) tile the lm_head over V (separate grid axis
    # or pallas_call) and avoid materializing the HBM-side transpose; V=128 here.
    wlm = jnp.transpose(wte).astype(jnp.bfloat16)      # (C, V)

    # Weights are VMEM-resident, so fold the whole batch into the matmul M dimension by
    # default (single-TC parts want max M; at B=8 a v7x 2-way split would under-fill the
    # MXU per core anyway).
    if b_blk is None:
        b_blk = B
    assert B % b_blk == 0
    grid = (B // b_blk, L)

    # pack per-layer LN vectors into one input (fewer DMA descriptors / kernel args)
    ln_packed = jnp.concatenate([ln1_g, ln1_b, ln2_g, ln2_b], axis=1)   # (L, 4, C)
    lnf_packed = jnp.concatenate([lnf_g, lnf_b], axis=0)                # (2, C)

    # VMEM: ~1.6 MB bf16 resident weights (x2 buffers) + a few (M, 4C) f32 temporaries --
    # far below the 32 MiB scoped default, so no vmem_limit_bytes needed.
    return pl.pallas_call(
        gpt_stack_kernel,
        out_shape=jax.ShapeDtypeStruct((B, T, V), jnp.float32),
        grid=grid,
        in_specs=[
            pl.BlockSpec((b_blk, T, C), lambda b, l: (b, 0, 0)),   # embedded activations
            pl.BlockSpec((L, C, 3 * C), lambda b, l: (0, 0, 0)),   # W_attn  (resident)
            pl.BlockSpec((L, C, C),     lambda b, l: (0, 0, 0)),   # W_c_proj attn (resident)
            pl.BlockSpec((L, C, 4 * C), lambda b, l: (0, 0, 0)),   # W_fc    (resident)
            pl.BlockSpec((L, 4 * C, C), lambda b, l: (0, 0, 0)),   # W_c_proj mlp  (resident)
            pl.BlockSpec((L, 4, C),     lambda b, l: (0, 0, 0)),   # packed ln1/ln2 gamma/beta
            pl.BlockSpec((2, C),        lambda b, l: (0, 0)),      # final ln gamma/beta
            pl.BlockSpec((C, V),        lambda b, l: (0, 0)),      # lm_head (= wte.T)
        ],
        out_specs=pl.BlockSpec((b_blk, T, V), lambda b, l: (b, 0, 0)),
        scratch_shapes=[pltpu.VMEM((b_blk * T, C), jnp.float32)],
        compiler_params=pltpu.CompilerParams(
            dimension_semantics=("parallel", "arbitrary")),
    )(x, wattn, wcproj, wfc, wmproj, ln_packed, lnf_packed, wlm)


def _reference_gpt(idx, params):
    """Pure-JAX reference mirroring the PyTorch GPT forward (with bf16-rounded matmul
    operands so it matches the kernel's bf16-weight MXU math)."""
    (wte, wpe, wattn, wcproj, wfc, wmproj,
     ln1_g, ln1_b, ln2_g, ln2_b, lnf_g, lnf_b) = params
    B, T = idx.shape
    C = N_EMBD
    L = wattn.shape[0]
    hi = jax.lax.Precision.HIGHEST

    def ln(z, g, b):
        mu = jnp.mean(z, -1, keepdims=True)
        var = jnp.mean((z - mu) ** 2, -1, keepdims=True)
        return (z - mu) / jnp.sqrt(var + LN_EPS) * g + b

    def mm(a, w_bf16):
        return jnp.dot(a.astype(jnp.bfloat16).astype(jnp.float32),
                       w_bf16.astype(jnp.float32), precision=hi)

    x = wte[idx] + wpe[:T][None, :, :]
    mask = jnp.tril(jnp.ones((T, T), bool))
    for l in range(L):
        h = ln(x, ln1_g[l, 0], ln1_b[l, 0])
        qkv = mm(h, wattn[l])
        q, k, v = jnp.split(qkv, 3, axis=-1)
        q = q.reshape(B, T, N_HEADS, HEAD_DIM).transpose(0, 2, 1, 3)
        k = k.reshape(B, T, N_HEADS, HEAD_DIM).transpose(0, 2, 1, 3)
        v = v.reshape(B, T, N_HEADS, HEAD_DIM).transpose(0, 2, 1, 3)
        s = jnp.einsum('bhqd,bhkd->bhqk', q, k, precision=hi) / (HEAD_DIM ** 0.5)
        s = jnp.where(mask, s, -jnp.inf)
        p = jax.nn.softmax(s, axis=-1)
        o = jnp.einsum('bhqk,bhkd->bhqd', p, v, precision=hi)
        o = o.transpose(0, 2, 1, 3).reshape(B, T, C)
        x = x + mm(o, wcproj[l])
        h2 = ln(x, ln2_g[l, 0], ln2_b[l, 0])
        x = x + mm(_gelu_tanh(mm(h2, wfc[l])), wmproj[l])
    x = ln(x, lnf_g[0], lnf_b[0])
    wlm = jnp.transpose(wte).astype(jnp.bfloat16)
    return mm(x, wlm)


if __name__ == "__main__":
    key = jax.random.PRNGKey(0)
    keys = jax.random.split(key, 13)

    B, T, C, V, L = 8, SEQ_LEN, N_EMBD, 128, N_LAYERS   # batch_size=8, block_size=8

    idx = jax.random.randint(keys[0], (B, T), 0, V, dtype=jnp.int32)

    # embeddings (f32); lm_head weight is tied to wte inside gpt_forward
    wte = 0.02 * jax.random.normal(keys[1], (V, C), jnp.float32)
    wpe = 0.02 * jax.random.normal(keys[2], (SEQ_LEN, C), jnp.float32)

    def lin(k, shape, std=0.02):
        return (std * jax.random.normal(k, shape, jnp.float32)).astype(jnp.bfloat16)

    res_std = 0.02 * 2.0 * (L ** -0.5)                  # res_flag scaling from _init_weight
    wattn  = lin(keys[3], (L, C, 3 * C))
    wcproj = lin(keys[4], (L, C, C), std=res_std)
    wfc    = lin(keys[5], (L, C, 4 * C))
    wmproj = lin(keys[6], (L, 4 * C, C), std=res_std)

    ln1_g = 1.0 + 0.1 * jax.random.normal(keys[7],  (L, 1, C), jnp.float32)
    ln1_b = 0.1 * jax.random.normal(keys[8],  (L, 1, C), jnp.float32)
    ln2_g = 1.0 + 0.1 * jax.random.normal(keys[9],  (L, 1, C), jnp.float32)
    ln2_b = 0.1 * jax.random.normal(keys[10], (L, 1, C), jnp.float32)
    lnf_g = 1.0 + 0.1 * jax.random.normal(keys[11], (1, C), jnp.float32)
    lnf_b = 0.1 * jax.random.normal(keys[12], (1, C), jnp.float32)

    params = (wte, wpe, wattn, wcproj, wfc, wmproj,
              ln1_g, ln1_b, ln2_g, ln2_b, lnf_g, lnf_b)

    logits = jax.block_until_ready(gpt_forward(idx, params))
    ref = jax.block_until_ready(_reference_gpt(idx, params))

    # tolerance covers bf16-weight matmul accumulation-order noise + EUP approx reciprocal
    np.testing.assert_allclose(np.asarray(logits), np.asarray(ref), rtol=5e-3, atol=5e-3)

    print("KERNEL_OK")
</pallas_src>

<mosaic_0001>
module attributes {stable_mosaic.version = 11 : i64} {
  func.func @gpt_stack_kernel(%arg0: i32, %arg1: i32, %arg2: memref<8x8x128xf32, #tpu.memory_space<vmem>>, %arg3: memref<4x128x384xbf16, #tpu.memory_space<vmem>>, %arg4: memref<4x128x128xbf16, #tpu.memory_space<vmem>>, %arg5: memref<4x128x512xbf16, #tpu.memory_space<vmem>>, %arg6: memref<4x512x128xbf16, #tpu.memory_space<vmem>>, %arg7: memref<4x4x128xf32, #tpu.memory_space<vmem>>, %arg8: memref<2x128xf32, #tpu.memory_space<vmem>>, %arg9: memref<128x128xbf16, #tpu.memory_space<vmem>>, %arg10: memref<8x8x128xf32, #tpu.memory_space<vmem>>, %arg11: memref<64x128xf32, #tpu.memory_space<vmem>>) attributes {dimension_semantics = [#tpu.dimension_semantics<parallel>, #tpu.dimension_semantics<arbitrary>], iteration_bounds = array<i64: 1, 4>, scalar_prefetch = 0 : i64, scratch_operands = 1 : i64, tpu.core_type = #tpu.core_type<tc>, window_params = [{transform_indices = @transform_0, window_bounds = array<i64: 8, 8, 128>}, {pipeline_mode = #tpu.pipeline_mode<synchronous>, transform_indices = @transform_1, window_bounds = array<i64: 4, 128, 384>}, {pipeline_mode = #tpu.pipeline_mode<synchronous>, transform_indices = @transform_2, window_bounds = array<i64: 4, 128, 128>}, {pipeline_mode = #tpu.pipeline_mode<synchronous>, transform_indices = @transform_3, window_bounds = array<i64: 4, 128, 512>}, {pipeline_mode = #tpu.pipeline_mode<synchronous>, transform_indices = @transform_4, window_bounds = array<i64: 4, 512, 128>}, {pipeline_mode = #tpu.pipeline_mode<synchronous>, transform_indices = @transform_5, window_bounds = array<i64: 4, 4, 128>}, {pipeline_mode = #tpu.pipeline_mode<synchronous>, transform_indices = @transform_6, window_bounds = array<i64: 2, 128>}, {pipeline_mode = #tpu.pipeline_mode<synchronous>, transform_indices = @transform_7, window_bounds = array<i64: 128, 128>}, {transform_indices = @transform_8, window_bounds = array<i64: 8, 8, 128>}]} {
    %c0_i32 = arith.constant 0 : i32
    %0 = arith.cmpi eq, %arg1, %c0_i32 : i32
    %1 = arith.extui %0 : i1 to i32
    %c0_i32_0 = arith.constant 0 : i32
    %2 = arith.cmpi ne, %1, %c0_i32_0 : i32
    scf.if %2 {
      %c0_39 = arith.constant 0 : index
      %c0_40 = arith.constant 0 : index
      %c0_41 = arith.constant 0 : index
      %144 = vector.load %arg2[%c0_39, %c0_40, %c0_41] : memref<8x8x128xf32, #tpu.memory_space<vmem>>, vector<8x8x128xf32>
      %145 = vector.shape_cast %144 : vector<8x8x128xf32> to vector<64x128xf32>
      %c0_42 = arith.constant 0 : index
      %c0_43 = arith.constant 0 : index
      %146 = vector.load %arg11[%c0_42, %c0_43] : memref<64x128xf32, #tpu.memory_space<vmem>>, vector<64x128xf32>
      tpu.vector_store %arg11[%c0_42, %c0_43], %145 {strides = array<i32>} : memref<64x128xf32, #tpu.memory_space<vmem>>, vector<64x128xf32>,
    } else {
    }
    %c0 = arith.constant 0 : index
    %c0_1 = arith.constant 0 : index
    %3 = vector.load %arg11[%c0, %c0_1] : memref<64x128xf32, #tpu.memory_space<vmem>>, vector<64x128xf32>
    %4 = arith.index_cast %arg1 : i32 to index
    %c0_2 = arith.constant 0 : index
    %c0_3 = arith.constant 0 : index
    %5 = vector.load %arg7[%4, %c0_2, %c0_3] : memref<4x4x128xf32, #tpu.memory_space<vmem>>, vector<1x4x128xf32>
    %6 = vector.shape_cast %5 : vector<1x4x128xf32> to vector<4x128xf32>
    %7 = vector.extract_strided_slice %6 {offsets = [0, 0], sizes = [1, 128], strides = [1, 1]} : vector<4x128xf32> to vector<1x128xf32>
    %8 = vector.extract_strided_slice %6 {offsets = [1, 0], sizes = [1, 128], strides = [1, 1]} : vector<4x128xf32> to vector<1x128xf32>
    %9 = vector.extract_strided_slice %6 {offsets = [2, 0], sizes = [1, 128], strides = [1, 1]} : vector<4x128xf32> to vector<1x128xf32>
    %10 = vector.extract_strided_slice %6 {offsets = [3, 0], sizes = [1, 128], strides = [1, 1]} : vector<4x128xf32> to vector<1x128xf32>
    %cst = arith.constant dense<0.000000e+00> : vector<64xf32>
    %11 = vector.multi_reduction <add>, %3, %cst [1] : vector<64x128xf32> to vector<64xf32>
    %12 = vector.shape_cast %11 : vector<64xf32> to vector<64x1xf32>
    %cst_4 = arith.constant 1.280000e+02 : f32
    %13 = vector.broadcast %cst_4 : f32 to vector<64x1xf32>
    %14 = arith.divf %12, %13 : vector<64x1xf32>
    %15 = vector.broadcast %14 : vector<64x1xf32> to vector<64x128xf32>
    %16 = arith.subf %3, %15 : vector<64x128xf32>
    %17 = arith.mulf %16, %16 : vector<64x128xf32>
    %cst_5 = arith.constant dense<0.000000e+00> : vector<64xf32>
    %18 = vector.multi_reduction <add>, %17, %cst_5 [1] : vector<64x128xf32> to vector<64xf32>
    %19 = vector.shape_cast %18 : vector<64xf32> to vector<64x1xf32>
    %cst_6 = arith.constant 1.280000e+02 : f32
    %20 = vector.broadcast %cst_6 : f32 to vector<64x1xf32>
    %21 = arith.divf %19, %20 : vector<64x1xf32>
    %22 = vector.broadcast %14 : vector<64x1xf32> to vector<64x128xf32>
    %23 = arith.subf %3, %22 : vector<64x128xf32>
    %cst_7 = arith.constant 9.99999974E-6 : f32
    %24 = vector.broadcast %cst_7 : f32 to vector<64x1xf32>
    %25 = arith.addf %21, %24 : vector<64x1xf32>
    %26 = math.rsqrt %25 : vector<64x1xf32>
    %27 = vector.broadcast %26 : vector<64x1xf32> to vector<64x128xf32>
    %28 = arith.mulf %23, %27 : vector<64x128xf32>
    %29 = vector.broadcast %7 : vector<1x128xf32> to vector<64x128xf32>
    %30 = arith.mulf %28, %29 : vector<64x128xf32>
    %31 = vector.broadcast %8 : vector<1x128xf32> to vector<64x128xf32>
    %32 = arith.addf %30, %31 : vector<64x128xf32>
    %33 = arith.truncf %32 : vector<64x128xf32> to vector<64x128xbf16>
    %34 = arith.index_cast %arg1 : i32 to index
    %c0_8 = arith.constant 0 : index
    %c0_9 = arith.constant 0 : index
    %35 = vector.load %arg3[%34, %c0_8, %c0_9] : memref<4x128x384xbf16, #tpu.memory_space<vmem>>, vector<1x128x384xbf16>
    %36 = vector.shape_cast %35 : vector<1x128x384xbf16> to vector<128x384xbf16>
    %cst_10 = arith.constant dense<0.000000e+00> : vector<64x384xf32>
    %37 = tpu.matmul %33, %36, %cst_10 {dimension_numbers = #tpu.dot_dimension_numbers<[1], [0], [0], [1], [0, 0, 1, 1], [], []>} : vector<64x128xbf16>, vector<128x384xbf16>, vector<64x384xf32> -> vector<64x384xf32>
    %38 = vector.extract_strided_slice %37 {offsets = [0, 0], sizes = [64, 128], strides = [1, 1]} : vector<64x384xf32> to vector<64x128xf32>
    %cst_11 = arith.constant 0.176776692 : f32
    %39 = vector.broadcast %cst_11 : f32 to vector<64x128xf32>
    %40 = arith.mulf %38, %39 : vector<64x128xf32>
    %41 = vector.shape_cast %40 : vector<64x128xf32> to vector<8x8x128xf32>
    %42 = vector.extract_strided_slice %37 {offsets = [0, 128], sizes = [64, 128], strides = [1, 1]} : vector<64x384xf32> to vector<64x128xf32>
    %43 = vector.shape_cast %42 : vector<64x128xf32> to vector<8x8x128xf32>
    %44 = vector.extract_strided_slice %37 {offsets = [0, 256], sizes = [64, 128], strides = [1, 1]} : vector<64x384xf32> to vector<64x128xf32>
    %45 = vector.shape_cast %44 : vector<64x128xf32> to vector<8x8x128xf32>
    %46 = vector.extract_strided_slice %41 {offsets = [0, 0, 0], sizes = [8, 8, 32], strides = [1, 1, 1]} : vector<8x8x128xf32> to vector<8x8x32xf32>
    %47 = vector.extract_strided_slice %41 {offsets = [0, 0, 32], sizes = [8, 8, 32], strides = [1, 1, 1]} : vector<8x8x128xf32> to vector<8x8x32xf32>
    %48 = vector.extract_strided_slice %41 {offsets = [0, 0, 64], sizes = [8, 8, 32], strides = [1, 1, 1]} : vector<8x8x128xf32> to vector<8x8x32xf32>
    %49 = vector.extract_strided_slice %41 {offsets = [0, 0, 96], sizes = [8, 8, 32], strides = [1, 1, 1]} : vector<8x8x128xf32> to vector<8x8x32xf32>
    %50 = tpu.concatenate %46, %47, %48, %49 in 0 : vector<8x8x32xf32>, vector<8x8x32xf32>, vector<8x8x32xf32>, vector<8x8x32xf32> -> vector<32x8x32xf32>
    %51 = vector.extract_strided_slice %43 {offsets = [0, 0, 0], sizes = [8, 8, 32], strides = [1, 1, 1]} : vector<8x8x128xf32> to vector<8x8x32xf32>
    %52 = vector.extract_strided_slice %43 {offsets = [0, 0, 32], sizes = [8, 8, 32], strides = [1, 1, 1]} : vector<8x8x128xf32> to vector<8x8x32xf32>
    %53 = vector.extract_strided_slice %43 {offsets = [0, 0, 64], sizes = [8, 8, 32], strides = [1, 1, 1]} : vector<8x8x128xf32> to vector<8x8x32xf32>
    %54 = vector.extract_strided_slice %43 {offsets = [0, 0, 96], sizes = [8, 8, 32], strides = [1, 1, 1]} : vector<8x8x128xf32> to vector<8x8x32xf32>
    %55 = tpu.concatenate %51, %52, %53, %54 in 0 : vector<8x8x32xf32>, vector<8x8x32xf32>, vector<8x8x32xf32>, vector<8x8x32xf32> -> vector<32x8x32xf32>
    %56 = vector.extract_strided_slice %45 {offsets = [0, 0, 0], sizes = [8, 8, 32], strides = [1, 1, 1]} : vector<8x8x128xf32> to vector<8x8x32xf32>
    %57 = vector.extract_strided_slice %45 {offsets = [0, 0, 32], sizes = [8, 8, 32], strides = [1, 1, 1]} : vector<8x8x128xf32> to vector<8x8x32xf32>
    %58 = vector.extract_strided_slice %45 {offsets = [0, 0, 64], sizes = [8, 8, 32], strides = [1, 1, 1]} : vector<8x8x128xf32> to vector<8x8x32xf32>
    %59 = vector.extract_strided_slice %45 {offsets = [0, 0, 96], sizes = [8, 8, 32], strides = [1, 1, 1]} : vector<8x8x128xf32> to vector<8x8x32xf32>
    %60 = tpu.concatenate %56, %57, %58, %59 in 0 : vector<8x8x32xf32>, vector<8x8x32xf32>, vector<8x8x32xf32>, vector<8x8x32xf32> -> vector<32x8x32xf32>
    %61 = tpu.iota {dimensions = array<i32: 0>} : vector<8x8xi32>
    %62 = tpu.iota {dimensions = array<i32: 1>} : vector<8x8xi32>
    %63 = arith.cmpi sge, %61, %62 : vector<8x8xi32>
    %cst_12 = arith.constant 0.000000e+00 : f32
    %cst_13 = arith.constant -1.000000e+30 : f32
    %64 = vector.broadcast %cst_12 : f32 to vector<8x8xf32>
    %65 = vector.broadcast %cst_13 : f32 to vector<8x8xf32>
    %66 = arith.select %63, %64, %65 : vector<8x8xi1>, vector<8x8xf32>
    "tpu.trace_start"() <{level = 10 : i32, message = "bqd,bkd->bqk"}> : () -> ()
    %cst_14 = arith.constant dense<0.000000e+00> : vector<32x8x8xf32>
    %67 = tpu.matmul %50, %55, %cst_14 {dimension_numbers = #tpu.dot_dimension_numbers<[2], [2], [1], [1], [0, 0, 0, 1, 1, 1], [0], [0]>} : vector<32x8x32xf32>, vector<32x8x32xf32>, vector<32x8x8xf32> -> vector<32x8x8xf32>
    "tpu.trace_stop"() : () -> ()
    %68 = vector.shape_cast %66 : vector<8x8xf32> to vector<1x8x8xf32>
    %69 = vector.broadcast %68 : vector<1x8x8xf32> to vector<32x8x8xf32>
    %70 = arith.addf %67, %69 : vector<32x8x8xf32>
    %cst_15 = arith.constant dense<0xFF800000> : vector<32x8xf32>
    %71 = vector.multi_reduction <maximumf>, %70, %cst_15 [2] : vector<32x8x8xf32> to vector<32x8xf32>
    %72 = vector.shape_cast %71 : vector<32x8xf32> to vector<32x8x1xf32>
    %73 = vector.broadcast %72 : vector<32x8x1xf32> to vector<32x8x8xf32>
    %74 = arith.subf %70, %73 : vector<32x8x8xf32>
    %75 = math.exp %74 : vector<32x8x8xf32>
    %cst_16 = arith.constant dense<0.000000e+00> : vector<32x8xf32>
    %76 = vector.multi_reduction <add>, %75, %cst_16 [2] : vector<32x8x8xf32> to vector<32x8xf32>
    %77 = vector.shape_cast %76 : vector<32x8xf32> to vector<32x8x1xf32>
    %78 = tpu.reciprocal %77 {approx = true} : vector<32x8x1xf32> -> vector<32x8x1xf32>
    %79 = vector.broadcast %78 : vector<32x8x1xf32> to vector<32x8x8xf32>
    %80 = arith.mulf %75, %79 : vector<32x8x8xf32>
    "tpu.trace_start"() <{level = 10 : i32, message = "bqk,bkd->bqd"}> : () -> ()
    %cst_17 = arith.constant dense<0.000000e+00> : vector<32x8x32xf32>
    %81 = tpu.matmul %80, %60, %cst_17 {dimension_numbers = #tpu.dot_dimension_numbers<[2], [1], [1], [2], [0, 0, 0, 1, 1, 2], [0], [0]>} : vector<32x8x8xf32>, vector<32x8x32xf32>, vector<32x8x32xf32> -> vector<32x8x32xf32>
    "tpu.trace_stop"() : () -> ()
    %82 = vector.extract_strided_slice %81 {offsets = [0, 0, 0], sizes = [8, 8, 32], strides = [1, 1, 1]} : vector<32x8x32xf32> to vector<8x8x32xf32>
    %83 = vector.extract_strided_slice %81 {offsets = [8, 0, 0], sizes = [8, 8, 32], strides = [1, 1, 1]} : vector<32x8x32xf32> to vector<8x8x32xf32>
    %84 = vector.extract_strided_slice %81 {offsets = [16, 0, 0], sizes = [8, 8, 32], strides = [1, 1, 1]} : vector<32x8x32xf32> to vector<8x8x32xf32>
    %85 = vector.extract_strided_slice %81 {offsets = [24, 0, 0], sizes = [8, 8, 32], strides = [1, 1, 1]} : vector<32x8x32xf32> to vector<8x8x32xf32>
    %86 = tpu.concatenate %82, %83, %84, %85 in 2 : vector<8x8x32xf32>, vector<8x8x32xf32>, vector<8x8x32xf32>, vector<8x8x32xf32> -> vector<8x8x128xf32>
    %87 = vector.shape_cast %86 : vector<8x8x128xf32> to vector<64x128xf32>
    %88 = arith.truncf %87 : vector<64x128xf32> to vector<64x128xbf16>
    %89 = arith.index_cast %arg1 : i32 to index
    %c0_18 = arith.constant 0 : index
    %c0_19 = arith.constant 0 : index
    %90 = vector.load %arg4[%89, %c0_18, %c0_19] : memref<4x128x128xbf16, #tpu.memory_space<vmem>>, vector<1x128x128xbf16>
    %91 = vector.shape_cast %90 : vector<1x128x128xbf16> to vector<128x128xbf16>
    %cst_20 = arith.constant dense<0.000000e+00> : vector<64x128xf32>
    %92 = tpu.matmul %88, %91, %cst_20 {dimension_numbers = #tpu.dot_dimension_numbers<[1], [0], [0], [1], [0, 0, 1, 1], [], []>} : vector<64x128xbf16>, vector<128x128xbf16>, vector<64x128xf32> -> vector<64x128xf32>
    %93 = arith.addf %3, %92 : vector<64x128xf32>
    %cst_21 = arith.constant dense<0.000000e+00> : vector<64xf32>
    %94 = vector.multi_reduction <add>, %93, %cst_21 [1] : vector<64x128xf32> to vector<64xf32>
    %95 = vector.shape_cast %94 : vector<64xf32> to vector<64x1xf32>
    %cst_22 = arith.constant 1.280000e+02 : f32
    %96 = vector.broadcast %cst_22 : f32 to vector<64x1xf32>
    %97 = arith.divf %95, %96 : vector<64x1xf32>
    %98 = vector.broadcast %97 : vector<64x1xf32> to vector<64x128xf32>
    %99 = arith.subf %93, %98 : vector<64x128xf32>
    %100 = arith.mulf %99, %99 : vector<64x128xf32>
    %cst_23 = arith.constant dense<0.000000e+00> : vector<64xf32>
    %101 = vector.multi_reduction <add>, %100, %cst_23 [1] : vector<64x128xf32> to vector<64xf32>
    %102 = vector.shape_cast %101 : vector<64xf32> to vector<64x1xf32>
    %cst_24 = arith.constant 1.280000e+02 : f32
    %103 = vector.broadcast %cst_24 : f32 to vector<64x1xf32>
    %104 = arith.divf %102, %103 : vector<64x1xf32>
    %105 = vector.broadcast %97 : vector<64x1xf32> to vector<64x128xf32>
    %106 = arith.subf %93, %105 : vector<64x128xf32>
    %cst_25 = arith.constant 9.99999974E-6 : f32
    %107 = vector.broadcast %cst_25 : f32 to vector<64x1xf32>
    %108 = arith.addf %104, %107 : vector<64x1xf32>
    %109 = math.rsqrt %108 : vector<64x1xf32>
    %110 = vector.broadcast %109 : vector<64x1xf32> to vector<64x128xf32>
    %111 = arith.mulf %106, %110 : vector<64x128xf32>
    %112 = vector.broadcast %9 : vector<1x128xf32> to vector<64x128xf32>
    %113 = arith.mulf %111, %112 : vector<64x128xf32>
    %114 = vector.broadcast %10 : vector<1x128xf32> to vector<64x128xf32>
    %115 = arith.addf %113, %114 : vector<64x128xf32>
    %116 = arith.truncf %115 : vector<64x128xf32> to vector<64x128xbf16>
    %117 = arith.index_cast %arg1 : i32 to index
    %c0_26 = arith.constant 0 : index
    %c0_27 = arith.constant 0 : index
    %118 = vector.load %arg5[%117, %c0_26, %c0_27] : memref<4x128x512xbf16, #tpu.memory_space<vmem>>, vector<1x128x512xbf16>
    %119 = vector.shape_cast %118 : vector<1x128x512xbf16> to vector<128x512xbf16>
    %cst_28 = arith.constant dense<0.000000e+00> : vector<64x512xf32>
    %120 = tpu.matmul %116, %119, %cst_28 {dimension_numbers = #tpu.dot_dimension_numbers<[1], [0], [0], [1], [0, 0, 1, 1], [], []>} : vector<64x128xbf16>, vector<128x512xbf16>, vector<64x512xf32> -> vector<64x512xf32>
    %cst_29 = arith.constant 5.000000e-01 : f32
    %121 = vector.broadcast %cst_29 : f32 to vector<64x512xf32>
    %122 = arith.mulf %121, %120 : vector<64x512xf32>
    %cst_30 = arith.constant 4.471500e-02 : f32
    %123 = vector.broadcast %cst_30 : f32 to vector<64x512xf32>
    %124 = arith.mulf %123, %120 : vector<64x512xf32>
    %125 = arith.mulf %124, %120 : vector<64x512xf32>
    %126 = arith.mulf %125, %120 : vector<64x512xf32>
    %127 = arith.addf %120, %126 : vector<64x512xf32>
    %cst_31 = arith.constant 0.797884583 : f32
    %128 = vector.broadcast %cst_31 : f32 to vector<64x512xf32>
    %129 = arith.mulf %128, %127 : vector<64x512xf32>
    %130 = math.tanh %129 : vector<64x512xf32>
    %cst_32 = arith.constant 1.000000e+00 : f32
    %131 = vector.broadcast %cst_32 : f32 to vector<64x512xf32>
    %132 = arith.addf %131, %130 : vector<64x512xf32>
    %133 = arith.mulf %122, %132 : vector<64x512xf32>
    %134 = arith.truncf %133 : vector<64x512xf32> to vector<64x512xbf16>
    %135 = arith.index_cast %arg1 : i32 to index
    %c0_33 = arith.constant 0 : index
    %c0_34 = arith.constant 0 : index
    %136 = vector.load %arg6[%135, %c0_33, %c0_34] : memref<4x512x128xbf16, #tpu.memory_space<vmem>>, vector<1x512x128xbf16>
    %137 = vector.shape_cast %136 : vector<1x512x128xbf16> to vector<512x128xbf16>
    %cst_35 = arith.constant dense<0.000000e+00> : vector<64x128xf32>
    %138 = tpu.matmul %134, %137, %cst_35 {dimension_numbers = #tpu.dot_dimension_numbers<[1], [0], [0], [1], [0, 0, 1, 1], [], []>} : vector<64x512xbf16>, vector<512x128xbf16>, vector<64x128xf32> -> vector<64x128xf32>
    %139 = arith.addf %93, %138 : vector<64x128xf32>
    %c0_36 = arith.constant 0 : index
    %c0_37 = arith.constant 0 : index
    %140 = vector.load %arg11[%c0_36, %c0_37] : memref<64x128xf32, #tpu.memory_space<vmem>>, vector<64x128xf32>
    tpu.vector_store %arg11[%c0_36, %c0_37], %139 {strides = array<i32>} : memref<64x128xf32, #tpu.memory_space<vmem>>, vector<64x128xf32>,
    %c3_i32 = arith.constant 3 : i32
    %141 = arith.cmpi eq, %arg1, %c3_i32 : i32
    %142 = arith.extui %141 : i1 to i32
    %c0_i32_38 = arith.constant 0 : i32
    %143 = arith.cmpi ne, %142, %c0_i32_38 : i32
    scf.if %143 {
      %c0_39 = arith.constant 0 : index
      %c0_40 = arith.constant 0 : index
      %144 = vector.load %arg8[%c0_39, %c0_40] : memref<2x128xf32, #tpu.memory_space<vmem>>, vector<1x128xf32>
      %c1 = arith.constant 1 : index
      %c0_41 = arith.constant 0 : index
      %145 = vector.load %arg8[%c1, %c0_41] : memref<2x128xf32, #tpu.memory_space<vmem>>, vector<1x128xf32>
      %cst_42 = arith.constant dense<0.000000e+00> : vector<64xf32>
      %146 = vector.multi_reduction <add>, %139, %cst_42 [1] : vector<64x128xf32> to vector<64xf32>
      %147 = vector.shape_cast %146 : vector<64xf32> to vector<64x1xf32>
      %cst_43 = arith.constant 1.280000e+02 : f32
      %148 = vector.broadcast %cst_43 : f32 to vector<64x1xf32>
      %149 = arith.divf %147, %148 : vector<64x1xf32>
      %150 = vector.broadcast %149 : vector<64x1xf32> to vector<64x128xf32>
      %151 = arith.subf %139, %150 : vector<64x128xf32>
      %152 = arith.mulf %151, %151 : vector<64x128xf32>
      %cst_44 = arith.constant dense<0.000000e+00> : vector<64xf32>
      %153 = vector.multi_reduction <add>, %152, %cst_44 [1] : vector<64x128xf32> to vector<64xf32>
      %154 = vector.shape_cast %153 : vector<64xf32> to vector<64x1xf32>
      %cst_45 = arith.constant 1.280000e+02 : f32
      %155 = vector.broadcast %cst_45 : f32 to vector<64x1xf32>
      %156 = arith.divf %154, %155 : vector<64x1xf32>
      %157 = vector.broadcast %149 : vector<64x1xf32> to vector<64x128xf32>
      %158 = arith.subf %139, %157 : vector<64x128xf32>
      %cst_46 = arith.constant 9.99999974E-6 : f32
      %159 = vector.broadcast %cst_46 : f32 to vector<64x1xf32>
      %160 = arith.addf %156, %159 : vector<64x1xf32>
      %161 = math.rsqrt %160 : vector<64x1xf32>
      %162 = vector.broadcast %161 : vector<64x1xf32> to vector<64x128xf32>
      %163 = arith.mulf %158, %162 : vector<64x128xf32>
      %164 = vector.broadcast %144 : vector<1x128xf32> to vector<64x128xf32>
      %165 = arith.mulf %163, %164 : vector<64x128xf32>
      %166 = vector.broadcast %145 : vector<1x128xf32> to vector<64x128xf32>
      %167 = arith.addf %165, %166 : vector<64x128xf32>
      %168 = arith.truncf %167 : vector<64x128xf32> to vector<64x128xbf16>
      %c0_47 = arith.constant 0 : index
      %c0_48 = arith.constant 0 : index
      %169 = vector.load %arg9[%c0_47, %c0_48] : memref<128x128xbf16, #tpu.memory_space<vmem>>, vector<128x128xbf16>
      %cst_49 = arith.constant dense<0.000000e+00> : vector<64x128xf32>
      %170 = tpu.matmul %168, %169, %cst_49 {dimension_numbers = #tpu.dot_dimension_numbers<[1], [0], [0], [1], [0, 0, 1, 1], [], []>} : vector<64x128xbf16>, vector<128x128xbf16>, vector<64x128xf32> -> vector<64x128xf32>
      %171 = vector.shape_cast %170 : vector<64x128xf32> to vector<8x8x128xf32>
      %c0_50 = arith.constant 0 : index
      %c0_51 = arith.constant 0 : index
      %c0_52 = arith.constant 0 : index
      %172 = vector.load %arg10[%c0_50, %c0_51, %c0_52] : memref<8x8x128xf32, #tpu.memory_space<vmem>>, vector<8x8x128xf32>
      tpu.vector_store %arg10[%c0_50, %c0_51, %c0_52], %171 {strides = array<i32>} : memref<8x8x128xf32, #tpu.memory_space<vmem>>, vector<8x8x128xf32>,
    } else {
    }
    return
  }
  func.func @transform_0(%arg0: i32, %arg1: i32) -> (i32, i32, i32) {
    %c0_i32 = arith.constant 0 : i32
    %c0_i32_0 = arith.constant 0 : i32
    %c0_i32_1 = arith.constant 0 : i32
    return %arg0, %c0_i32, %c0_i32_0 : i32, i32, i32
  }
  func.func @transform_1(%arg0: i32, %arg1: i32) -> (i32, i32, i32) {
    %c0_i32 = arith.constant 0 : i32
    %c0_i32_0 = arith.constant 0 : i32
    %c0_i32_1 = arith.constant 0 : i32
    %c0_i32_2 = arith.constant 0 : i32
    return %c0_i32, %c0_i32_0, %c0_i32_1 : i32, i32, i32
  }
  func.func @transform_2(%arg0: i32, %arg1: i32) -> (i32, i32, i32) {
    %c0_i32 = arith.constant 0 : i32
    %c0_i32_0 = arith.constant 0 : i32
    %c0_i32_1 = arith.constant 0 : i32
    %c0_i32_2 = arith.constant 0 : i32
    return %c0_i32, %c0_i32_0, %c0_i32_1 : i32, i32, i32
  }
  func.func @transform_3(%arg0: i32, %arg1: i32) -> (i32, i32, i32) {
    %c0_i32 = arith.constant 0 : i32
    %c0_i32_0 = arith.constant 0 : i32
    %c0_i32_1 = arith.constant 0 : i32
    %c0_i32_2 = arith.constant 0 : i32
    return %c0_i32, %c0_i32_0, %c0_i32_1 : i32, i32, i32
  }
  func.func @transform_4(%arg0: i32, %arg1: i32) -> (i32, i32, i32) {
    %c0_i32 = arith.constant 0 : i32
    %c0_i32_0 = arith.constant 0 : i32
    %c0_i32_1 = arith.constant 0 : i32
    %c0_i32_2 = arith.constant 0 : i32
    return %c0_i32, %c0_i32_0, %c0_i32_1 : i32, i32, i32
  }
  func.func @transform_5(%arg0: i32, %arg1: i32) -> (i32, i32, i32) {
    %c0_i32 = arith.constant 0 : i32
    %c0_i32_0 = arith.constant 0 : i32
    %c0_i32_1 = arith.constant 0 : i32
    %c0_i32_2 = arith.constant 0 : i32
    return %c0_i32, %c0_i32_0, %c0_i32_1 : i32, i32, i32
  }
  func.func @transform_6(%arg0: i32, %arg1: i32) -> (i32, i32) {
    %c0_i32 = arith.constant 0 : i32
    %c0_i32_0 = arith.constant 0 : i32
    %c0_i32_1 = arith.constant 0 : i32
    return %c0_i32, %c0_i32_0 : i32, i32
  }
  func.func @transform_7(%arg0: i32, %arg1: i32) -> (i32, i32) {
    %c0_i32 = arith.constant 0 : i32
    %c0_i32_0 = arith.constant 0 : i32
    %c0_i32_1 = arith.constant 0 : i32
    return %c0_i32, %c0_i32_0 : i32, i32
  }
  func.func @transform_8(%arg0: i32, %arg1: i32) -> (i32, i32, i32) {
    %c0_i32 = arith.constant 0 : i32
    %c0_i32_0 = arith.constant 0 : i32
    %c0_i32_1 = arith.constant 0 : i32
    return %arg0, %c0_i32, %c0_i32_0 : i32, i32, i32
  }
}

</mosaic_0001>

<llo_original>
// kernel: tpu_custom_call.1
$region0: #{tpu_custom_call.1}
  #allocation0 [shape = 'u32[]', space=smem, size = 0x4, offset = 0x4, fixed_abs, tag = 'smem constant byte address 0x4 - core index']
  #allocation1 [shape = 'u32[72,128]{1,0:T(1,128)}', space=vmem, size = 0x9000, scoped, tag = 'internal scratch']
  #allocation2 [shape = 'f32[64,128]{1,0:T(8,128)}', space=vmem, size = 0x8000, scoped, tag = 'scratch operand']
  %s0 = inlined_call_operand.hbm [shape: f32[8,8,128], index: 0, kind: input, shape index: {}]
  %s1 = inlined_call_operand.hbm [shape: bf16[4,128,384], index: 1, kind: input, shape index: {}]
  %s2 = inlined_call_operand.hbm [shape: bf16[4,128,128], index: 2, kind: input, shape index: {}]
  %s3 = inlined_call_operand.hbm [shape: bf16[4,128,512], index: 3, kind: input, shape index: {}]
  %s4 = inlined_call_operand.hbm [shape: bf16[4,512,128], index: 4, kind: input, shape index: {}]
  %s5 = inlined_call_operand.hbm [shape: f32[4,4,128], index: 5, kind: input, shape index: {}]
  %s6 = inlined_call_operand.vmem [shape: f32[2,128], index: 6, kind: input, shape index: {}]
  %s7 = inlined_call_operand.hbm [shape: bf16[128,128], index: 7, kind: input, shape index: {}]
  %s8 = inlined_call_operand.hbm [shape: f32[8,8,128], index: 8, kind: output, shape index: {}]
  %s9 = sld [smem:[#allocation0]]
  $region101: #{tpu_custom_call.1} parent=0
    _
  %s11 = ssub.s32 1, %s9
  %s12 = scalar_select 0, %s11, %s9
  $region1: #{tpu_custom_call.1} parent=0
    #allocation3 [shape = 'u8[32768]{0}', space=vmem, size = 0x8000, scoped, tag = 'input window, operand 0, single buffered']
    #allocation4 [shape = 's32[2]{0}', space=sflag, size = 0x8, scoped, tag = 'scoped memory for tpu_custom_call.1']
    #allocation5 [shape = 's32[2]{0}', space=sflag, size = 0x8, scoped, tag = 'scoped memory for tpu_custom_call.1']
    #allocation6 [shape = 'u8[393216]{0}', space=vmem, size = 0x60000, scoped, tag = 'input window, operand 1, single buffered']
    #allocation7 [shape = 's32[1]{0}', space=sflag, size = 0x4, scoped, tag = 'scoped memory for tpu_custom_call.1']
    #allocation8 [shape = 'u8[131072]{0}', space=vmem, size = 0x20000, scoped, tag = 'input window, operand 2, single buffered']
    #allocation9 [shape = 'u8[524288]{0}', space=vmem, size = 0x80000, scoped, tag = 'input window, operand 3, single buffered']
    #allocation10 [shape = 's32[1]{0}', space=sflag, size = 0x4, scoped, tag = 'scoped memory for tpu_custom_call.1']
    #allocation11 [shape = 'u8[524288]{0}', space=vmem, size = 0x80000, scoped, tag = 'input window, operand 4, single buffered']
    #allocation12 [shape = 'u8[8192]{0}', space=vmem, size = 0x2000, scoped, tag = 'input window, operand 5, single buffered']
    #allocation13 [shape = 's32[1]{0}', space=sflag, size = 0x4, scoped, tag = 'scoped memory for tpu_custom_call.1']
    #allocation14 [shape = 'u8[32768]{0}', space=vmem, size = 0x8000, scoped, tag = 'input window, operand 7, single buffered']
    #allocation15 [shape = 'u8[32768]{0}', space=vmem, size = 0x8000, scoped, tag = 'output window, operand 0, single buffered']
    %13 = vsyncpa [#allocation4], 0
    %14 = vsyncpa [#allocation7], 0
    %15 = vsyncpa [#allocation10], 0
    %16 = vsyncpa [#allocation13], 0
    %17 = vsyncpa [#allocation5], 0
    loop: start=0, step=1, limit=6
    $region2: #{tpu_custom_call.1} parent=1 // loop_pre_header
      _
    $region3: #{tpu_custom_call.1} parent=1 // loop_header
      %s19 = sphi 0, %s23
      %p20 = scmp.ge.s32.totalorder %s19, 6
      %s26 = sphi 0, %s38
      %s27 = sphi 0, %s34
      %s28 = sphi 0, %s26
      %s29 = sphi 0, %s27
      %s30 = sphi 0, %s28
      %s31 = sphi 0, %s29
      %s41 = sphi 0, %s43
      %s44 = sphi 0, %s41
      %s45 = sphi 0, %s44
      %s61 = sphi 0, %s45
      %s65 = sphi 0, %s65
      %s67 = sphi 0, %s65
      %s68 = sphi 0, %s67
      %s82 = sphi 0, %s68
      %s86 = sphi 0, %s86
      %s88 = sphi 0, %s86
      %s89 = sphi 0, %s88
      %s103 = sphi 0, %s89
      %s107 = sphi 0, %s107
      %s109 = sphi 0, %s107
      %s110 = sphi 0, %s109
      %s124 = sphi 0, %s110
      %s128 = sphi 0, %s128
      %s130 = sphi 0, %s128
      %s131 = sphi 0, %s130
      %s145 = sphi 0, %s131
      %s149 = sphi 0, %s149
      %s151 = sphi 0, %s149
      %s152 = sphi 0, %s151
      %s166 = sphi 0, %s152
      %s170 = sphi 0, %s170
      %s172 = sphi 0, %s170
      %s173 = sphi 0, %s172
      %s187 = sphi 0, %s173
      %s191 = sphi 0, %s191
      %s193 = sphi 0, %s191
      %s194 = sphi 0, %s193
      %s208 = sphi 0, %s194
      %s214 = sphi 0, %s216
      %s217 = sphi 0, %s214
      %s218 = sphi 0, %s217
      %s234 = sphi 0, %s218
    $region4: #{tpu_custom_call.1} parent=1 // loop_header_branch
      %22 = sbr.rel (%p20) target = $region8
    $region5: #{tpu_custom_call.1} parent=1 // loop_body
      %s24 = ssub.s32 %s19, 1
      %s25 = ssub.s32 %s19, 2
      %s32 = sadd.s32 1, %s27
      %p33 = scmp.ge.s32.totalorder %s32, 4
      %s34 = scalar_select %p33, 0, %s32
      %s35 = sadd.s32 1, %s26
      %s36 = scalar_select %p33, %s35, %s26
      %p37 = scmp.ge.s32.totalorder %s36, 1
      %s38 = scalar_select %p37, 0, %s36
      %s39 = ssub.s32 %s26, %s38
      %p40 = scmp.eq.s32.totalorder %s39, 0
      %s42 = sadd.s32 %s41, 1
      %s43 = scalar_select %p40, %s41, %s42
      %p46 = pneg %p40
      %p47 = scmp.eq.s32.totalorder %s19, 3
      %p48 = por %p46, %p47
      %p49 = scmp.ne.s32.totalorder %s41, %s44
      %p50 = scmp.eq.s32.totalorder %s19, 0
      %p51 = por %p49, %p50
      %p52 = scmp.ne.s32.totalorder %s41, %s44
      %p53 = scmp.eq.s32.totalorder %s24, 3
      %p54 = por %p52, %p53
      %p55 = scmp.ne.s32.totalorder %s44, %s45
      %p56 = scmp.eq.s32.totalorder %s24, 0
      %p57 = por %p55, %p56
      %p58 = scmp.ne.s32.totalorder %s44, %s45
      %p59 = scmp.eq.s32.totalorder %s25, 3
      %p60 = por %p58, %p59
      %p62 = scmp.ne.s32.totalorder %s45, %s61
      %p63 = scmp.eq.s32.totalorder %s25, 0
      %p64 = por %p62, %p63
      %s66 = sadd.s32 %s65, 1
      %p69 = scmp.eq.s32.totalorder %s19, 3
      %p70 = scmp.ne.s32.totalorder %s65, %s67
      %p71 = scmp.eq.s32.totalorder %s19, 0
      %p72 = por %p70, %p71
      %p73 = scmp.ne.s32.totalorder %s65, %s67
      %p74 = scmp.eq.s32.totalorder %s24, 3
      %p75 = por %p73, %p74
      %p76 = scmp.ne.s32.totalorder %s67, %s68
      %p77 = scmp.eq.s32.totalorder %s24, 0
      %p78 = por %p76, %p77
      %p79 = scmp.ne.s32.totalorder %s67, %s68
      %p80 = scmp.eq.s32.totalorder %s25, 3
      %p81 = por %p79, %p80
      %p83 = scmp.ne.s32.totalorder %s68, %s82
      %p84 = scmp.eq.s32.totalorder %s25, 0
      %p85 = por %p83, %p84
      %s87 = sadd.s32 %s86, 1
      %p90 = scmp.eq.s32.totalorder %s19, 3
      %p91 = scmp.ne.s32.totalorder %s86, %s88
      %p92 = scmp.eq.s32.totalorder %s19, 0
      %p93 = por %p91, %p92
      %p94 = scmp.ne.s32.totalorder %s86, %s88
      %p95 = scmp.eq.s32.totalorder %s24, 3
      %p96 = por %p94, %p95
      %p97 = scmp.ne.s32.totalorder %s88, %s89
      %p98 = scmp.eq.s32.totalorder %s24, 0
      %p99 = por %p97, %p98
      %p100 = scmp.ne.s32.totalorder %s88, %s89
      %p101 = scmp.eq.s32.totalorder %s25, 3
      %p102 = por %p100, %p101
      %p104 = scmp.ne.s32.totalorder %s89, %s103
      %p105 = scmp.eq.s32.totalorder %s25, 0
      %p106 = por %p104, %p105
      %s108 = sadd.s32 %s107, 1
      %p111 = scmp.eq.s32.totalorder %s19, 3
      %p112 = scmp.ne.s32.totalorder %s107, %s109
      %p113 = scmp.eq.s32.totalorder %s19, 0
      %p114 = por %p112, %p113
      %p115 = scmp.ne.s32.totalorder %s107, %s109
      %p116 = scmp.eq.s32.totalorder %s24, 3
      %p117 = por %p115, %p116
      %p118 = scmp.ne.s32.totalorder %s109, %s110
      %p119 = scmp.eq.s32.totalorder %s24, 0
      %p120 = por %p118, %p119
      %p121 = scmp.ne.s32.totalorder %s109, %s110
      %p122 = scmp.eq.s32.totalorder %s25, 3
      %p123 = por %p121, %p122
      %p125 = scmp.ne.s32.totalorder %s110, %s124
      %p126 = scmp.eq.s32.totalorder %s25, 0
      %p127 = por %p125, %p126
      %s129 = sadd.s32 %s128, 1
      %p132 = scmp.eq.s32.totalorder %s19, 3
      %p133 = scmp.ne.s32.totalorder %s128, %s130
      %p134 = scmp.eq.s32.totalorder %s19, 0
      %p135 = por %p133, %p134
      %p136 = scmp.ne.s32.totalorder %s128, %s130
      %p137 = scmp.eq.s32.totalorder %s24, 3
      %p138 = por %p136, %p137
      %p139 = scmp.ne.s32.totalorder %s130, %s131
      %p140 = scmp.eq.s32.totalorder %s24, 0
      %p141 = por %p139, %p140
      %p142 = scmp.ne.s32.totalorder %s130, %s131
      %p143 = scmp.eq.s32.totalorder %s25, 3
      %p144 = por %p142, %p143
      %p146 = scmp.ne.s32.totalorder %s131, %s145
      %p147 = scmp.eq.s32.totalorder %s25, 0
      %p148 = por %p146, %p147
      %s150 = sadd.s32 %s149, 1
      %p153 = scmp.eq.s32.totalorder %s19, 3
      %p154 = scmp.ne.s32.totalorder %s149, %s151
      %p155 = scmp.eq.s32.totalorder %s19, 0
      %p156 = por %p154, %p155
      %p157 = scmp.ne.s32.totalorder %s149, %s151
      %p158 = scmp.eq.s32.totalorder %s24, 3
      %p159 = por %p157, %p158
      %p160 = scmp.ne.s32.totalorder %s151, %s152
      %p161 = scmp.eq.s32.totalorder %s24, 0
      %p162 = por %p160, %p161
      %p163 = scmp.ne.s32.totalorder %s151, %s152
      %p164 = scmp.eq.s32.totalorder %s25, 3
      %p165 = por %p163, %p164
      %p167 = scmp.ne.s32.totalorder %s152, %s166
      %p168 = scmp.eq.s32.totalorder %s25, 0
      %p169 = por %p167, %p168
      %s171 = sadd.s32 %s170, 1
      %p174 = scmp.eq.s32.totalorder %s19, 3
      %p175 = scmp.ne.s32.totalorder %s170, %s172
      %p176 = scmp.eq.s32.totalorder %s19, 0
      %p177 = por %p175, %p176
      %p178 = scmp.ne.s32.totalorder %s170, %s172
      %p179 = scmp.eq.s32.totalorder %s24, 3
      %p180 = por %p178, %p179
      %p181 = scmp.ne.s32.totalorder %s172, %s173
      %p182 = scmp.eq.s32.totalorder %s24, 0
      %p183 = por %p181, %p182
      %p184 = scmp.ne.s32.totalorder %s172, %s173
      %p185 = scmp.eq.s32.totalorder %s25, 3
      %p186 = por %p184, %p185
      %p188 = scmp.ne.s32.totalorder %s173, %s187
      %p189 = scmp.eq.s32.totalorder %s25, 0
      %p190 = por %p188, %p189
      %s192 = sadd.s32 %s191, 1
      %p195 = scmp.eq.s32.totalorder %s19, 3
      %p196 = scmp.ne.s32.totalorder %s191, %s193
      %p197 = scmp.eq.s32.totalorder %s19, 0
      %p198 = por %p196, %p197
      %p199 = scmp.ne.s32.totalorder %s191, %s193
      %p200 = scmp.eq.s32.totalorder %s24, 3
      %p201 = por %p199, %p200
      %p202 = scmp.ne.s32.totalorder %s193, %s194
      %p203 = scmp.eq.s32.totalorder %s24, 0
      %p204 = por %p202, %p203
      %p205 = scmp.ne.s32.totalorder %s193, %s194
      %p206 = scmp.eq.s32.totalorder %s25, 3
      %p207 = por %p205, %p206
      %p209 = scmp.ne.s32.totalorder %s194, %s208
      %p210 = scmp.eq.s32.totalorder %s25, 0
      %p211 = por %p209, %p210
      %s212 = ssub.s32 %s26, %s38
      %p213 = scmp.eq.s32.totalorder %s212, 0
      %s215 = sadd.s32 %s214, 1
      %s216 = scalar_select %p213, %s214, %s215
      %p219 = pneg %p213
      %p220 = scmp.eq.s32.totalorder %s19, 3
      %p221 = por %p219, %p220
      %p222 = scmp.ne.s32.totalorder %s214, %s217
      %p223 = scmp.eq.s32.totalorder %s19, 0
      %p224 = por %p222, %p223
      %p225 = scmp.ne.s32.totalorder %s214, %s217
      %p226 = scmp.eq.s32.totalorder %s24, 3
      %p227 = por %p225, %p226
      %p228 = scmp.ne.s32.totalorder %s217, %s218
      %p229 = scmp.eq.s32.totalorder %s24, 0
      %p230 = por %p228, %p229
      %p231 = scmp.ne.s32.totalorder %s217, %s218
      %p232 = scmp.eq.s32.totalorder %s25, 3
      %p233 = por %p231, %p232
      %p235 = scmp.ne.s32.totalorder %s218, %s234
      %p236 = scmp.eq.s32.totalorder %s25, 0
      %p237 = por %p235, %p236
      %p238 = scmp.le.s32.totalorder 1, %s19
      %p239 = scmp.lt.s32.totalorder %s19, 5
      %p240 = pnand %p238, %p239
      %p241 = pneg %p240
      // Predicated region
      $region9: #{tpu_custom_call.1} parent=5 // pred_check
        _
      $region10: #{tpu_custom_call.1} parent=5 // pred_check_branch
        %243 = sbr.rel (%p240) target = $region12
      $region11: #{tpu_custom_call.1} parent=5 // pred_region
        %s244 = ssub.s32 %s19, 1
        // Predicated region
        $region13: #{tpu_custom_call.1} parent=11 // pred_check
          %p245 = pneg %p57
        $region14: #{tpu_custom_call.1} parent=11 // pred_check_branch
          %247 = sbr.rel (%p245) target = $region16
        $region15: #{tpu_custom_call.1} parent=11 // pred_region
          %s248 = smul.u32 8, %s28
          %250 = vsyncadd [#allocation4], 0
          %s251 = smul.addr %s248, 8
          %s252 = scalar_lea.hbm %s0, %s251
          %s253 = sshll.u32 %s252, 4
          %s254 = int_to_ptr.hbm [resolvable:$true] %s253
          %s255 = sshll.u32 [#allocation3], 4
          %s256 = int_to_ptr.vmem [resolvable:$true] %s255
          %261 = dma.hbm_to_vmem [thread:$0]  %s254, 1024, %s256, [#allocation4], 128, 128, 8
        $region16: #{tpu_custom_call.1} parent=11 // pred_fallthru
          _
        // Predicated region
        $region17: #{tpu_custom_call.1} parent=11 // pred_check
          %p262 = pneg %p78
        $region18: #{tpu_custom_call.1} parent=11 // pred_check_branch
          %264 = sbr.rel (%p262) target = $region20
        $region19: #{tpu_custom_call.1} parent=11 // pred_region
          %266 = vsyncadd [#allocation7], 0
          %s267 = sshll.u32 %s1, 4
          %s268 = int_to_ptr.hbm [resolvable:$true] %s267
          %s269 = sshll.u32 [#allocation6], 4
          %s270 = int_to_ptr.vmem [resolvable:$true] %s269
          %275 = dma.hbm_to_vmem [thread:$0]  %s268, 12288, %s270, [#allocation7], 192, 192, 12
        $region20: #{tpu_custom_call.1} parent=11 // pred_fallthru
          _
        // Predicated region
        $region21: #{tpu_custom_call.1} parent=11 // pred_check
          %p276 = pneg %p99
        $region22: #{tpu_custom_call.1} parent=11 // pred_check_branch
          %278 = sbr.rel (%p276) target = $region24
        $region23: #{tpu_custom_call.1} parent=11 // pred_region
          %280 = vsyncadd [#allocation7], 0
          %s281 = sshll.u32 %s2, 4
          %s282 = int_to_ptr.hbm [resolvable:$true] %s281
          %s283 = sshll.u32 [#allocation8], 4
          %s284 = int_to_ptr.vmem [resolvable:$true] %s283
          %289 = dma.hbm_to_vmem [thread:$0]  %s282, 4096, %s284, [#allocation7], 64, 64, 4
        $region24: #{tpu_custom_call.1} parent=11 // pred_fallthru
          _
        // Predicated region
        $region25: #{tpu_custom_call.1} parent=11 // pred_check
          %p290 = pneg %p120
        $region26: #{tpu_custom_call.1} parent=11 // pred_check_branch
          %292 = sbr.rel (%p290) target = $region28
        $region27: #{tpu_custom_call.1} parent=11 // pred_region
          %294 = vsyncadd [#allocation10], 0
          %s295 = sshll.u32 %s3, 4
          %s296 = int_to_ptr.hbm [resolvable:$true] %s295
          %s297 = sshll.u32 [#allocation9], 4
          %s298 = int_to_ptr.vmem [resolvable:$true] %s297
          %303 = dma.hbm_to_vmem [thread:$0]  %s296, 16384, %s298, [#allocation10], 256, 256, 16
        $region28: #{tpu_custom_call.1} parent=11 // pred_fallthru
          _
        // Predicated region
        $region29: #{tpu_custom_call.1} parent=11 // pred_check
          %p304 = pneg %p141
        $region30: #{tpu_custom_call.1} parent=11 // pred_check_branch
          %306 = sbr.rel (%p304) target = $region32
        $region31: #{tpu_custom_call.1} parent=11 // pred_region
          %308 = vsyncadd [#allocation10], 0
          %s309 = sshll.u32 %s4, 4
          %s310 = int_to_ptr.hbm [resolvable:$true] %s309
          %s311 = sshll.u32 [#allocation11], 4
          %s312 = int_to_ptr.vmem [resolvable:$true] %s311
          %317 = dma.hbm_to_vmem [thread:$0]  %s310, 16384, %s312, [#allocation10], 64, 64, 4
        $region32: #{tpu_custom_call.1} parent=11 // pred_fallthru
          _
        // Predicated region
        $region33: #{tpu_custom_call.1} parent=11 // pred_check
          %p318 = pneg %p162
        $region34: #{tpu_custom_call.1} parent=11 // pred_check_branch
          %320 = sbr.rel (%p318) target = $region36
        $region35: #{tpu_custom_call.1} parent=11 // pred_region
          %322 = vsyncadd [#allocation13], 0
          %s323 = sshll.u32 %s5, 4
          %s324 = int_to_ptr.hbm [resolvable:$true] %s323
          %s325 = sshll.u32 [#allocation12], 4
          %s326 = int_to_ptr.vmem [resolvable:$true] %s325
          %331 = dma.hbm_to_vmem [thread:$0]  %s324, 256, %s326, [#allocation13], 64, 64, 4
        $region36: #{tpu_custom_call.1} parent=11 // pred_fallthru
          _
        // Predicated region
        $region37: #{tpu_custom_call.1} parent=11 // pred_check
          %p332 = pneg %p183
        $region38: #{tpu_custom_call.1} parent=11 // pred_check_branch
          %334 = sbr.rel (%p332) target = $region40
        $region39: #{tpu_custom_call.1} parent=11 // pred_region
          _
        $region40: #{tpu_custom_call.1} parent=11 // pred_fallthru
          _
        // Predicated region
        $region41: #{tpu_custom_call.1} parent=11 // pred_check
          %p335 = pneg %p204
        $region42: #{tpu_custom_call.1} parent=11 // pred_check_branch
          %337 = sbr.rel (%p335) target = $region44
        $region43: #{tpu_custom_call.1} parent=11 // pred_region
          %339 = vsyncadd [#allocation13], 0
          %s340 = sshll.u32 %s7, 4
          %s341 = int_to_ptr.hbm [resolvable:$true] %s340
          %s342 = sshll.u32 [#allocation14], 4
          %s343 = int_to_ptr.vmem [resolvable:$true] %s342
          %348 = dma.hbm_to_vmem [thread:$0]  %s341, 1024, %s343, [#allocation13], 64, 64, 4
        $region44: #{tpu_custom_call.1} parent=11 // pred_fallthru
          _
      $region12: #{tpu_custom_call.1} parent=5 // pred_fallthru
        _
      %p349 = scmp.lt.s32.totalorder %s19, 4
      // Predicated region
      $region45: #{tpu_custom_call.1} parent=5 // pred_check
        %p350 = pneg %p349
      $region46: #{tpu_custom_call.1} parent=5 // pred_check_branch
        %352 = sbr.rel (%p350) target = $region48
      $region47: #{tpu_custom_call.1} parent=5 // pred_region
        _
      $region48: #{tpu_custom_call.1} parent=5 // pred_fallthru
        _
      %p353 = scmp.le.s32.totalorder 1, %s19
      %p354 = scmp.lt.s32.totalorder %s19, 5
      %p355 = pnand %p353, %p354
      %p356 = pneg %p355
      // Predicated region
      $region49: #{tpu_custom_call.1} parent=5 // pred_check
        _
      $region50: #{tpu_custom_call.1} parent=5 // pred_check_branch
        %358 = sbr.rel (%p355) target = $region52
      $region51: #{tpu_custom_call.1} parent=5 // pred_region
        %s359 = ssub.s32 %s19, 1
        // Predicated region
        $region53: #{tpu_custom_call.1} parent=51 // pred_check
          %p360 = pneg %p57
        $region54: #{tpu_custom_call.1} parent=51 // pred_check_branch
          %362 = sbr.rel (%p360) target = $region56
        $region55: #{tpu_custom_call.1} parent=51 // pred_region
          %364 = dma.done [#allocation4], 1024
        $region56: #{tpu_custom_call.1} parent=51 // pred_fallthru
          _
        // Predicated region
        $region57: #{tpu_custom_call.1} parent=51 // pred_check
          %p365 = pneg %p78
        $region58: #{tpu_custom_call.1} parent=51 // pred_check_branch
          %367 = sbr.rel (%p365) target = $region60
        $region59: #{tpu_custom_call.1} parent=51 // pred_region
          %369 = dma.done [#allocation7], 12288
        $region60: #{tpu_custom_call.1} parent=51 // pred_fallthru
          _
        // Predicated region
        $region61: #{tpu_custom_call.1} parent=51 // pred_check
          %p370 = pneg %p99
        $region62: #{tpu_custom_call.1} parent=51 // pred_check_branch
          %372 = sbr.rel (%p370) target = $region64
        $region63: #{tpu_custom_call.1} parent=51 // pred_region
          %374 = dma.done [#allocation7], 4096
        $region64: #{tpu_custom_call.1} parent=51 // pred_fallthru
          _
        // Predicated region
        $region65: #{tpu_custom_call.1} parent=51 // pred_check
          %p375 = pneg %p120
        $region66: #{tpu_custom_call.1} parent=51 // pred_check_branch
          %377 = sbr.rel (%p375) target = $region68
        $region67: #{tpu_custom_call.1} parent=51 // pred_region
          %379 = dma.done [#allocation10], 16384
        $region68: #{tpu_custom_call.1} parent=51 // pred_fallthru
          _
        // Predicated region
        $region69: #{tpu_custom_call.1} parent=51 // pred_check
          %p380 = pneg %p141
        $region70: #{tpu_custom_call.1} parent=51 // pred_check_branch
          %382 = sbr.rel (%p380) target = $region72
        $region71: #{tpu_custom_call.1} parent=51 // pred_region
          %384 = dma.done [#allocation10], 16384
        $region72: #{tpu_custom_call.1} parent=51 // pred_fallthru
          _
        // Predicated region
        $region73: #{tpu_custom_call.1} parent=51 // pred_check
          %p385 = pneg %p162
        $region74: #{tpu_custom_call.1} parent=51 // pred_check_branch
          %387 = sbr.rel (%p385) target = $region76
        $region75: #{tpu_custom_call.1} parent=51 // pred_region
          %389 = dma.done [#allocation13], 256
        $region76: #{tpu_custom_call.1} parent=51 // pred_fallthru
          _
        // Predicated region
        $region77: #{tpu_custom_call.1} parent=51 // pred_check
          %p390 = pneg %p204
        $region78: #{tpu_custom_call.1} parent=51 // pred_check_branch
          %392 = sbr.rel (%p390) target = $region80
        $region79: #{tpu_custom_call.1} parent=51 // pred_region
          %394 = dma.done [#allocation13], 1024
        $region80: #{tpu_custom_call.1} parent=51 // pred_fallthru
          _
        %p395 = pneg %p57
        %p396 = pneg %p54
        %p397 = pneg %p78
        %p398 = pneg %p75
        %p399 = pneg %p99
        %p400 = pneg %p96
        %p401 = pneg %p120
        %p402 = pneg %p117
        %p403 = pneg %p141
        %p404 = pneg %p138
        %p405 = pneg %p162
        %p406 = pneg %p159
        %p407 = pneg %p183
        %p408 = pneg %p180
        %p409 = pneg %p204
        %p410 = pneg %p201
        %p411 = pneg %p230
        %p412 = pneg %p227
        %s413 = smul.u32 8, %s28
        %s414 = smul.u32 8, %s28
        %p415 = scmp.eq.s32.totalorder %s29, 0
        // Predicated region
        $region81: #{tpu_custom_call.1} parent=51 // pred_check
          %p416 = pneg %p415
        $region82: #{tpu_custom_call.1} parent=51 // pred_check_branch
          %418 = sbr.rel (%p416) target = $region84
        $region83: #{tpu_custom_call.1} parent=51 // pred_region
          %v419 = vld [vmem:[#allocation3] sm:$0xff]
          %v420 = vld [vmem:[#allocation3 + $0x8] sm:$0xff]
          %v421 = vld [vmem:[#allocation3 + $0x10] sm:$0xff]
          %v422 = vld [vmem:[#allocation3 + $0x18] sm:$0xff]
          %v423 = vld [vmem:[#allocation3 + $0x20] sm:$0xff]
          %v424 = vld [vmem:[#allocation3 + $0x28] sm:$0xff]
          %v425 = vld [vmem:[#allocation3 + $0x30] sm:$0xff]
          %v426 = vld [vmem:[#allocation3 + $0x38] sm:$0xff]
          %427 = vst [vmem:[#allocation2] sm:$0xff] %v419
          %428 = vst [vmem:[#allocation2 + $0x8] sm:$0xff] %v420
          %429 = vst [vmem:[#allocation2 + $0x10] sm:$0xff] %v421
          %430 = vst [vmem:[#allocation2 + $0x18] sm:$0xff] %v422
          %431 = vst [vmem:[#allocation2 + $0x20] sm:$0xff] %v423
          %432 = vst [vmem:[#allocation2 + $0x28] sm:$0xff] %v424
          %433 = vst [vmem:[#allocation2 + $0x30] sm:$0xff] %v425
          %434 = vst [vmem:[#allocation2 + $0x38] sm:$0xff] %v426
        $region84: #{tpu_custom_call.1} parent=51 // pred_fallthru
          _
        %v435 = vld [vmem:[#allocation2] sm:$0xff]
        %v436 = vld [vmem:[#allocation2 + $0x8] sm:$0xff]
        %v437 = vld [vmem:[#allocation2 + $0x10] sm:$0xff]
        %v438 = vld [vmem:[#allocation2 + $0x18] sm:$0xff]
        %v439 = vld [vmem:[#allocation2 + $0x20] sm:$0xff]
        %v440 = vld [vmem:[#allocation2 + $0x28] sm:$0xff]
        %v441 = vld [vmem:[#allocation2 + $0x30] sm:$0xff]
        %v442 = vld [vmem:[#allocation2 + $0x38] sm:$0xff]
        %s443 = smul.u32 %s29, 4
        %s444 = scalar_lea.vmem [#allocation12], %s443
        %v445 = vld [vmem:[%s444] sm:$0xf]
        %446 = vadd.xlane.f32.xlu0 %v435
        %v447 = vpop.xlane.xlu0 %446
        %448 = vadd.xlane.f32.xlu0 %v436
        %v449 = vpop.xlane.xlu0 %448
        %450 = vadd.xlane.f32.xlu0 %v437
        %v451 = vpop.xlane.xlu0 %450
        %452 = vadd.xlane.f32.xlu0 %v438
        %v453 = vpop.xlane.xlu0 %452
        %454 = vadd.xlane.f32.xlu0 %v439
        %v455 = vpop.xlane.xlu0 %454
        %456 = vadd.xlane.f32.xlu0 %v440
        %v457 = vpop.xlane.xlu0 %456
        %458 = vadd.xlane.f32.xlu0 %v441
        %v459 = vpop.xlane.xlu0 %458
        %460 = vadd.xlane.f32.xlu0 %v442
        %v461 = vpop.xlane.xlu0 %460
        %v462 = vrcp.pop 128.0
        %v463 = vmul.f32 128.0, %v462
        %v464 = vsub.f32 1.0, %v463
        %v465 = vmul.f32 %v462, %v464
        %v466 = vadd.f32 %v462, %v465
        %vm467 = vweird.f32 %v462
        %v468 = vsel %vm467, %v462, %v466
        %v469 = vmul.f32 %v447, %v468
        %v470 = vmul.f32 %v449, %v468
        %v471 = vmul.f32 %v451, %v468
        %v472 = vmul.f32 %v453, %v468
        %v473 = vmul.f32 %v455, %v468
        %v474 = vmul.f32 %v457, %v468
        %v475 = vmul.f32 %v459, %v468
        %v476 = vmul.f32 %v461, %v468
        %v477 = vsub.f32 %v435, %v469
        %v478 = vsub.f32 %v436, %v470
        %v479 = vsub.f32 %v437, %v471
        %v480 = vsub.f32 %v438, %v472
        %v481 = vsub.f32 %v439, %v473
        %v482 = vsub.f32 %v440, %v474
        %v483 = vsub.f32 %v441, %v475
        %v484 = vsub.f32 %v442, %v476
        %v485 = vmul.f32 %v477, %v477
        %v486 = vmul.f32 %v478, %v478
        %v487 = vmul.f32 %v479, %v479
        %v488 = vmul.f32 %v480, %v480
        %v489 = vmul.f32 %v481, %v481
        %v490 = vmul.f32 %v482, %v482
        %v491 = vmul.f32 %v483, %v483
        %v492 = vmul.f32 %v484, %v484
        %493 = vadd.xlane.f32.xlu0 %v485
        %v494 = vpop.xlane.xlu0 %493
        %495 = vadd.xlane.f32.xlu0 %v486
        %v496 = vpop.xlane.xlu0 %495
        %497 = vadd.xlane.f32.xlu0 %v487
        %v498 = vpop.xlane.xlu0 %497
        %499 = vadd.xlane.f32.xlu0 %v488
        %v500 = vpop.xlane.xlu0 %499
        %501 = vadd.xlane.f32.xlu0 %v489
        %v502 = vpop.xlane.xlu0 %501
        %503 = vadd.xlane.f32.xlu0 %v490
        %v504 = vpop.xlane.xlu0 %503
        %505 = vadd.xlane.f32.xlu0 %v491
        %v506 = vpop.xlane.xlu0 %505
        %507 = vadd.xlane.f32.xlu0 %v492
        %v508 = vpop.xlane.xlu0 %507
        %v509 = vmul.f32 %v494, %v468
        %v510 = vmul.f32 %v496, %v468
        %v511 = vmul.f32 %v498, %v468
        %v512 = vmul.f32 %v500, %v468
        %v513 = vmul.f32 %v502, %v468
        %v514 = vmul.f32 %v504, %v468
        %v515 = vmul.f32 %v506, %v468
        %v516 = vmul.f32 %v508, %v468
        %v517 = vadd.f32 %v509, 1e-05
        %v518 = vadd.f32 %v510, 1e-05
        %v519 = vadd.f32 %v511, 1e-05
        %v520 = vadd.f32 %v512, 1e-05
        %v521 = vadd.f32 %v513, 1e-05
        %v522 = vadd.f32 %v514, 1e-05
        %v523 = vadd.f32 %v515, 1e-05
        %v524 = vadd.f32 %v516, 1e-05
        %v525 = vrsqrt.pop %v517
        %v526 = vmul.f32 %v525, %v517
        %v527 = vmul.f32 %v526, %v525
        %v528 = vmul.f32 0.5, %v527
        %v529 = vsub.f32 1.5, %v528
        %v530 = vmul.f32 %v525, %v529
        %vm531 = vweird.f32 %v517
        %vm532 = vweird.f32 %v525
        %vm533 = vmor %vm531, %vm532
        %v534 = vsel %vm533, %v525, %v530
        %v535 = vrsqrt.pop %v518
        %v536 = vmul.f32 %v535, %v518
        %v537 = vmul.f32 %v536, %v535
        %v538 = vmul.f32 0.5, %v537
        %v539 = vsub.f32 1.5, %v538
        %v540 = vmul.f32 %v535, %v539
        %vm541 = vweird.f32 %v518
        %vm542 = vweird.f32 %v535
        %vm543 = vmor %vm541, %vm542
        %v544 = vsel %vm543, %v535, %v540
        %v545 = vrsqrt.pop %v519
        %v546 = vmul.f32 %v545, %v519
        %v547 = vmul.f32 %v546, %v545
        %v548 = vmul.f32 0.5, %v547
        %v549 = vsub.f32 1.5, %v548
        %v550 = vmul.f32 %v545, %v549
        %vm551 = vweird.f32 %v519
        %vm552 = vweird.f32 %v545
        %vm553 = vmor %vm551, %vm552
        %v554 = vsel %vm553, %v545, %v550
        %v555 = vrsqrt.pop %v520
        %v556 = vmul.f32 %v555, %v520
        %v557 = vmul.f32 %v556, %v555
        %v558 = vmul.f32 0.5, %v557
        %v559 = vsub.f32 1.5, %v558
        %v560 = vmul.f32 %v555, %v559
        %vm561 = vweird.f32 %v520
        %vm562 = vweird.f32 %v555
        %vm563 = vmor %vm561, %vm562
        %v564 = vsel %vm563, %v555, %v560
        %v565 = vrsqrt.pop %v521
        %v566 = vmul.f32 %v565, %v521
        %v567 = vmul.f32 %v566, %v565
        %v568 = vmul.f32 0.5, %v567
        %v569 = vsub.f32 1.5, %v568
        %v570 = vmul.f32 %v565, %v569
        %vm571 = vweird.f32 %v521
        %vm572 = vweird.f32 %v565
        %vm573 = vmor %vm571, %vm572
        %v574 = vsel %vm573, %v565, %v570
        %v575 = vrsqrt.pop %v522
        %v576 = vmul.f32 %v575, %v522
        %v577 = vmul.f32 %v576, %v575
        %v578 = vmul.f32 0.5, %v577
        %v579 = vsub.f32 1.5, %v578
        %v580 = vmul.f32 %v575, %v579
        %vm581 = vweird.f32 %v522
        %vm582 = vweird.f32 %v575
        %vm583 = vmor %vm581, %vm582
        %v584 = vsel %vm583, %v575, %v580
        %v585 = vrsqrt.pop %v523
        %v586 = vmul.f32 %v585, %v523
        %v587 = vmul.f32 %v586, %v585
        %v588 = vmul.f32 0.5, %v587
        %v589 = vsub.f32 1.5, %v588
        %v590 = vmul.f32 %v585, %v589
        %vm591 = vweird.f32 %v523
        %vm592 = vweird.f32 %v585
        %vm593 = vmor %vm591, %vm592
        %v594 = vsel %vm593, %v585, %v590
        %v595 = vrsqrt.pop %v524
        %v596 = vmul.f32 %v595, %v524
        %v597 = vmul.f32 %v596, %v595
        %v598 = vmul.f32 0.5, %v597
        %v599 = vsub.f32 1.5, %v598
        %v600 = vmul.f32 %v595, %v599
        %vm601 = vweird.f32 %v524
        %vm602 = vweird.f32 %v595
        %vm603 = vmor %vm601, %vm602
        %v604 = vsel %vm603, %v595, %v600
        %v605 = vmul.f32 %v477, %v534
        %v606 = vmul.f32 %v478, %v544
        %v607 = vmul.f32 %v479, %v554
        %v608 = vmul.f32 %v480, %v564
        %v609 = vmul.f32 %v481, %v574
        %v610 = vmul.f32 %v482, %v584
        %v611 = vmul.f32 %v483, %v594
        %v612 = vmul.f32 %v484, %v604
        %v613 = vperm.slane %v445, 0
        %v614 = vmul.f32 %v605, %v613
        %v615 = vmul.f32 %v606, %v613
        %v616 = vmul.f32 %v607, %v613
        %v617 = vmul.f32 %v608, %v613
        %v618 = vmul.f32 %v609, %v613
        %v619 = vmul.f32 %v610, %v613
        %v620 = vmul.f32 %v611, %v613
        %v621 = vmul.f32 %v612, %v613
        %v622 = vperm.slane %v445, 1
        %v623 = vadd.f32 %v614, %v622
        %v624 = vadd.f32 %v615, %v622
        %v625 = vadd.f32 %v616, %v622
        %v626 = vadd.f32 %v617, %v622
        %v627 = vadd.f32 %v618, %v622
        %v628 = vadd.f32 %v619, %v622
        %v629 = vadd.f32 %v620, %v622
        %v630 = vadd.f32 %v621, %v622
        %v631 = vpack.c.bf16 %v624, %v623
        %v632 = vpack.c.bf16 %v626, %v625
        %v633 = vpack.c.bf16 %v628, %v627
        %v634 = vpack.c.bf16 %v630, %v629
        %s635 = smul.u32 %s29, 48
        %s636 = smul.addr %s635, 4
        %s637 = scalar_lea.vmem [#allocation6], %s636
        %v638 = vld [vmem:[%s637] sm:$0xff]
        %v639 = vld [vmem:[%s637 + $0x8] sm:$0xf]
        %v640 = vld [vmem:[%s637 + $0xc] sm:$0xff]
        %v641 = vld [vmem:[%s637 + $0x14] sm:$0xf]
        %v642 = vld [vmem:[%s637 + $0x18] sm:$0xff]
        %v643 = vld [vmem:[%s637 + $0x20] sm:$0xf]
        %v644 = vld [vmem:[%s637 + $0x24] sm:$0xff]
        %v645 = vld [vmem:[%s637 + $0x2c] sm:$0xf]
        %v646 = vld [vmem:[%s637 + $0x30] sm:$0xff]
        %v647 = vld [vmem:[%s637 + $0x38] sm:$0xf]
        %v648 = vld [vmem:[%s637 + $0x3c] sm:$0xff]
        %v649 = vld [vmem:[%s637 + $0x44] sm:$0xf]
        %v650 = vld [vmem:[%s637 + $0x48] sm:$0xff]
        %v651 = vld [vmem:[%s637 + $0x50] sm:$0xf]
        %v652 = vld [vmem:[%s637 + $0x54] sm:$0xff]
        %v653 = vld [vmem:[%s637 + $0x5c] sm:$0xf]
        %v654 = vld [vmem:[%s637 + $0x60] sm:$0xff]
        %v655 = vld [vmem:[%s637 + $0x68] sm:$0xf]
        %v656 = vld [vmem:[%s637 + $0x6c] sm:$0xff]
        %v657 = vld [vmem:[%s637 + $0x74] sm:$0xf]
        %v658 = vld [vmem:[%s637 + $0x78] sm:$0xff]
        %v659 = vld [vmem:[%s637 + $0x80] sm:$0xf]
        %v660 = vld [vmem:[%s637 + $0x84] sm:$0xff]
        %v661 = vld [vmem:[%s637 + $0x8c] sm:$0xf]
        %v662 = vld [vmem:[%s637 + $0x90] sm:$0xff]
        %v663 = vld [vmem:[%s637 + $0x98] sm:$0xf]
        %v664 = vld [vmem:[%s637 + $0x9c] sm:$0xff]
        %v665 = vld [vmem:[%s637 + $0xa4] sm:$0xf]
        %v666 = vld [vmem:[%s637 + $0xa8] sm:$0xff]
        %v667 = vld [vmem:[%s637 + $0xb0] sm:$0xf]
        %v668 = vld [vmem:[%s637 + $0xb4] sm:$0xff]
        %v669 = vld [vmem:[%s637 + $0xbc] sm:$0xf]
        %v702 = vunpack.c.l.b16 %v638
        %v703 = vunpack.c.h.b16 %v638
        %v704 = vunpack.c.l.b16 %v639
        %v705 = vunpack.c.l.b16 %v640
        %v706 = vunpack.c.h.b16 %v640
        %v707 = vunpack.c.l.b16 %v641
        %v708 = vunpack.c.l.b16 %v642
        %v709 = vunpack.c.h.b16 %v642
        %v710 = vunpack.c.l.b16 %v643
        %v711 = vunpack.c.l.b16 %v644
        %v712 = vunpack.c.h.b16 %v644
        %v713 = vunpack.c.l.b16 %v645
        %v714 = vunpack.c.l.b16 %v646
        %v715 = vunpack.c.h.b16 %v646
        %v716 = vunpack.c.l.b16 %v647
        %v717 = vunpack.c.l.b16 %v648
        %v718 = vunpack.c.h.b16 %v648
        %v719 = vunpack.c.l.b16 %v649
        %v720 = vunpack.c.l.b16 %v650
        %v721 = vunpack.c.h.b16 %v650
        %v722 = vunpack.c.l.b16 %v651
        %v723 = vunpack.c.l.b16 %v652
        %v724 = vunpack.c.h.b16 %v652
        %v725 = vunpack.c.l.b16 %v653
        %v726 = vunpack.c.l.b16 %v654
        %v727 = vunpack.c.h.b16 %v654
        %v728 = vunpack.c.l.b16 %v655
        %v729 = vunpack.c.l.b16 %v656
        %v730 = vunpack.c.h.b16 %v656
        %v731 = vunpack.c.l.b16 %v657
        %v732 = vunpack.c.l.b16 %v658
        %v733 = vunpack.c.h.b16 %v658
        %v734 = vunpack.c.l.b16 %v659
        %v735 = vunpack.c.l.b16 %v660
        %v736 = vunpack.c.h.b16 %v660
        %v737 = vunpack.c.l.b16 %v661
        %v738 = vunpack.c.l.b16 %v662
        %v739 = vunpack.c.h.b16 %v662
        %v740 = vunpack.c.l.b16 %v663
        %v741 = vunpack.c.l.b16 %v664
        %v742 = vunpack.c.h.b16 %v664
        %v743 = vunpack.c.l.b16 %v665
        %v744 = vunpack.c.l.b16 %v666
        %v745 = vunpack.c.h.b16 %v666
        %v746 = vunpack.c.l.b16 %v667
        %v747 = vunpack.c.l.b16 %v668
        %v748 = vunpack.c.h.b16 %v668
        %v749 = vunpack.c.l.b16 %v669
        %v750 = vpack.c.b16 %v705, %v702
        %v751 = vpack.c.b16 %v706, %v703
        %v752 = vpack.c.b16 %v707, %v704
        %v753 = vpack.c.b16 %v711, %v708
        %v754 = vpack.c.b16 %v712, %v709
        %v755 = vpack.c.b16 %v713, %v710
        %v756 = vpack.c.b16 %v717, %v714
        %v757 = vpack.c.b16 %v718, %v715
        %v758 = vpack.c.b16 %v719, %v716
        %v759 = vpack.c.b16 %v723, %v720
        %v760 = vpack.c.b16 %v724, %v721
        %v761 = vpack.c.b16 %v725, %v722
        %v762 = vpack.c.b16 %v729, %v726
        %v763 = vpack.c.b16 %v730, %v727
        %v764 = vpack.c.b16 %v731, %v728
        %v765 = vpack.c.b16 %v735, %v732
        %v766 = vpack.c.b16 %v736, %v733
        %v767 = vpack.c.b16 %v737, %v734
        %v768 = vpack.c.b16 %v741, %v738
        %v769 = vpack.c.b16 %v742, %v739
        %v770 = vpack.c.b16 %v743, %v740
        %v771 = vpack.c.b16 %v747, %v744
        %v772 = vpack.c.b16 %v748, %v745
        %v773 = vpack.c.b16 %v749, %v746
        %798 = vmatpush.bf16.msra.mxu0 %v771
        %799 = vmatpush.bf16.msra.mxu0 %v768
        %800 = vmatpush.bf16.msra.mxu0 %v765
        %801 = vmatpush.bf16.msra.mxu0 %v762
        %802 = vmatpush.bf16.msra.mxu0 %v759
        %803 = vmatpush.bf16.msra.mxu0 %v756
        %804 = vmatpush.bf16.msra.mxu0 %v753
        %805 = vmatpush.bf16.msra.mxu0 %v750
        %806 = vmatmul.bf16.gmra.mxu0 %v631
        %v807 = vpop.f32.mrf.mxu0
        %v808 = vadd.f32 0.0, %v807
        %v809 = vpop.f32.mrf.mxu0
        %v810 = vadd.f32 0.0, %v809
        %811 = vmatmul.bf16.gmra.mxu0 %v632
        %v812 = vpop.f32.mrf.mxu0
        %v813 = vadd.f32 0.0, %v812
        %v814 = vpop.f32.mrf.mxu0
        %v815 = vadd.f32 0.0, %v814
        %816 = vmatmul.bf16.gmra.mxu0 %v633
        %v817 = vpop.f32.mrf.mxu0
        %v818 = vadd.f32 0.0, %v817
        %v819 = vpop.f32.mrf.mxu0
        %v820 = vadd.f32 0.0, %v819
        %821 = vmatmul.bf16.gmra.mxu0 %v634
        %v822 = vpop.f32.mrf.mxu0
        %v823 = vadd.f32 0.0, %v822
        %v824 = vpop.f32.mrf.mxu0
        %v825 = vadd.f32 0.0, %v824
        %826 = vdwg.mxu0
        %827 = vmatpush.bf16.msra.mxu0 %v772
        %828 = vmatpush.bf16.msra.mxu0 %v769
        %829 = vmatpush.bf16.msra.mxu0 %v766
        %830 = vmatpush.bf16.msra.mxu0 %v763
        %831 = vmatpush.bf16.msra.mxu0 %v760
        %832 = vmatpush.bf16.msra.mxu0 %v757
        %833 = vmatpush.bf16.msra.mxu0 %v754
        %834 = vmatpush.bf16.msra.mxu0 %v751
        %835 = vmatmul.bf16.gmra.mxu0 %v631
        %v836 = vpop.f32.mrf.mxu0
        %v837 = vadd.f32 0.0, %v836
        %v838 = vpop.f32.mrf.mxu0
        %v839 = vadd.f32 0.0, %v838
        %840 = vmatmul.bf16.gmra.mxu0 %v632
        %v841 = vpop.f32.mrf.mxu0
        %v842 = vadd.f32 0.0, %v841
        %v843 = vpop.f32.mrf.mxu0
        %v844 = vadd.f32 0.0, %v843
        %845 = vmatmul.bf16.gmra.mxu0 %v633
        %v846 = vpop.f32.mrf.mxu0
        %v847 = vadd.f32 0.0, %v846
        %v848 = vpop.f32.mrf.mxu0
        %v849 = vadd.f32 0.0, %v848
        %850 = vmatmul.bf16.gmra.mxu0 %v634
        %v851 = vpop.f32.mrf.mxu0
        %v852 = vadd.f32 0.0, %v851
        %v853 = vpop.f32.mrf.mxu0
        %v854 = vadd.f32 0.0, %v853
        %855 = vdwg.mxu0
        %856 = vmatpush.bf16.msra.mxu0 %v773
        %857 = vmatpush.bf16.msra.mxu0 %v770
        %858 = vmatpush.bf16.msra.mxu0 %v767
        %859 = vmatpush.bf16.msra.mxu0 %v764
        %860 = vmatpush.bf16.msra.mxu0 %v761
        %861 = vmatpush.bf16.msra.mxu0 %v758
        %862 = vmatpush.bf16.msra.mxu0 %v755
        %863 = vmatpush.bf16.msra.mxu0 %v752
        %864 = vmatmul.bf16.gmra.mxu0 %v631
        %v865 = vpop.f32.mrf.mxu0
        %v866 = vadd.f32 0.0, %v865
        %v867 = vpop.f32.mrf.mxu0
        %v868 = vadd.f32 0.0, %v867
        %869 = vmatmul.bf16.gmra.mxu0 %v632
        %v870 = vpop.f32.mrf.mxu0
        %v871 = vadd.f32 0.0, %v870
        %v872 = vpop.f32.mrf.mxu0
        %v873 = vadd.f32 0.0, %v872
        %874 = vmatmul.bf16.gmra.mxu0 %v633
        %v875 = vpop.f32.mrf.mxu0
        %v876 = vadd.f32 0.0, %v875
        %v877 = vpop.f32.mrf.mxu0
        %v878 = vadd.f32 0.0, %v877
        %879 = vmatmul.bf16.gmra.mxu0 %v634
        %v880 = vpop.f32.mrf.mxu0
        %v881 = vadd.f32 0.0, %v880
        %v882 = vpop.f32.mrf.mxu0
        %v883 = vadd.f32 0.0, %v882
        %884 = vdwg.mxu0
        %v885 = vmul.f32 %v808, 0.17677669
        %v886 = vmul.f32 %v810, 0.17677669
        %v887 = vmul.f32 %v813, 0.17677669
        %v888 = vmul.f32 %v815, 0.17677669
        %v889 = vmul.f32 %v818, 0.17677669
        %v890 = vmul.f32 %v820, 0.17677669
        %v891 = vmul.f32 %v823, 0.17677669
        %v892 = vmul.f32 %v825, 0.17677669
        %901 = vrot.lane.b32.xlu0 %v885, 96
        %v902 = vpop.permute.xlu0 %901
        %903 = vrot.lane.b32.xlu0 %v886, 96
        %v904 = vpop.permute.xlu0 %903
        %905 = vrot.lane.b32.xlu0 %v887, 96
        %v906 = vpop.permute.xlu0 %905
        %907 = vrot.lane.b32.xlu0 %v888, 96
        %v908 = vpop.permute.xlu0 %907
        %909 = vrot.lane.b32.xlu0 %v889, 96
        %v910 = vpop.permute.xlu0 %909
        %911 = vrot.lane.b32.xlu0 %v890, 96
        %v912 = vpop.permute.xlu0 %911
        %913 = vrot.lane.b32.xlu0 %v891, 96
        %v914 = vpop.permute.xlu0 %913
        %915 = vrot.lane.b32.xlu0 %v892, 96
        %v916 = vpop.permute.xlu0 %915
        %917 = vrot.lane.b32.xlu0 %v885, 64
        %v918 = vpop.permute.xlu0 %917
        %919 = vrot.lane.b32.xlu0 %v886, 64
        %v920 = vpop.permute.xlu0 %919
        %921 = vrot.lane.b32.xlu0 %v887, 64
        %v922 = vpop.permute.xlu0 %921
        %923 = vrot.lane.b32.xlu0 %v888, 64
        %v924 = vpop.permute.xlu0 %923
        %925 = vrot.lane.b32.xlu0 %v889, 64
        %v926 = vpop.permute.xlu0 %925
        %927 = vrot.lane.b32.xlu0 %v890, 64
        %v928 = vpop.permute.xlu0 %927
        %929 = vrot.lane.b32.xlu0 %v891, 64
        %v930 = vpop.permute.xlu0 %929
        %931 = vrot.lane.b32.xlu0 %v892, 64
        %v932 = vpop.permute.xlu0 %931
        %933 = vrot.lane.b32.xlu0 %v885, 32
        %v934 = vpop.permute.xlu0 %933
        %935 = vrot.lane.b32.xlu0 %v886, 32
        %v936 = vpop.permute.xlu0 %935
        %937 = vrot.lane.b32.xlu0 %v887, 32
        %v938 = vpop.permute.xlu0 %937
        %939 = vrot.lane.b32.xlu0 %v888, 32
        %v940 = vpop.permute.xlu0 %939
        %941 = vrot.lane.b32.xlu0 %v889, 32
        %v942 = vpop.permute.xlu0 %941
        %943 = vrot.lane.b32.xlu0 %v890, 32
        %v944 = vpop.permute.xlu0 %943
        %945 = vrot.lane.b32.xlu0 %v891, 32
        %v946 = vpop.permute.xlu0 %945
        %947 = vrot.lane.b32.xlu0 %v892, 32
        %v948 = vpop.permute.xlu0 %947
        %957 = vrot.lane.b32.xlu0 %v837, 96
        %v958 = vpop.permute.xlu0 %957
        %959 = vrot.lane.b32.xlu0 %v839, 96
        %v960 = vpop.permute.xlu0 %959
        %961 = vrot.lane.b32.xlu0 %v842, 96
        %v962 = vpop.permute.xlu0 %961
        %963 = vrot.lane.b32.xlu0 %v844, 96
        %v964 = vpop.permute.xlu0 %963
        %965 = vrot.lane.b32.xlu0 %v847, 96
        %v966 = vpop.permute.xlu0 %965
        %967 = vrot.lane.b32.xlu0 %v849, 96
        %v968 = vpop.permute.xlu0 %967
        %969 = vrot.lane.b32.xlu0 %v852, 96
        %v970 = vpop.permute.xlu0 %969
        %971 = vrot.lane.b32.xlu0 %v854, 96
        %v972 = vpop.permute.xlu0 %971
        %973 = vrot.lane.b32.xlu0 %v837, 64
        %v974 = vpop.permute.xlu0 %973
        %975 = vrot.lane.b32.xlu0 %v839, 64
        %v976 = vpop.permute.xlu0 %975
        %977 = vrot.lane.b32.xlu0 %v842, 64
        %v978 = vpop.permute.xlu0 %977
        %979 = vrot.lane.b32.xlu0 %v844, 64
        %v980 = vpop.permute.xlu0 %979
        %981 = vrot.lane.b32.xlu0 %v847, 64
        %v982 = vpop.permute.xlu0 %981
        %983 = vrot.lane.b32.xlu0 %v849, 64
        %v984 = vpop.permute.xlu0 %983
        %985 = vrot.lane.b32.xlu0 %v852, 64
        %v986 = vpop.permute.xlu0 %985
        %987 = vrot.lane.b32.xlu0 %v854, 64
        %v988 = vpop.permute.xlu0 %987
        %989 = vrot.lane.b32.xlu0 %v837, 32
        %v990 = vpop.permute.xlu0 %989
        %991 = vrot.lane.b32.xlu0 %v839, 32
        %v992 = vpop.permute.xlu0 %991
        %993 = vrot.lane.b32.xlu0 %v842, 32
        %v994 = vpop.permute.xlu0 %993
        %995 = vrot.lane.b32.xlu0 %v844, 32
        %v996 = vpop.permute.xlu0 %995
        %997 = vrot.lane.b32.xlu0 %v847, 32
        %v998 = vpop.permute.xlu0 %997
        %999 = vrot.lane.b32.xlu0 %v849, 32
        %v1000 = vpop.permute.xlu0 %999
        %1001 = vrot.lane.b32.xlu0 %v852, 32
        %v1002 = vpop.permute.xlu0 %1001
        %1003 = vrot.lane.b32.xlu0 %v854, 32
        %v1004 = vpop.permute.xlu0 %1003
        %1013 = vrot.lane.b32.xlu0 %v866, 96
        %v1014 = vpop.permute.xlu0 %1013
        %1015 = vrot.lane.b32.xlu0 %v868, 96
        %v1016 = vpop.permute.xlu0 %1015
        %1017 = vrot.lane.b32.xlu0 %v871, 96
        %v1018 = vpop.permute.xlu0 %1017
        %1019 = vrot.lane.b32.xlu0 %v873, 96
        %v1020 = vpop.permute.xlu0 %1019
        %1021 = vrot.lane.b32.xlu0 %v876, 96
        %v1022 = vpop.permute.xlu0 %1021
        %1023 = vrot.lane.b32.xlu0 %v878, 96
        %v1024 = vpop.permute.xlu0 %1023
        %1025 = vrot.lane.b32.xlu0 %v881, 96
        %v1026 = vpop.permute.xlu0 %1025
        %1027 = vrot.lane.b32.xlu0 %v883, 96
        %v1028 = vpop.permute.xlu0 %1027
        %1037 = vrot.lane.b32.xlu0 %v866, 64
        %v1038 = vpop.permute.xlu0 %1037
        %1039 = vrot.lane.b32.xlu0 %v868, 64
        %v1040 = vpop.permute.xlu0 %1039
        %1041 = vrot.lane.b32.xlu0 %v871, 64
        %v1042 = vpop.permute.xlu0 %1041
        %1043 = vrot.lane.b32.xlu0 %v873, 64
        %v1044 = vpop.permute.xlu0 %1043
        %1045 = vrot.lane.b32.xlu0 %v876, 64
        %v1046 = vpop.permute.xlu0 %1045
        %1047 = vrot.lane.b32.xlu0 %v878, 64
        %v1048 = vpop.permute.xlu0 %1047
        %1049 = vrot.lane.b32.xlu0 %v881, 64
        %v1050 = vpop.permute.xlu0 %1049
        %1051 = vrot.lane.b32.xlu0 %v883, 64
        %v1052 = vpop.permute.xlu0 %1051
        %1061 = vrot.lane.b32.xlu0 %v866, 32
        %v1062 = vpop.permute.xlu0 %1061
        %1063 = vrot.lane.b32.xlu0 %v868, 32
        %v1064 = vpop.permute.xlu0 %1063
        %1065 = vrot.lane.b32.xlu0 %v871, 32
        %v1066 = vpop.permute.xlu0 %1065
        %1067 = vrot.lane.b32.xlu0 %v873, 32
        %v1068 = vpop.permute.xlu0 %1067
        %1069 = vrot.lane.b32.xlu0 %v876, 32
        %v1070 = vpop.permute.xlu0 %1069
        %1071 = vrot.lane.b32.xlu0 %v878, 32
        %v1072 = vpop.permute.xlu0 %1071
        %1073 = vrot.lane.b32.xlu0 %v881, 32
        %v1074 = vpop.permute.xlu0 %1073
        %1075 = vrot.lane.b32.xlu0 %v883, 32
        %v1076 = vpop.permute.xlu0 %1075
        %v1085 = vlaneseq
        %v1086 = vshrl.u32 %v1085, 7
        %v1087 = vlaneseq
        %v1088 = vand.u32 %v1087, 127
        %vm1089 = vcmp.ge.s32.totalorder %v1086, %v1088
        %v1090 = vsel %vm1089, 0.0, -1e+30
        %vm1091 = vcmask 261120
        %v1092 = vsel %vm1091, %v885, 0
        %v1094 = vsel %vm1091, %v837, 0
        %1096 = vmatpush.xpose.msra.mxu0 0.0
        %1097 = vmatpush.xpose.msra.mxu0 0.0
        %1098 = vmatpush.xpose.msra.mxu0 0.0
        %1099 = vmatpush.xpose.msra.mxu0 0.0
        %1100 = vmatpush.xpose.msra.mxu0 0.0
        %1101 = vmatpush.xpose.msra.mxu0 0.0
        %1102 = vmatpush.xpose.msra.mxu0 0.0
        %1103 = vmatpush.xpose.msra.mxu0 0.0
        %1104 = vmatpush.xpose.msra.mxu0 0.0
        %1105 = vmatpush.xpose.msra.mxu0 0.0
        %1106 = vmatpush.xpose.msra.mxu0 0.0
        %1107 = vmatpush.xpose.msra.mxu0 0.0
        %1108 = vmatpush.xpose.msra.mxu0 0.0
        %1109 = vmatpush.xpose.msra.mxu0 0.0
        %1110 = vmatpush.xpose.msra.mxu0 0.0
        %1111 = vmatpush.xpose.msra.mxu0 %v1094
        %1112 = vmatmul.f32.gmra.mxu0 %v1092
        %v1113 = vpop.f32.mrf.mxu0
        %v1114 = vadd.f32 %v1090, %v1113
        %1115 = vdwg.mxu0
        %v1116 = vsel %vm1091, %v886, 0
        %v1118 = vsel %vm1091, %v839, 0
        %1120 = vmatpush.xpose.msra.mxu0 0.0
        %1121 = vmatpush.xpose.msra.mxu0 0.0
        %1122 = vmatpush.xpose.msra.mxu0 0.0
        %1123 = vmatpush.xpose.msra.mxu0 0.0
        %1124 = vmatpush.xpose.msra.mxu0 0.0
        %1125 = vmatpush.xpose.msra.mxu0 0.0
        %1126 = vmatpush.xpose.msra.mxu0 0.0
        %1127 = vmatpush.xpose.msra.mxu0 0.0
        %1128 = vmatpush.xpose.msra.mxu0 0.0
        %1129 = vmatpush.xpose.msra.mxu0 0.0
        %1130 = vmatpush.xpose.msra.mxu0 0.0
        %1131 = vmatpush.xpose.msra.mxu0 0.0
        %1132 = vmatpush.xpose.msra.mxu0 0.0
        %1133 = vmatpush.xpose.msra.mxu0 0.0
        %1134 = vmatpush.xpose.msra.mxu0 0.0
        %1135 = vmatpush.xpose.msra.mxu0 %v1118
        %1136 = vmatmul.f32.gmra.mxu0 %v1116
        %v1137 = vpop.f32.mrf.mxu0
        %v1138 = vadd.f32 %v1090, %v1137
        %1139 = vdwg.mxu0
        %v1140 = vsel %vm1091, %v887, 0
        %v1142 = vsel %vm1091, %v842, 0
        %1144 = vmatpush.xpose.msra.mxu0 0.0
        %1145 = vmatpush.xpose.msra.mxu0 0.0
        %1146 = vmatpush.xpose.msra.mxu0 0.0
        %1147 = vmatpush.xpose.msra.mxu0 0.0
        %1148 = vmatpush.xpose.msra.mxu0 0.0
        %1149 = vmatpush.xpose.msra.mxu0 0.0
        %1150 = vmatpush.xpose.msra.mxu0 0.0
        %1151 = vmatpush.xpose.msra.mxu0 0.0
        %1152 = vmatpush.xpose.msra.mxu0 0.0
        %1153 = vmatpush.xpose.msra.mxu0 0.0
        %1154 = vmatpush.xpose.msra.mxu0 0.0
        %1155 = vmatpush.xpose.msra.mxu0 0.0
        %1156 = vmatpush.xpose.msra.mxu0 0.0
        %1157 = vmatpush.xpose.msra.mxu0 0.0
        %1158 = vmatpush.xpose.msra.mxu0 0.0
        %1159 = vmatpush.xpose.msra.mxu0 %v1142
        %1160 = vmatmul.f32.gmra.mxu0 %v1140
        %v1161 = vpop.f32.mrf.mxu0
        %v1162 = vadd.f32 %v1090, %v1161
        %1163 = vdwg.mxu0
        %v1164 = vsel %vm1091, %v888, 0
        %v1166 = vsel %vm1091, %v844, 0
        %1168 = vmatpush.xpose.msra.mxu0 0.0
        %1169 = vmatpush.xpose.msra.mxu0 0.0
        %1170 = vmatpush.xpose.msra.mxu0 0.0
        %1171 = vmatpush.xpose.msra.mxu0 0.0
        %1172 = vmatpush.xpose.msra.mxu0 0.0
        %1173 = vmatpush.xpose.msra.mxu0 0.0
        %1174 = vmatpush.xpose.msra.mxu0 0.0
        %1175 = vmatpush.xpose.msra.mxu0 0.0
        %1176 = vmatpush.xpose.msra.mxu0 0.0
        %1177 = vmatpush.xpose.msra.mxu0 0.0
        %1178 = vmatpush.xpose.msra.mxu0 0.0
        %1179 = vmatpush.xpose.msra.mxu0 0.0
        %1180 = vmatpush.xpose.msra.mxu0 0.0
        %1181 = vmatpush.xpose.msra.mxu0 0.0
        %1182 = vmatpush.xpose.msra.mxu0 0.0
        %1183 = vmatpush.xpose.msra.mxu0 %v1166
        %1184 = vmatmul.f32.gmra.mxu0 %v1164
        %v1185 = vpop.f32.mrf.mxu0
        %v1186 = vadd.f32 %v1090, %v1185
        %1187 = vdwg.mxu0
        %v1188 = vsel %vm1091, %v889, 0
        %v1190 = vsel %vm1091, %v847, 0
        %1192 = vmatpush.xpose.msra.mxu0 0.0
        %1193 = vmatpush.xpose.msra.mxu0 0.0
        %1194 = vmatpush.xpose.msra.mxu0 0.0
        %1195 = vmatpush.xpose.msra.mxu0 0.0
        %1196 = vmatpush.xpose.msra.mxu0 0.0
        %1197 = vmatpush.xpose.msra.mxu0 0.0
        %1198 = vmatpush.xpose.msra.mxu0 0.0
        %1199 = vmatpush.xpose.msra.mxu0 0.0
        %1200 = vmatpush.xpose.msra.mxu0 0.0
        %1201 = vmatpush.xpose.msra.mxu0 0.0
        %1202 = vmatpush.xpose.msra.mxu0 0.0
        %1203 = vmatpush.xpose.msra.mxu0 0.0
        %1204 = vmatpush.xpose.msra.mxu0 0.0
        %1205 = vmatpush.xpose.msra.mxu0 0.0
        %1206 = vmatpush.xpose.msra.mxu0 0.0
        %1207 = vmatpush.xpose.msra.mxu0 %v1190
        %1208 = vmatmul.f32.gmra.mxu0 %v1188
        %v1209 = vpop.f32.mrf.mxu0
        %v1210 = vadd.f32 %v1090, %v1209
        %1211 = vdwg.mxu0
        %v1212 = vsel %vm1091, %v890, 0
        %v1214 = vsel %vm1091, %v849, 0
        %1216 = vmatpush.xpose.msra.mxu0 0.0
        %1217 = vmatpush.xpose.msra.mxu0 0.0
        %1218 = vmatpush.xpose.msra.mxu0 0.0
        %1219 = vmatpush.xpose.msra.mxu0 0.0
        %1220 = vmatpush.xpose.msra.mxu0 0.0
        %1221 = vmatpush.xpose.msra.mxu0 0.0
        %1222 = vmatpush.xpose.msra.mxu0 0.0
        %1223 = vmatpush.xpose.msra.mxu0 0.0
        %1224 = vmatpush.xpose.msra.mxu0 0.0
        %1225 = vmatpush.xpose.msra.mxu0 0.0
        %1226 = vmatpush.xpose.msra.mxu0 0.0
        %1227 = vmatpush.xpose.msra.mxu0 0.0
        %1228 = vmatpush.xpose.msra.mxu0 0.0
        %1229 = vmatpush.xpose.msra.mxu0 0.0
        %1230 = vmatpush.xpose.msra.mxu0 0.0
        %1231 = vmatpush.xpose.msra.mxu0 %v1214
        %1232 = vmatmul.f32.gmra.mxu0 %v1212
        %v1233 = vpop.f32.mrf.mxu0
        %v1234 = vadd.f32 %v1090, %v1233
        %1235 = vdwg.mxu0
        %v1236 = vsel %vm1091, %v891, 0
        %v1238 = vsel %vm1091, %v852, 0
        %1240 = vmatpush.xpose.msra.mxu0 0.0
        %1241 = vmatpush.xpose.msra.mxu0 0.0
        %1242 = vmatpush.xpose.msra.mxu0 0.0
        %1243 = vmatpush.xpose.msra.mxu0 0.0
        %1244 = vmatpush.xpose.msra.mxu0 0.0
        %1245 = vmatpush.xpose.msra.mxu0 0.0
        %1246 = vmatpush.xpose.msra.mxu0 0.0
        %1247 = vmatpush.xpose.msra.mxu0 0.0
        %1248 = vmatpush.xpose.msra.mxu0 0.0
        %1249 = vmatpush.xpose.msra.mxu0 0.0
        %1250 = vmatpush.xpose.msra.mxu0 0.0
        %1251 = vmatpush.xpose.msra.mxu0 0.0
        %1252 = vmatpush.xpose.msra.mxu0 0.0
        %1253 = vmatpush.xpose.msra.mxu0 0.0
        %1254 = vmatpush.xpose.msra.mxu0 0.0
        %1255 = vmatpush.xpose.msra.mxu0 %v1238
        %1256 = vmatmul.f32.gmra.mxu0 %v1236
        %v1257 = vpop.f32.mrf.mxu0
        %v1258 = vadd.f32 %v1090, %v1257
        %1259 = vdwg.mxu0
        %v1260 = vsel %vm1091, %v892, 0
        %v1262 = vsel %vm1091, %v854, 0
        %1264 = vmatpush.xpose.msra.mxu0 0.0
        %1265 = vmatpush.xpose.msra.mxu0 0.0
        %1266 = vmatpush.xpose.msra.mxu0 0.0
        %1267 = vmatpush.xpose.msra.mxu0 0.0
        %1268 = vmatpush.xpose.msra.mxu0 0.0
        %1269 = vmatpush.xpose.msra.mxu0 0.0
        %1270 = vmatpush.xpose.msra.mxu0 0.0
        %1271 = vmatpush.xpose.msra.mxu0 0.0
        %1272 = vmatpush.xpose.msra.mxu0 0.0
        %1273 = vmatpush.xpose.msra.mxu0 0.0
        %1274 = vmatpush.xpose.msra.mxu0 0.0
        %1275 = vmatpush.xpose.msra.mxu0 0.0
        %1276 = vmatpush.xpose.msra.mxu0 0.0
        %1277 = vmatpush.xpose.msra.mxu0 0.0
        %1278 = vmatpush.xpose.msra.mxu0 0.0
        %1279 = vmatpush.xpose.msra.mxu0 %v1262
        %1280 = vmatmul.f32.gmra.mxu0 %v1260
        %v1281 = vpop.f32.mrf.mxu0
        %v1282 = vadd.f32 %v1090, %v1281
        %1283 = vdwg.mxu0
        %v1284 = vsel %vm1091, %v902, 0
        %v1286 = vsel %vm1091, %v958, 0
        %1288 = vmatpush.xpose.msra.mxu0 0.0
        %1289 = vmatpush.xpose.msra.mxu0 0.0
        %1290 = vmatpush.xpose.msra.mxu0 0.0
        %1291 = vmatpush.xpose.msra.mxu0 0.0
        %1292 = vmatpush.xpose.msra.mxu0 0.0
        %1293 = vmatpush.xpose.msra.mxu0 0.0
        %1294 = vmatpush.xpose.msra.mxu0 0.0
        %1295 = vmatpush.xpose.msra.mxu0 0.0
        %1296 = vmatpush.xpose.msra.mxu0 0.0
        %1297 = vmatpush.xpose.msra.mxu0 0.0
        %1298 = vmatpush.xpose.msra.mxu0 0.0
        %1299 = vmatpush.xpose.msra.mxu0 0.0
        %1300 = vmatpush.xpose.msra.mxu0 0.0
        %1301 = vmatpush.xpose.msra.mxu0 0.0
        %1302 = vmatpush.xpose.msra.mxu0 0.0
        %1303 = vmatpush.xpose.msra.mxu0 %v1286
        %1304 = vmatmul.f32.gmra.mxu0 %v1284
        %v1305 = vpop.f32.mrf.mxu0
        %v1306 = vadd.f32 %v1090, %v1305
        %1307 = vdwg.mxu0
        %v1308 = vsel %vm1091, %v904, 0
        %v1310 = vsel %vm1091, %v960, 0
        %1312 = vmatpush.xpose.msra.mxu0 0.0
        %1313 = vmatpush.xpose.msra.mxu0 0.0
        %1314 = vmatpush.xpose.msra.mxu0 0.0
        %1315 = vmatpush.xpose.msra.mxu0 0.0
        %1316 = vmatpush.xpose.msra.mxu0 0.0
        %1317 = vmatpush.xpose.msra.mxu0 0.0
        %1318 = vmatpush.xpose.msra.mxu0 0.0
        %1319 = vmatpush.xpose.msra.mxu0 0.0
        %1320 = vmatpush.xpose.msra.mxu0 0.0
        %1321 = vmatpush.xpose.msra.mxu0 0.0
        %1322 = vmatpush.xpose.msra.mxu0 0.0
        %1323 = vmatpush.xpose.msra.mxu0 0.0
        %1324 = vmatpush.xpose.msra.mxu0 0.0
        %1325 = vmatpush.xpose.msra.mxu0 0.0
        %1326 = vmatpush.xpose.msra.mxu0 0.0
        %1327 = vmatpush.xpose.msra.mxu0 %v1310
        %1328 = vmatmul.f32.gmra.mxu0 %v1308
        %v1329 = vpop.f32.mrf.mxu0
        %v1330 = vadd.f32 %v1090, %v1329
        %1331 = vdwg.mxu0
        %v1332 = vsel %vm1091, %v906, 0
        %v1334 = vsel %vm1091, %v962, 0
        %1336 = vmatpush.xpose.msra.mxu0 0.0
        %1337 = vmatpush.xpose.msra.mxu0 0.0
        %1338 = vmatpush.xpose.msra.mxu0 0.0
        %1339 = vmatpush.xpose.msra.mxu0 0.0
        %1340 = vmatpush.xpose.msra.mxu0 0.0
        %1341 = vmatpush.xpose.msra.mxu0 0.0
        %1342 = vmatpush.xpose.msra.mxu0 0.0
        %1343 = vmatpush.xpose.msra.mxu0 0.0
        %1344 = vmatpush.xpose.msra.mxu0 0.0
        %1345 = vmatpush.xpose.msra.mxu0 0.0
        %1346 = vmatpush.xpose.msra.mxu0 0.0
        %1347 = vmatpush.xpose.msra.mxu0 0.0
        %1348 = vmatpush.xpose.msra.mxu0 0.0
        %1349 = vmatpush.xpose.msra.mxu0 0.0
        %1350 = vmatpush.xpose.msra.mxu0 0.0
        %1351 = vmatpush.xpose.msra.mxu0 %v1334
        %1352 = vmatmul.f32.gmra.mxu0 %v1332
        %v1353 = vpop.f32.mrf.mxu0
        %v1354 = vadd.f32 %v1090, %v1353
        %1355 = vdwg.mxu0
        %v1356 = vsel %vm1091, %v908, 0
        %v1358 = vsel %vm1091, %v964, 0
        %1360 = vmatpush.xpose.msra.mxu0 0.0
        %1361 = vmatpush.xpose.msra.mxu0 0.0
        %1362 = vmatpush.xpose.msra.mxu0 0.0
        %1363 = vmatpush.xpose.msra.mxu0 0.0
        %1364 = vmatpush.xpose.msra.mxu0 0.0
        %1365 = vmatpush.xpose.msra.mxu0 0.0
        %1366 = vmatpush.xpose.msra.mxu0 0.0
        %1367 = vmatpush.xpose.msra.mxu0 0.0
        %1368 = vmatpush.xpose.msra.mxu0 0.0
        %1369 = vmatpush.xpose.msra.mxu0 0.0
        %1370 = vmatpush.xpose.msra.mxu0 0.0
        %1371 = vmatpush.xpose.msra.mxu0 0.0
        %1372 = vmatpush.xpose.msra.mxu0 0.0
        %1373 = vmatpush.xpose.msra.mxu0 0.0
        %1374 = vmatpush.xpose.msra.mxu0 0.0
        %1375 = vmatpush.xpose.msra.mxu0 %v1358
        %1376 = vmatmul.f32.gmra.mxu0 %v1356
        %v1377 = vpop.f32.mrf.mxu0
        %v1378 = vadd.f32 %v1090, %v1377
        %1379 = vdwg.mxu0
        %v1380 = vsel %vm1091, %v910, 0
        %v1382 = vsel %vm1091, %v966, 0
        %1384 = vmatpush.xpose.msra.mxu0 0.0
        %1385 = vmatpush.xpose.msra.mxu0 0.0
        %1386 = vmatpush.xpose.msra.mxu0 0.0
        %1387 = vmatpush.xpose.msra.mxu0 0.0
        %1388 = vmatpush.xpose.msra.mxu0 0.0
        %1389 = vmatpush.xpose.msra.mxu0 0.0
        %1390 = vmatpush.xpose.msra.mxu0 0.0
        %1391 = vmatpush.xpose.msra.mxu0 0.0
        %1392 = vmatpush.xpose.msra.mxu0 0.0
        %1393 = vmatpush.xpose.msra.mxu0 0.0
        %1394 = vmatpush.xpose.msra.mxu0 0.0
        %1395 = vmatpush.xpose.msra.mxu0 0.0
        %1396 = vmatpush.xpose.msra.mxu0 0.0
        %1397 = vmatpush.xpose.msra.mxu0 0.0
        %1398 = vmatpush.xpose.msra.mxu0 0.0
        %1399 = vmatpush.xpose.msra.mxu0 %v1382
        %1400 = vmatmul.f32.gmra.mxu0 %v1380
        %v1401 = vpop.f32.mrf.mxu0
        %v1402 = vadd.f32 %v1090, %v1401
        %1403 = vdwg.mxu0
        %v1404 = vsel %vm1091, %v912, 0
        %v1406 = vsel %vm1091, %v968, 0
        %1408 = vmatpush.xpose.msra.mxu0 0.0
        %1409 = vmatpush.xpose.msra.mxu0 0.0
        %1410 = vmatpush.xpose.msra.mxu0 0.0
        %1411 = vmatpush.xpose.msra.mxu0 0.0
        %1412 = vmatpush.xpose.msra.mxu0 0.0
        %1413 = vmatpush.xpose.msra.mxu0 0.0
        %1414 = vmatpush.xpose.msra.mxu0 0.0
        %1415 = vmatpush.xpose.msra.mxu0 0.0
        %1416 = vmatpush.xpose.msra.mxu0 0.0
        %1417 = vmatpush.xpose.msra.mxu0 0.0
        %1418 = vmatpush.xpose.msra.mxu0 0.0
        %1419 = vmatpush.xpose.msra.mxu0 0.0
        %1420 = vmatpush.xpose.msra.mxu0 0.0
        %1421 = vmatpush.xpose.msra.mxu0 0.0
        %1422 = vmatpush.xpose.msra.mxu0 0.0
        %1423 = vmatpush.xpose.msra.mxu0 %v1406
        %1424 = vmatmul.f32.gmra.mxu0 %v1404
        %v1425 = vpop.f32.mrf.mxu0
        %v1426 = vadd.f32 %v1090, %v1425
        %1427 = vdwg.mxu0
        %v1428 = vsel %vm1091, %v914, 0
        %v1430 = vsel %vm1091, %v970, 0
        %1432 = vmatpush.xpose.msra.mxu0 0.0
        %1433 = vmatpush.xpose.msra.mxu0 0.0
        %1434 = vmatpush.xpose.msra.mxu0 0.0
        %1435 = vmatpush.xpose.msra.mxu0 0.0
        %1436 = vmatpush.xpose.msra.mxu0 0.0
        %1437 = vmatpush.xpose.msra.mxu0 0.0
        %1438 = vmatpush.xpose.msra.mxu0 0.0
        %1439 = vmatpush.xpose.msra.mxu0 0.0
        %1440 = vmatpush.xpose.msra.mxu0 0.0
        %1441 = vmatpush.xpose.msra.mxu0 0.0
        %1442 = vmatpush.xpose.msra.mxu0 0.0
        %1443 = vmatpush.xpose.msra.mxu0 0.0
        %1444 = vmatpush.xpose.msra.mxu0 0.0
        %1445 = vmatpush.xpose.msra.mxu0 0.0
        %1446 = vmatpush.xpose.msra.mxu0 0.0
        %1447 = vmatpush.xpose.msra.mxu0 %v1430
        %1448 = vmatmul.f32.gmra.mxu0 %v1428
        %v1449 = vpop.f32.mrf.mxu0
        %v1450 = vadd.f32 %v1090, %v1449
        %1451 = vdwg.mxu0
        %v1452 = vsel %vm1091, %v916, 0
        %v1454 = vsel %vm1091, %v972, 0
        %1456 = vmatpush.xpose.msra.mxu0 0.0
        %1457 = vmatpush.xpose.msra.mxu0 0.0
        %1458 = vmatpush.xpose.msra.mxu0 0.0
        %1459 = vmatpush.xpose.msra.mxu0 0.0
        %1460 = vmatpush.xpose.msra.mxu0 0.0
        %1461 = vmatpush.xpose.msra.mxu0 0.0
        %1462 = vmatpush.xpose.msra.mxu0 0.0
        %1463 = vmatpush.xpose.msra.mxu0 0.0
        %1464 = vmatpush.xpose.msra.mxu0 0.0
        %1465 = vmatpush.xpose.msra.mxu0 0.0
        %1466 = vmatpush.xpose.msra.mxu0 0.0
        %1467 = vmatpush.xpose.msra.mxu0 0.0
        %1468 = vmatpush.xpose.msra.mxu0 0.0
        %1469 = vmatpush.xpose.msra.mxu0 0.0
        %1470 = vmatpush.xpose.msra.mxu0 0.0
        %1471 = vmatpush.xpose.msra.mxu0 %v1454
        %1472 = vmatmul.f32.gmra.mxu0 %v1452
        %v1473 = vpop.f32.mrf.mxu0
        %v1474 = vadd.f32 %v1090, %v1473
        %1475 = vdwg.mxu0
        %v1476 = vsel %vm1091, %v918, 0
        %v1478 = vsel %vm1091, %v974, 0
        %1480 = vmatpush.xpose.msra.mxu0 0.0
        %1481 = vmatpush.xpose.msra.mxu0 0.0
        %1482 = vmatpush.xpose.msra.mxu0 0.0
        %1483 = vmatpush.xpose.msra.mxu0 0.0
        %1484 = vmatpush.xpose.msra.mxu0 0.0
        %1485 = vmatpush.xpose.msra.mxu0 0.0
        %1486 = vmatpush.xpose.msra.mxu0 0.0
        %1487 = vmatpush.xpose.msra.mxu0 0.0
        %1488 = vmatpush.xpose.msra.mxu0 0.0
        %1489 = vmatpush.xpose.msra.mxu0 0.0
        %1490 = vmatpush.xpose.msra.mxu0 0.0
        %1491 = vmatpush.xpose.msra.mxu0 0.0
        %1492 = vmatpush.xpose.msra.mxu0 0.0
        %1493 = vmatpush.xpose.msra.mxu0 0.0
        %1494 = vmatpush.xpose.msra.mxu0 0.0
        %1495 = vmatpush.xpose.msra.mxu0 %v1478
        %1496 = vmatmul.f32.gmra.mxu0 %v1476
        %v1497 = vpop.f32.mrf.mxu0
        %v1498 = vadd.f32 %v1090, %v1497
        %1499 = vdwg.mxu0
        %v1500 = vsel %vm1091, %v920, 0
        %v1502 = vsel %vm1091, %v976, 0
        %1504 = vmatpush.xpose.msra.mxu0 0.0
        %1505 = vmatpush.xpose.msra.mxu0 0.0
        %1506 = vmatpush.xpose.msra.mxu0 0.0
        %1507 = vmatpush.xpose.msra.mxu0 0.0
        %1508 = vmatpush.xpose.msra.mxu0 0.0
        %1509 = vmatpush.xpose.msra.mxu0 0.0
        %1510 = vmatpush.xpose.msra.mxu0 0.0
        %1511 = vmatpush.xpose.msra.mxu0 0.0
        %1512 = vmatpush.xpose.msra.mxu0 0.0
        %1513 = vmatpush.xpose.msra.mxu0 0.0
        %1514 = vmatpush.xpose.msra.mxu0 0.0
        %1515 = vmatpush.xpose.msra.mxu0 0.0
        %1516 = vmatpush.xpose.msra.mxu0 0.0
        %1517 = vmatpush.xpose.msra.mxu0 0.0
        %1518 = vmatpush.xpose.msra.mxu0 0.0
        %1519 = vmatpush.xpose.msra.mxu0 %v1502
        %1520 = vmatmul.f32.gmra.mxu0 %v1500
        %v1521 = vpop.f32.mrf.mxu0
        %v1522 = vadd.f32 %v1090, %v1521
        %1523 = vdwg.mxu0
        %v1524 = vsel %vm1091, %v922, 0
        %v1526 = vsel %vm1091, %v978, 0
        %1528 = vmatpush.xpose.msra.mxu0 0.0
        %1529 = vmatpush.xpose.msra.mxu0 0.0
        %1530 = vmatpush.xpose.msra.mxu0 0.0
        %1531 = vmatpush.xpose.msra.mxu0 0.0
        %1532 = vmatpush.xpose.msra.mxu0 0.0
        %1533 = vmatpush.xpose.msra.mxu0 0.0
        %1534 = vmatpush.xpose.msra.mxu0 0.0
        %1535 = vmatpush.xpose.msra.mxu0 0.0
        %1536 = vmatpush.xpose.msra.mxu0 0.0
        %1537 = vmatpush.xpose.msra.mxu0 0.0
        %1538 = vmatpush.xpose.msra.mxu0 0.0
        %1539 = vmatpush.xpose.msra.mxu0 0.0
        %1540 = vmatpush.xpose.msra.mxu0 0.0
        %1541 = vmatpush.xpose.msra.mxu0 0.0
        %1542 = vmatpush.xpose.msra.mxu0 0.0
        %1543 = vmatpush.xpose.msra.mxu0 %v1526
        %1544 = vmatmul.f32.gmra.mxu0 %v1524
        %v1545 = vpop.f32.mrf.mxu0
        %v1546 = vadd.f32 %v1090, %v1545
        %1547 = vdwg.mxu0
        %v1548 = vsel %vm1091, %v924, 0
        %v1550 = vsel %vm1091, %v980, 0
        %1552 = vmatpush.xpose.msra.mxu0 0.0
        %1553 = vmatpush.xpose.msra.mxu0 0.0
        %1554 = vmatpush.xpose.msra.mxu0 0.0
        %1555 = vmatpush.xpose.msra.mxu0 0.0
        %1556 = vmatpush.xpose.msra.mxu0 0.0
        %1557 = vmatpush.xpose.msra.mxu0 0.0
        %1558 = vmatpush.xpose.msra.mxu0 0.0
        %1559 = vmatpush.xpose.msra.mxu0 0.0
        %1560 = vmatpush.xpose.msra.mxu0 0.0
        %1561 = vmatpush.xpose.msra.mxu0 0.0
        %1562 = vmatpush.xpose.msra.mxu0 0.0
        %1563 = vmatpush.xpose.msra.mxu0 0.0
        %1564 = vmatpush.xpose.msra.mxu0 0.0
        %1565 = vmatpush.xpose.msra.mxu0 0.0
        %1566 = vmatpush.xpose.msra.mxu0 0.0
        %1567 = vmatpush.xpose.msra.mxu0 %v1550
        %1568 = vmatmul.f32.gmra.mxu0 %v1548
        %v1569 = vpop.f32.mrf.mxu0
        %v1570 = vadd.f32 %v1090, %v1569
        %1571 = vdwg.mxu0
        %v1572 = vsel %vm1091, %v926, 0
        %v1574 = vsel %vm1091, %v982, 0
        %1576 = vmatpush.xpose.msra.mxu0 0.0
        %1577 = vmatpush.xpose.msra.mxu0 0.0
        %1578 = vmatpush.xpose.msra.mxu0 0.0
        %1579 = vmatpush.xpose.msra.mxu0 0.0
        %1580 = vmatpush.xpose.msra.mxu0 0.0
        %1581 = vmatpush.xpose.msra.mxu0 0.0
        %1582 = vmatpush.xpose.msra.mxu0 0.0
        %1583 = vmatpush.xpose.msra.mxu0 0.0
        %1584 = vmatpush.xpose.msra.mxu0 0.0
        %1585 = vmatpush.xpose.msra.mxu0 0.0
        %1586 = vmatpush.xpose.msra.mxu0 0.0
        %1587 = vmatpush.xpose.msra.mxu0 0.0
        %1588 = vmatpush.xpose.msra.mxu0 0.0
        %1589 = vmatpush.xpose.msra.mxu0 0.0
        %1590 = vmatpush.xpose.msra.mxu0 0.0
        %1591 = vmatpush.xpose.msra.mxu0 %v1574
        %1592 = vmatmul.f32.gmra.mxu0 %v1572
        %v1593 = vpop.f32.mrf.mxu0
        %v1594 = vadd.f32 %v1090, %v1593
        %1595 = vdwg.mxu0
        %v1596 = vsel %vm1091, %v928, 0
        %v1598 = vsel %vm1091, %v984, 0
        %1600 = vmatpush.xpose.msra.mxu0 0.0
        %1601 = vmatpush.xpose.msra.mxu0 0.0
        %1602 = vmatpush.xpose.msra.mxu0 0.0
        %1603 = vmatpush.xpose.msra.mxu0 0.0
        %1604 = vmatpush.xpose.msra.mxu0 0.0
        %1605 = vmatpush.xpose.msra.mxu0 0.0
        %1606 = vmatpush.xpose.msra.mxu0 0.0
        %1607 = vmatpush.xpose.msra.mxu0 0.0
        %1608 = vmatpush.xpose.msra.mxu0 0.0
        %1609 = vmatpush.xpose.msra.mxu0 0.0
        %1610 = vmatpush.xpose.msra.mxu0 0.0
        %1611 = vmatpush.xpose.msra.mxu0 0.0
        %1612 = vmatpush.xpose.msra.mxu0 0.0
        %1613 = vmatpush.xpose.msra.mxu0 0.0
        %1614 = vmatpush.xpose.msra.mxu0 0.0
        %1615 = vmatpush.xpose.msra.mxu0 %v1598
        %1616 = vmatmul.f32.gmra.mxu0 %v1596
        %v1617 = vpop.f32.mrf.mxu0
        %v1618 = vadd.f32 %v1090, %v1617
        %1619 = vdwg.mxu0
        %v1620 = vsel %vm1091, %v930, 0
        %v1622 = vsel %vm1091, %v986, 0
        %1624 = vmatpush.xpose.msra.mxu0 0.0
        %1625 = vmatpush.xpose.msra.mxu0 0.0
        %1626 = vmatpush.xpose.msra.mxu0 0.0
        %1627 = vmatpush.xpose.msra.mxu0 0.0
        %1628 = vmatpush.xpose.msra.mxu0 0.0
        %1629 = vmatpush.xpose.msra.mxu0 0.0
        %1630 = vmatpush.xpose.msra.mxu0 0.0
        %1631 = vmatpush.xpose.msra.mxu0 0.0
        %1632 = vmatpush.xpose.msra.mxu0 0.0
        %1633 = vmatpush.xpose.msra.mxu0 0.0
        %1634 = vmatpush.xpose.msra.mxu0 0.0
        %1635 = vmatpush.xpose.msra.mxu0 0.0
        %1636 = vmatpush.xpose.msra.mxu0 0.0
        %1637 = vmatpush.xpose.msra.mxu0 0.0
        %1638 = vmatpush.xpose.msra.mxu0 0.0
        %1639 = vmatpush.xpose.msra.mxu0 %v1622
        %1640 = vmatmul.f32.gmra.mxu0 %v1620
        %v1641 = vpop.f32.mrf.mxu0
        %v1642 = vadd.f32 %v1090, %v1641
        %1643 = vdwg.mxu0
        %v1644 = vsel %vm1091, %v932, 0
        %v1646 = vsel %vm1091, %v988, 0
        %1648 = vmatpush.xpose.msra.mxu0 0.0
        %1649 = vmatpush.xpose.msra.mxu0 0.0
        %1650 = vmatpush.xpose.msra.mxu0 0.0
        %1651 = vmatpush.xpose.msra.mxu0 0.0
        %1652 = vmatpush.xpose.msra.mxu0 0.0
        %1653 = vmatpush.xpose.msra.mxu0 0.0
        %1654 = vmatpush.xpose.msra.mxu0 0.0
        %1655 = vmatpush.xpose.msra.mxu0 0.0
        %1656 = vmatpush.xpose.msra.mxu0 0.0
        %1657 = vmatpush.xpose.msra.mxu0 0.0
        %1658 = vmatpush.xpose.msra.mxu0 0.0
        %1659 = vmatpush.xpose.msra.mxu0 0.0
        %1660 = vmatpush.xpose.msra.mxu0 0.0
        %1661 = vmatpush.xpose.msra.mxu0 0.0
        %1662 = vmatpush.xpose.msra.mxu0 0.0
        %1663 = vmatpush.xpose.msra.mxu0 %v1646
        %1664 = vmatmul.f32.gmra.mxu0 %v1644
        %v1665 = vpop.f32.mrf.mxu0
        %v1666 = vadd.f32 %v1090, %v1665
        %1667 = vdwg.mxu0
        %v1668 = vsel %vm1091, %v934, 0
        %v1670 = vsel %vm1091, %v990, 0
        %1672 = vmatpush.xpose.msra.mxu0 0.0
        %1673 = vmatpush.xpose.msra.mxu0 0.0
        %1674 = vmatpush.xpose.msra.mxu0 0.0
        %1675 = vmatpush.xpose.msra.mxu0 0.0
        %1676 = vmatpush.xpose.msra.mxu0 0.0
        %1677 = vmatpush.xpose.msra.mxu0 0.0
        %1678 = vmatpush.xpose.msra.mxu0 0.0
        %1679 = vmatpush.xpose.msra.mxu0 0.0
        %1680 = vmatpush.xpose.msra.mxu0 0.0
        %1681 = vmatpush.xpose.msra.mxu0 0.0
        %1682 = vmatpush.xpose.msra.mxu0 0.0
        %1683 = vmatpush.xpose.msra.mxu0 0.0
        %1684 = vmatpush.xpose.msra.mxu0 0.0
        %1685 = vmatpush.xpose.msra.mxu0 0.0
        %1686 = vmatpush.xpose.msra.mxu0 0.0
        %1687 = vmatpush.xpose.msra.mxu0 %v1670
        %1688 = vmatmul.f32.gmra.mxu0 %v1668
        %v1689 = vpop.f32.mrf.mxu0
        %v1690 = vadd.f32 %v1090, %v1689
        %1691 = vdwg.mxu0
        %v1692 = vsel %vm1091, %v936, 0
        %v1694 = vsel %vm1091, %v992, 0
        %1696 = vmatpush.xpose.msra.mxu0 0.0
        %1697 = vmatpush.xpose.msra.mxu0 0.0
        %1698 = vmatpush.xpose.msra.mxu0 0.0
        %1699 = vmatpush.xpose.msra.mxu0 0.0
        %1700 = vmatpush.xpose.msra.mxu0 0.0
        %1701 = vmatpush.xpose.msra.mxu0 0.0
        %1702 = vmatpush.xpose.msra.mxu0 0.0
        %1703 = vmatpush.xpose.msra.mxu0 0.0
        %1704 = vmatpush.xpose.msra.mxu0 0.0
        %1705 = vmatpush.xpose.msra.mxu0 0.0
        %1706 = vmatpush.xpose.msra.mxu0 0.0
        %1707 = vmatpush.xpose.msra.mxu0 0.0
        %1708 = vmatpush.xpose.msra.mxu0 0.0
        %1709 = vmatpush.xpose.msra.mxu0 0.0
        %1710 = vmatpush.xpose.msra.mxu0 0.0
        %1711 = vmatpush.xpose.msra.mxu0 %v1694
        %1712 = vmatmul.f32.gmra.mxu0 %v1692
        %v1713 = vpop.f32.mrf.mxu0
        %v1714 = vadd.f32 %v1090, %v1713
        %1715 = vdwg.mxu0
        %v1716 = vsel %vm1091, %v938, 0
        %v1718 = vsel %vm1091, %v994, 0
        %1720 = vmatpush.xpose.msra.mxu0 0.0
        %1721 = vmatpush.xpose.msra.mxu0 0.0
        %1722 = vmatpush.xpose.msra.mxu0 0.0
        %1723 = vmatpush.xpose.msra.mxu0 0.0
        %1724 = vmatpush.xpose.msra.mxu0 0.0
        %1725 = vmatpush.xpose.msra.mxu0 0.0
        %1726 = vmatpush.xpose.msra.mxu0 0.0
        %1727 = vmatpush.xpose.msra.mxu0 0.0
        %1728 = vmatpush.xpose.msra.mxu0 0.0
        %1729 = vmatpush.xpose.msra.mxu0 0.0
        %1730 = vmatpush.xpose.msra.mxu0 0.0
        %1731 = vmatpush.xpose.msra.mxu0 0.0
        %1732 = vmatpush.xpose.msra.mxu0 0.0
        %1733 = vmatpush.xpose.msra.mxu0 0.0
        %1734 = vmatpush.xpose.msra.mxu0 0.0
        %1735 = vmatpush.xpose.msra.mxu0 %v1718
        %1736 = vmatmul.f32.gmra.mxu0 %v1716
        %v1737 = vpop.f32.mrf.mxu0
        %v1738 = vadd.f32 %v1090, %v1737
        %1739 = vdwg.mxu0
        %v1740 = vsel %vm1091, %v940, 0
        %v1742 = vsel %vm1091, %v996, 0
        %1744 = vmatpush.xpose.msra.mxu0 0.0
        %1745 = vmatpush.xpose.msra.mxu0 0.0
        %1746 = vmatpush.xpose.msra.mxu0 0.0
        %1747 = vmatpush.xpose.msra.mxu0 0.0
        %1748 = vmatpush.xpose.msra.mxu0 0.0
        %1749 = vmatpush.xpose.msra.mxu0 0.0
        %1750 = vmatpush.xpose.msra.mxu0 0.0
        %1751 = vmatpush.xpose.msra.mxu0 0.0
        %1752 = vmatpush.xpose.msra.mxu0 0.0
        %1753 = vmatpush.xpose.msra.mxu0 0.0
        %1754 = vmatpush.xpose.msra.mxu0 0.0
        %1755 = vmatpush.xpose.msra.mxu0 0.0
        %1756 = vmatpush.xpose.msra.mxu0 0.0
        %1757 = vmatpush.xpose.msra.mxu0 0.0
        %1758 = vmatpush.xpose.msra.mxu0 0.0
        %1759 = vmatpush.xpose.msra.mxu0 %v1742
        %1760 = vmatmul.f32.gmra.mxu0 %v1740
        %v1761 = vpop.f32.mrf.mxu0
        %v1762 = vadd.f32 %v1090, %v1761
        %1763 = vdwg.mxu0
        %v1764 = vsel %vm1091, %v942, 0
        %v1766 = vsel %vm1091, %v998, 0
        %1768 = vmatpush.xpose.msra.mxu0 0.0
        %1769 = vmatpush.xpose.msra.mxu0 0.0
        %1770 = vmatpush.xpose.msra.mxu0 0.0
        %1771 = vmatpush.xpose.msra.mxu0 0.0
        %1772 = vmatpush.xpose.msra.mxu0 0.0
        %1773 = vmatpush.xpose.msra.mxu0 0.0
        %1774 = vmatpush.xpose.msra.mxu0 0.0
        %1775 = vmatpush.xpose.msra.mxu0 0.0
        %1776 = vmatpush.xpose.msra.mxu0 0.0
        %1777 = vmatpush.xpose.msra.mxu0 0.0
        %1778 = vmatpush.xpose.msra.mxu0 0.0
        %1779 = vmatpush.xpose.msra.mxu0 0.0
        %1780 = vmatpush.xpose.msra.mxu0 0.0
        %1781 = vmatpush.xpose.msra.mxu0 0.0
        %1782 = vmatpush.xpose.msra.mxu0 0.0
        %1783 = vmatpush.xpose.msra.mxu0 %v1766
        %1784 = vmatmul.f32.gmra.mxu0 %v1764
        %v1785 = vpop.f32.mrf.mxu0
        %v1786 = vadd.f32 %v1090, %v1785
        %1787 = vdwg.mxu0
        %v1788 = vsel %vm1091, %v944, 0
        %v1790 = vsel %vm1091, %v1000, 0
        %1792 = vmatpush.xpose.msra.mxu0 0.0
        %1793 = vmatpush.xpose.msra.mxu0 0.0
        %1794 = vmatpush.xpose.msra.mxu0 0.0
        %1795 = vmatpush.xpose.msra.mxu0 0.0
        %1796 = vmatpush.xpose.msra.mxu0 0.0
        %1797 = vmatpush.xpose.msra.mxu0 0.0
        %1798 = vmatpush.xpose.msra.mxu0 0.0
        %1799 = vmatpush.xpose.msra.mxu0 0.0
        %1800 = vmatpush.xpose.msra.mxu0 0.0
        %1801 = vmatpush.xpose.msra.mxu0 0.0
        %1802 = vmatpush.xpose.msra.mxu0 0.0
        %1803 = vmatpush.xpose.msra.mxu0 0.0
        %1804 = vmatpush.xpose.msra.mxu0 0.0
        %1805 = vmatpush.xpose.msra.mxu0 0.0
        %1806 = vmatpush.xpose.msra.mxu0 0.0
        %1807 = vmatpush.xpose.msra.mxu0 %v1790
        %1808 = vmatmul.f32.gmra.mxu0 %v1788
        %v1809 = vpop.f32.mrf.mxu0
        %v1810 = vadd.f32 %v1090, %v1809
        %1811 = vdwg.mxu0
        %v1812 = vsel %vm1091, %v946, 0
        %v1814 = vsel %vm1091, %v1002, 0
        %1816 = vmatpush.xpose.msra.mxu0 0.0
        %1817 = vmatpush.xpose.msra.mxu0 0.0
        %1818 = vmatpush.xpose.msra.mxu0 0.0
        %1819 = vmatpush.xpose.msra.mxu0 0.0
        %1820 = vmatpush.xpose.msra.mxu0 0.0
        %1821 = vmatpush.xpose.msra.mxu0 0.0
        %1822 = vmatpush.xpose.msra.mxu0 0.0
        %1823 = vmatpush.xpose.msra.mxu0 0.0
        %1824 = vmatpush.xpose.msra.mxu0 0.0
        %1825 = vmatpush.xpose.msra.mxu0 0.0
        %1826 = vmatpush.xpose.msra.mxu0 0.0
        %1827 = vmatpush.xpose.msra.mxu0 0.0
        %1828 = vmatpush.xpose.msra.mxu0 0.0
        %1829 = vmatpush.xpose.msra.mxu0 0.0
        %1830 = vmatpush.xpose.msra.mxu0 0.0
        %1831 = vmatpush.xpose.msra.mxu0 %v1814
        %1832 = vmatmul.f32.gmra.mxu0 %v1812
        %v1833 = vpop.f32.mrf.mxu0
        %v1834 = vadd.f32 %v1090, %v1833
        %1835 = vdwg.mxu0
        %v1836 = vsel %vm1091, %v948, 0
        %v1838 = vsel %vm1091, %v1004, 0
        %1840 = vmatpush.xpose.msra.mxu0 0.0
        %1841 = vmatpush.xpose.msra.mxu0 0.0
        %1842 = vmatpush.xpose.msra.mxu0 0.0
        %1843 = vmatpush.xpose.msra.mxu0 0.0
        %1844 = vmatpush.xpose.msra.mxu0 0.0
        %1845 = vmatpush.xpose.msra.mxu0 0.0
        %1846 = vmatpush.xpose.msra.mxu0 0.0
        %1847 = vmatpush.xpose.msra.mxu0 0.0
        %1848 = vmatpush.xpose.msra.mxu0 0.0
        %1849 = vmatpush.xpose.msra.mxu0 0.0
        %1850 = vmatpush.xpose.msra.mxu0 0.0
        %1851 = vmatpush.xpose.msra.mxu0 0.0
        %1852 = vmatpush.xpose.msra.mxu0 0.0
        %1853 = vmatpush.xpose.msra.mxu0 0.0
        %1854 = vmatpush.xpose.msra.mxu0 0.0
        %1855 = vmatpush.xpose.msra.mxu0 %v1838
        %1856 = vmatmul.f32.gmra.mxu0 %v1836
        %v1857 = vpop.f32.mrf.mxu0
        %v1858 = vadd.f32 %v1090, %v1857
        %1859 = vdwg.mxu0
        %vm1860 = vcmask 64512
        %v1861 = vsel %vm1860, %v1114, -inf
        %1862 = vmax.xlane.f32.xlu0 %v1861
        %v1863 = vpop.xlane.xlu0 %1862
        %v1864 = vsel %vm1860, %v1138, -inf
        %1865 = vmax.xlane.f32.xlu0 %v1864
        %v1866 = vpop.xlane.xlu0 %1865
        %v1867 = vsel %vm1860, %v1162, -inf
        %1868 = vmax.xlane.f32.xlu0 %v1867
        %v1869 = vpop.xlane.xlu0 %1868
        %v1870 = vsel %vm1860, %v1186, -inf
        %1871 = vmax.xlane.f32.xlu0 %v1870
        %v1872 = vpop.xlane.xlu0 %1871
        %v1873 = vsel %vm1860, %v1210, -inf
        %1874 = vmax.xlane.f32.xlu0 %v1873
        %v1875 = vpop.xlane.xlu0 %1874
        %v1876 = vsel %vm1860, %v1234, -inf
        %1877 = vmax.xlane.f32.xlu0 %v1876
        %v1878 = vpop.xlane.xlu0 %1877
        %v1879 = vsel %vm1860, %v1258, -inf
        %1880 = vmax.xlane.f32.xlu0 %v1879
        %v1881 = vpop.xlane.xlu0 %1880
        %v1882 = vsel %vm1860, %v1282, -inf
        %1883 = vmax.xlane.f32.xlu0 %v1882
        %v1884 = vpop.xlane.xlu0 %1883
        %v1885 = vsel %vm1860, %v1306, -inf
        %1886 = vmax.xlane.f32.xlu0 %v1885
        %v1887 = vpop.xlane.xlu0 %1886
        %v1888 = vsel %vm1860, %v1330, -inf
        %1889 = vmax.xlane.f32.xlu0 %v1888
        %v1890 = vpop.xlane.xlu0 %1889
        %v1891 = vsel %vm1860, %v1354, -inf
        %1892 = vmax.xlane.f32.xlu0 %v1891
        %v1893 = vpop.xlane.xlu0 %1892
        %v1894 = vsel %vm1860, %v1378, -inf
        %1895 = vmax.xlane.f32.xlu0 %v1894
        %v1896 = vpop.xlane.xlu0 %1895
        %v1897 = vsel %vm1860, %v1402, -inf
        %1898 = vmax.xlane.f32.xlu0 %v1897
        %v1899 = vpop.xlane.xlu0 %1898
        %v1900 = vsel %vm1860, %v1426, -inf
        %1901 = vmax.xlane.f32.xlu0 %v1900
        %v1902 = vpop.xlane.xlu0 %1901
        %v1903 = vsel %vm1860, %v1450, -inf
        %1904 = vmax.xlane.f32.xlu0 %v1903
        %v1905 = vpop.xlane.xlu0 %1904
        %v1906 = vsel %vm1860, %v1474, -inf
        %1907 = vmax.xlane.f32.xlu0 %v1906
        %v1908 = vpop.xlane.xlu0 %1907
        %v1909 = vsel %vm1860, %v1498, -inf
        %1910 = vmax.xlane.f32.xlu0 %v1909
        %v1911 = vpop.xlane.xlu0 %1910
        %v1912 = vsel %vm1860, %v1522, -inf
        %1913 = vmax.xlane.f32.xlu0 %v1912
        %v1914 = vpop.xlane.xlu0 %1913
        %v1915 = vsel %vm1860, %v1546, -inf
        %1916 = vmax.xlane.f32.xlu0 %v1915
        %v1917 = vpop.xlane.xlu0 %1916
        %v1918 = vsel %vm1860, %v1570, -inf
        %1919 = vmax.xlane.f32.xlu0 %v1918
        %v1920 = vpop.xlane.xlu0 %1919
        %v1921 = vsel %vm1860, %v1594, -inf
        %1922 = vmax.xlane.f32.xlu0 %v1921
        %v1923 = vpop.xlane.xlu0 %1922
        %v1924 = vsel %vm1860, %v1618, -inf
        %1925 = vmax.xlane.f32.xlu0 %v1924
        %v1926 = vpop.xlane.xlu0 %1925
        %v1927 = vsel %vm1860, %v1642, -inf
        %1928 = vmax.xlane.f32.xlu0 %v1927
        %v1929 = vpop.xlane.xlu0 %1928
        %v1930 = vsel %vm1860, %v1666, -inf
        %1931 = vmax.xlane.f32.xlu0 %v1930
        %v1932 = vpop.xlane.xlu0 %1931
        %v1933 = vsel %vm1860, %v1690, -inf
        %1934 = vmax.xlane.f32.xlu0 %v1933
        %v1935 = vpop.xlane.xlu0 %1934
        %v1936 = vsel %vm1860, %v1714, -inf
        %1937 = vmax.xlane.f32.xlu0 %v1936
        %v1938 = vpop.xlane.xlu0 %1937
        %v1939 = vsel %vm1860, %v1738, -inf
        %1940 = vmax.xlane.f32.xlu0 %v1939
        %v1941 = vpop.xlane.xlu0 %1940
        %v1942 = vsel %vm1860, %v1762, -inf
        %1943 = vmax.xlane.f32.xlu0 %v1942
        %v1944 = vpop.xlane.xlu0 %1943
        %v1945 = vsel %vm1860, %v1786, -inf
        %1946 = vmax.xlane.f32.xlu0 %v1945
        %v1947 = vpop.xlane.xlu0 %1946
        %v1948 = vsel %vm1860, %v1810, -inf
        %1949 = vmax.xlane.f32.xlu0 %v1948
        %v1950 = vpop.xlane.xlu0 %1949
        %v1951 = vsel %vm1860, %v1834, -inf
        %1952 = vmax.xlane.f32.xlu0 %v1951
        %v1953 = vpop.xlane.xlu0 %1952
        %v1954 = vsel %vm1860, %v1858, -inf
        %1955 = vmax.xlane.f32.xlu0 %v1954
        %v1956 = vpop.xlane.xlu0 %1955
        %v1957 = vsub.f32 %v1114, %v1863
        %v1958 = vsub.f32 %v1138, %v1866
        %v1959 = vsub.f32 %v1162, %v1869
        %v1960 = vsub.f32 %v1186, %v1872
        %v1961 = vsub.f32 %v1210, %v1875
        %v1962 = vsub.f32 %v1234, %v1878
        %v1963 = vsub.f32 %v1258, %v1881
        %v1964 = vsub.f32 %v1282, %v1884
        %v1965 = vsub.f32 %v1306, %v1887
        %v1966 = vsub.f32 %v1330, %v1890
        %v1967 = vsub.f32 %v1354, %v1893
        %v1968 = vsub.f32 %v1378, %v1896
        %v1969 = vsub.f32 %v1402, %v1899
        %v1970 = vsub.f32 %v1426, %v1902
        %v1971 = vsub.f32 %v1450, %v1905
        %v1972 = vsub.f32 %v1474, %v1908
        %v1973 = vsub.f32 %v1498, %v1911
        %v1974 = vsub.f32 %v1522, %v1914
        %v1975 = vsub.f32 %v1546, %v1917
        %v1976 = vsub.f32 %v1570, %v1920
        %v1977 = vsub.f32 %v1594, %v1923
        %v1978 = vsub.f32 %v1618, %v1926
        %v1979 = vsub.f32 %v1642, %v1929
        %v1980 = vsub.f32 %v1666, %v1932
        %v1981 = vsub.f32 %v1690, %v1935
        %v1982 = vsub.f32 %v1714, %v1938
        %v1983 = vsub.f32 %v1738, %v1941
        %v1984 = vsub.f32 %v1762, %v1944
        %v1985 = vsub.f32 %v1786, %v1947
        %v1986 = vsub.f32 %v1810, %v1950
        %v1987 = vsub.f32 %v1834, %v1953
        %v1988 = vsub.f32 %v1858, %v1956
        %v1989 = vmul.f32 %v1957, 1.442695
        %v1990 = vpow.pop %v1989
        %v1991 = vmul.f32 %v1958, 1.442695
        %v1992 = vpow.pop %v1991
        %v1993 = vmul.f32 %v1959, 1.442695
        %v1994 = vpow.pop %v1993
        %v1995 = vmul.f32 %v1960, 1.442695
        %v1996 = vpow.pop %v1995
        %v1997 = vmul.f32 %v1961, 1.442695
        %v1998 = vpow.pop %v1997
        %v1999 = vmul.f32 %v1962, 1.442695
        %v2000 = vpow.pop %v1999
        %v2001 = vmul.f32 %v1963, 1.442695
        %v2002 = vpow.pop %v2001
        %v2003 = vmul.f32 %v1964, 1.442695
        %v2004 = vpow.pop %v2003
        %v2005 = vmul.f32 %v1965, 1.442695
        %v2006 = vpow.pop %v2005
        %v2007 = vmul.f32 %v1966, 1.442695
        %v2008 = vpow.pop %v2007
        %v2009 = vmul.f32 %v1967, 1.442695
        %v2010 = vpow.pop %v2009
        %v2011 = vmul.f32 %v1968, 1.442695
        %v2012 = vpow.pop %v2011
        %v2013 = vmul.f32 %v1969, 1.442695
        %v2014 = vpow.pop %v2013
        %v2015 = vmul.f32 %v1970, 1.442695
        %v2016 = vpow.pop %v2015
        %v2017 = vmul.f32 %v1971, 1.442695
        %v2018 = vpow.pop %v2017
        %v2019 = vmul.f32 %v1972, 1.442695
        %v2020 = vpow.pop %v2019
        %v2021 = vmul.f32 %v1973, 1.442695
        %v2022 = vpow.pop %v2021
        %v2023 = vmul.f32 %v1974, 1.442695
        %v2024 = vpow.pop %v2023
        %v2025 = vmul.f32 %v1975, 1.442695
        %v2026 = vpow.pop %v2025
        %v2027 = vmul.f32 %v1976, 1.442695
        %v2028 = vpow.pop %v2027
        %v2029 = vmul.f32 %v1977, 1.442695
        %v2030 = vpow.pop %v2029
        %v2031 = vmul.f32 %v1978, 1.442695
        %v2032 = vpow.pop %v2031
        %v2033 = vmul.f32 %v1979, 1.442695
        %v2034 = vpow.pop %v2033
        %v2035 = vmul.f32 %v1980, 1.442695
        %v2036 = vpow.pop %v2035
        %v2037 = vmul.f32 %v1981, 1.442695
        %v2038 = vpow.pop %v2037
        %v2039 = vmul.f32 %v1982, 1.442695
        %v2040 = vpow.pop %v2039
        %v2041 = vmul.f32 %v1983, 1.442695
        %v2042 = vpow.pop %v2041
        %v2043 = vmul.f32 %v1984, 1.442695
        %v2044 = vpow.pop %v2043
        %v2045 = vmul.f32 %v1985, 1.442695
        %v2046 = vpow.pop %v2045
        %v2047 = vmul.f32 %v1986, 1.442695
        %v2048 = vpow.pop %v2047
        %v2049 = vmul.f32 %v1987, 1.442695
        %v2050 = vpow.pop %v2049
        %v2051 = vmul.f32 %v1988, 1.442695
        %v2052 = vpow.pop %v2051
        %v2053 = vsel %vm1860, %v1990, 0.0
        %2054 = vadd.xlane.f32.xlu0 %v2053
        %v2055 = vpop.xlane.xlu0 %2054
        %v2056 = vsel %vm1860, %v1992, 0.0
        %2057 = vadd.xlane.f32.xlu0 %v2056
        %v2058 = vpop.xlane.xlu0 %2057
        %v2059 = vsel %vm1860, %v1994, 0.0
        %2060 = vadd.xlane.f32.xlu0 %v2059
        %v2061 = vpop.xlane.xlu0 %2060
        %v2062 = vsel %vm1860, %v1996, 0.0
        %2063 = vadd.xlane.f32.xlu0 %v2062
        %v2064 = vpop.xlane.xlu0 %2063
        %v2065 = vsel %vm1860, %v1998, 0.0
        %2066 = vadd.xlane.f32.xlu0 %v2065
        %v2067 = vpop.xlane.xlu0 %2066
        %v2068 = vsel %vm1860, %v2000, 0.0
        %2069 = vadd.xlane.f32.xlu0 %v2068
        %v2070 = vpop.xlane.xlu0 %2069
        %v2071 = vsel %vm1860, %v2002, 0.0
        %2072 = vadd.xlane.f32.xlu0 %v2071
        %v2073 = vpop.xlane.xlu0 %2072
        %v2074 = vsel %vm1860, %v2004, 0.0
        %2075 = vadd.xlane.f32.xlu0 %v2074
        %v2076 = vpop.xlane.xlu0 %2075
        %v2077 = vsel %vm1860, %v2006, 0.0
        %2078 = vadd.xlane.f32.xlu0 %v2077
        %v2079 = vpop.xlane.xlu0 %2078
        %v2080 = vsel %vm1860, %v2008, 0.0
        %2081 = vadd.xlane.f32.xlu0 %v2080
        %v2082 = vpop.xlane.xlu0 %2081
        %v2083 = vsel %vm1860, %v2010, 0.0
        %2084 = vadd.xlane.f32.xlu0 %v2083
        %v2085 = vpop.xlane.xlu0 %2084
        %v2086 = vsel %vm1860, %v2012, 0.0
        %2087 = vadd.xlane.f32.xlu0 %v2086
        %v2088 = vpop.xlane.xlu0 %2087
        %v2089 = vsel %vm1860, %v2014, 0.0
        %2090 = vadd.xlane.f32.xlu0 %v2089
        %v2091 = vpop.xlane.xlu0 %2090
        %v2092 = vsel %vm1860, %v2016, 0.0
        %2093 = vadd.xlane.f32.xlu0 %v2092
        %v2094 = vpop.xlane.xlu0 %2093
        %v2095 = vsel %vm1860, %v2018, 0.0
        %2096 = vadd.xlane.f32.xlu0 %v2095
        %v2097 = vpop.xlane.xlu0 %2096
        %v2098 = vsel %vm1860, %v2020, 0.0
        %2099 = vadd.xlane.f32.xlu0 %v2098
        %v2100 = vpop.xlane.xlu0 %2099
        %v2101 = vsel %vm1860, %v2022, 0.0
        %2102 = vadd.xlane.f32.xlu0 %v2101
        %v2103 = vpop.xlane.xlu0 %2102
        %v2104 = vsel %vm1860, %v2024, 0.0
        %2105 = vadd.xlane.f32.xlu0 %v2104
        %v2106 = vpop.xlane.xlu0 %2105
        %v2107 = vsel %vm1860, %v2026, 0.0
        %2108 = vadd.xlane.f32.xlu0 %v2107
        %v2109 = vpop.xlane.xlu0 %2108
        %v2110 = vsel %vm1860, %v2028, 0.0
        %2111 = vadd.xlane.f32.xlu0 %v2110
        %v2112 = vpop.xlane.xlu0 %2111
        %v2113 = vsel %vm1860, %v2030, 0.0
        %2114 = vadd.xlane.f32.xlu0 %v2113
        %v2115 = vpop.xlane.xlu0 %2114
        %v2116 = vsel %vm1860, %v2032, 0.0
        %2117 = vadd.xlane.f32.xlu0 %v2116
        %v2118 = vpop.xlane.xlu0 %2117
        %v2119 = vsel %vm1860, %v2034, 0.0
        %2120 = vadd.xlane.f32.xlu0 %v2119
        %v2121 = vpop.xlane.xlu0 %2120
        %v2122 = vsel %vm1860, %v2036, 0.0
        %2123 = vadd.xlane.f32.xlu0 %v2122
        %v2124 = vpop.xlane.xlu0 %2123
        %v2125 = vsel %vm1860, %v2038, 0.0
        %2126 = vadd.xlane.f32.xlu0 %v2125
        %v2127 = vpop.xlane.xlu0 %2126
        %v2128 = vsel %vm1860, %v2040, 0.0
        %2129 = vadd.xlane.f32.xlu0 %v2128
        %v2130 = vpop.xlane.xlu0 %2129
        %v2131 = vsel %vm1860, %v2042, 0.0
        %2132 = vadd.xlane.f32.xlu0 %v2131
        %v2133 = vpop.xlane.xlu0 %2132
        %v2134 = vsel %vm1860, %v2044, 0.0
        %2135 = vadd.xlane.f32.xlu0 %v2134
        %v2136 = vpop.xlane.xlu0 %2135
        %v2137 = vsel %vm1860, %v2046, 0.0
        %2138 = vadd.xlane.f32.xlu0 %v2137
        %v2139 = vpop.xlane.xlu0 %2138
        %v2140 = vsel %vm1860, %v2048, 0.0
        %2141 = vadd.xlane.f32.xlu0 %v2140
        %v2142 = vpop.xlane.xlu0 %2141
        %v2143 = vsel %vm1860, %v2050, 0.0
        %2144 = vadd.xlane.f32.xlu0 %v2143
        %v2145 = vpop.xlane.xlu0 %2144
        %v2146 = vsel %vm1860, %v2052, 0.0
        %2147 = vadd.xlane.f32.xlu0 %v2146
        %v2148 = vpop.xlane.xlu0 %2147
        %v2149 = vrcp.pop %v2055
        %v2150 = vrcp.pop %v2058
        %v2151 = vrcp.pop %v2061
        %v2152 = vrcp.pop %v2064
        %v2153 = vrcp.pop %v2067
        %v2154 = vrcp.pop %v2070
        %v2155 = vrcp.pop %v2073
        %v2156 = vrcp.pop %v2076
        %v2157 = vrcp.pop %v2079
        %v2158 = vrcp.pop %v2082
        %v2159 = vrcp.pop %v2085
        %v2160 = vrcp.pop %v2088
        %v2161 = vrcp.pop %v2091
        %v2162 = vrcp.pop %v2094
        %v2163 = vrcp.pop %v2097
        %v2164 = vrcp.pop %v2100
        %v2165 = vrcp.pop %v2103
        %v2166 = vrcp.pop %v2106
        %v2167 = vrcp.pop %v2109
        %v2168 = vrcp.pop %v2112
        %v2169 = vrcp.pop %v2115
        %v2170 = vrcp.pop %v2118
        %v2171 = vrcp.pop %v2121
        %v2172 = vrcp.pop %v2124
        %v2173 = vrcp.pop %v2127
        %v2174 = vrcp.pop %v2130
        %v2175 = vrcp.pop %v2133
        %v2176 = vrcp.pop %v2136
        %v2177 = vrcp.pop %v2139
        %v2178 = vrcp.pop %v2142
        %v2179 = vrcp.pop %v2145
        %v2180 = vrcp.pop %v2148
        %v2181 = vmul.f32 %v1990, %v2149
        %v2182 = vmul.f32 %v1992, %v2150
        %v2183 = vmul.f32 %v1994, %v2151
        %v2184 = vmul.f32 %v1996, %v2152
        %v2185 = vmul.f32 %v1998, %v2153
        %v2186 = vmul.f32 %v2000, %v2154
        %v2187 = vmul.f32 %v2002, %v2155
        %v2188 = vmul.f32 %v2004, %v2156
        %v2189 = vmul.f32 %v2006, %v2157
        %v2190 = vmul.f32 %v2008, %v2158
        %v2191 = vmul.f32 %v2010, %v2159
        %v2192 = vmul.f32 %v2012, %v2160
        %v2193 = vmul.f32 %v2014, %v2161
        %v2194 = vmul.f32 %v2016, %v2162
        %v2195 = vmul.f32 %v2018, %v2163
        %v2196 = vmul.f32 %v2020, %v2164
        %v2197 = vmul.f32 %v2022, %v2165
        %v2198 = vmul.f32 %v2024, %v2166
        %v2199 = vmul.f32 %v2026, %v2167
        %v2200 = vmul.f32 %v2028, %v2168
        %v2201 = vmul.f32 %v2030, %v2169
        %v2202 = vmul.f32 %v2032, %v2170
        %v2203 = vmul.f32 %v2034, %v2171
        %v2204 = vmul.f32 %v2036, %v2172
        %v2205 = vmul.f32 %v2038, %v2173
        %v2206 = vmul.f32 %v2040, %v2174
        %v2207 = vmul.f32 %v2042, %v2175
        %v2208 = vmul.f32 %v2044, %v2176
        %v2209 = vmul.f32 %v2046, %v2177
        %v2210 = vmul.f32 %v2048, %v2178
        %v2211 = vmul.f32 %v2050, %v2179
        %v2212 = vmul.f32 %v2052, %v2180
        %v2214 = vsel %vm1860, %v2181, 0
        %2216 = vmatpush.msra.mxu0 0.0
        %2217 = vmatpush.msra.mxu0 0.0
        %2218 = vmatpush.msra.mxu0 0.0
        %2219 = vmatpush.msra.mxu0 0.0
        %2220 = vmatpush.msra.mxu0 0.0
        %2221 = vmatpush.msra.mxu0 0.0
        %2222 = vmatpush.msra.mxu0 0.0
        %2223 = vmatpush.msra.mxu0 0.0
        %2224 = vmatpush.msra.mxu0 0.0
        %2225 = vmatpush.msra.mxu0 0.0
        %2226 = vmatpush.msra.mxu0 0.0
        %2227 = vmatpush.msra.mxu0 0.0
        %2228 = vmatpush.msra.mxu0 0.0
        %2229 = vmatpush.msra.mxu0 0.0
        %2230 = vmatpush.msra.mxu0 0.0
        %2231 = vmatpush.msra.mxu0 %v866
        %2232 = vmatmul.f32.gmra.mxu0 %v2214
        %v2233 = vpop.f32.mrf.mxu0
        %v2234 = vadd.f32 0.0, %v2233
        %2235 = vdwg.mxu0
        %v2237 = vsel %vm1860, %v2182, 0
        %2239 = vmatpush.msra.mxu0 0.0
        %2240 = vmatpush.msra.mxu0 0.0
        %2241 = vmatpush.msra.mxu0 0.0
        %2242 = vmatpush.msra.mxu0 0.0
        %2243 = vmatpush.msra.mxu0 0.0
        %2244 = vmatpush.msra.mxu0 0.0
        %2245 = vmatpush.msra.mxu0 0.0
        %2246 = vmatpush.msra.mxu0 0.0
        %2247 = vmatpush.msra.mxu0 0.0
        %2248 = vmatpush.msra.mxu0 0.0
        %2249 = vmatpush.msra.mxu0 0.0
        %2250 = vmatpush.msra.mxu0 0.0
        %2251 = vmatpush.msra.mxu0 0.0
        %2252 = vmatpush.msra.mxu0 0.0
        %2253 = vmatpush.msra.mxu0 0.0
        %2254 = vmatpush.msra.mxu0 %v868
        %2255 = vmatmul.f32.gmra.mxu0 %v2237
        %v2256 = vpop.f32.mrf.mxu0
        %v2257 = vadd.f32 0.0, %v2256
        %2258 = vdwg.mxu0
        %v2260 = vsel %vm1860, %v2183, 0
        %2262 = vmatpush.msra.mxu0 0.0
        %2263 = vmatpush.msra.mxu0 0.0
        %2264 = vmatpush.msra.mxu0 0.0
        %2265 = vmatpush.msra.mxu0 0.0
        %2266 = vmatpush.msra.mxu0 0.0
        %2267 = vmatpush.msra.mxu0 0.0
        %2268 = vmatpush.msra.mxu0 0.0
        %2269 = vmatpush.msra.mxu0 0.0
        %2270 = vmatpush.msra.mxu0 0.0
        %2271 = vmatpush.msra.mxu0 0.0
        %2272 = vmatpush.msra.mxu0 0.0
        %2273 = vmatpush.msra.mxu0 0.0
        %2274 = vmatpush.msra.mxu0 0.0
        %2275 = vmatpush.msra.mxu0 0.0
        %2276 = vmatpush.msra.mxu0 0.0
        %2277 = vmatpush.msra.mxu0 %v871
        %2278 = vmatmul.f32.gmra.mxu0 %v2260
        %v2279 = vpop.f32.mrf.mxu0
        %v2280 = vadd.f32 0.0, %v2279
        %2281 = vdwg.mxu0
        %v2283 = vsel %vm1860, %v2184, 0
        %2285 = vmatpush.msra.mxu0 0.0
        %2286 = vmatpush.msra.mxu0 0.0
        %2287 = vmatpush.msra.mxu0 0.0
        %2288 = vmatpush.msra.mxu0 0.0
        %2289 = vmatpush.msra.mxu0 0.0
        %2290 = vmatpush.msra.mxu0 0.0
        %2291 = vmatpush.msra.mxu0 0.0
        %2292 = vmatpush.msra.mxu0 0.0
        %2293 = vmatpush.msra.mxu0 0.0
        %2294 = vmatpush.msra.mxu0 0.0
        %2295 = vmatpush.msra.mxu0 0.0
        %2296 = vmatpush.msra.mxu0 0.0
        %2297 = vmatpush.msra.mxu0 0.0
        %2298 = vmatpush.msra.mxu0 0.0
        %2299 = vmatpush.msra.mxu0 0.0
        %2300 = vmatpush.msra.mxu0 %v873
        %2301 = vmatmul.f32.gmra.mxu0 %v2283
        %v2302 = vpop.f32.mrf.mxu0
        %v2303 = vadd.f32 0.0, %v2302
        %2304 = vdwg.mxu0
        %v2306 = vsel %vm1860, %v2185, 0
        %2308 = vmatpush.msra.mxu0 0.0
        %2309 = vmatpush.msra.mxu0 0.0
        %2310 = vmatpush.msra.mxu0 0.0
        %2311 = vmatpush.msra.mxu0 0.0
        %2312 = vmatpush.msra.mxu0 0.0
        %2313 = vmatpush.msra.mxu0 0.0
        %2314 = vmatpush.msra.mxu0 0.0
        %2315 = vmatpush.msra.mxu0 0.0
        %2316 = vmatpush.msra.mxu0 0.0
        %2317 = vmatpush.msra.mxu0 0.0
        %2318 = vmatpush.msra.mxu0 0.0
        %2319 = vmatpush.msra.mxu0 0.0
        %2320 = vmatpush.msra.mxu0 0.0
        %2321 = vmatpush.msra.mxu0 0.0
        %2322 = vmatpush.msra.mxu0 0.0
        %2323 = vmatpush.msra.mxu0 %v876
        %2324 = vmatmul.f32.gmra.mxu0 %v2306
        %v2325 = vpop.f32.mrf.mxu0
        %v2326 = vadd.f32 0.0, %v2325
        %2327 = vdwg.mxu0
        %v2329 = vsel %vm1860, %v2186, 0
        %2331 = vmatpush.msra.mxu0 0.0
        %2332 = vmatpush.msra.mxu0 0.0
        %2333 = vmatpush.msra.mxu0 0.0
        %2334 = vmatpush.msra.mxu0 0.0
        %2335 = vmatpush.msra.mxu0 0.0
        %2336 = vmatpush.msra.mxu0 0.0
        %2337 = vmatpush.msra.mxu0 0.0
        %2338 = vmatpush.msra.mxu0 0.0
        %2339 = vmatpush.msra.mxu0 0.0
        %2340 = vmatpush.msra.mxu0 0.0
        %2341 = vmatpush.msra.mxu0 0.0
        %2342 = vmatpush.msra.mxu0 0.0
        %2343 = vmatpush.msra.mxu0 0.0
        %2344 = vmatpush.msra.mxu0 0.0
        %2345 = vmatpush.msra.mxu0 0.0
        %2346 = vmatpush.msra.mxu0 %v878
        %2347 = vmatmul.f32.gmra.mxu0 %v2329
        %v2348 = vpop.f32.mrf.mxu0
        %v2349 = vadd.f32 0.0, %v2348
        %2350 = vdwg.mxu0
        %v2352 = vsel %vm1860, %v2187, 0
        %2354 = vmatpush.msra.mxu0 0.0
        %2355 = vmatpush.msra.mxu0 0.0
        %2356 = vmatpush.msra.mxu0 0.0
        %2357 = vmatpush.msra.mxu0 0.0
        %2358 = vmatpush.msra.mxu0 0.0
        %2359 = vmatpush.msra.mxu0 0.0
        %2360 = vmatpush.msra.mxu0 0.0
        %2361 = vmatpush.msra.mxu0 0.0
        %2362 = vmatpush.msra.mxu0 0.0
        %2363 = vmatpush.msra.mxu0 0.0
        %2364 = vmatpush.msra.mxu0 0.0
        %2365 = vmatpush.msra.mxu0 0.0
        %2366 = vmatpush.msra.mxu0 0.0
        %2367 = vmatpush.msra.mxu0 0.0
        %2368 = vmatpush.msra.mxu0 0.0
        %2369 = vmatpush.msra.mxu0 %v881
        %2370 = vmatmul.f32.gmra.mxu0 %v2352
        %v2371 = vpop.f32.mrf.mxu0
        %v2372 = vadd.f32 0.0, %v2371
        %2373 = vdwg.mxu0
        %v2375 = vsel %vm1860, %v2188, 0
        %2377 = vmatpush.msra.mxu0 0.0
        %2378 = vmatpush.msra.mxu0 0.0
        %2379 = vmatpush.msra.mxu0 0.0
        %2380 = vmatpush.msra.mxu0 0.0
        %2381 = vmatpush.msra.mxu0 0.0
        %2382 = vmatpush.msra.mxu0 0.0
        %2383 = vmatpush.msra.mxu0 0.0
        %2384 = vmatpush.msra.mxu0 0.0
        %2385 = vmatpush.msra.mxu0 0.0
        %2386 = vmatpush.msra.mxu0 0.0
        %2387 = vmatpush.msra.mxu0 0.0
        %2388 = vmatpush.msra.mxu0 0.0
        %2389 = vmatpush.msra.mxu0 0.0
        %2390 = vmatpush.msra.mxu0 0.0
        %2391 = vmatpush.msra.mxu0 0.0
        %2392 = vmatpush.msra.mxu0 %v883
        %2393 = vmatmul.f32.gmra.mxu0 %v2375
        %v2394 = vpop.f32.mrf.mxu0
        %v2395 = vadd.f32 0.0, %v2394
        %2396 = vdwg.mxu0
        %v2398 = vsel %vm1860, %v2189, 0
        %2400 = vmatpush.msra.mxu0 0.0
        %2401 = vmatpush.msra.mxu0 0.0
        %2402 = vmatpush.msra.mxu0 0.0
        %2403 = vmatpush.msra.mxu0 0.0
        %2404 = vmatpush.msra.mxu0 0.0
        %2405 = vmatpush.msra.mxu0 0.0
        %2406 = vmatpush.msra.mxu0 0.0
        %2407 = vmatpush.msra.mxu0 0.0
        %2408 = vmatpush.msra.mxu0 0.0
        %2409 = vmatpush.msra.mxu0 0.0
        %2410 = vmatpush.msra.mxu0 0.0
        %2411 = vmatpush.msra.mxu0 0.0
        %2412 = vmatpush.msra.mxu0 0.0
        %2413 = vmatpush.msra.mxu0 0.0
        %2414 = vmatpush.msra.mxu0 0.0
        %2415 = vmatpush.msra.mxu0 %v1014
        %2416 = vmatmul.f32.gmra.mxu0 %v2398
        %v2417 = vpop.f32.mrf.mxu0
        %v2418 = vadd.f32 0.0, %v2417
        %2419 = vdwg.mxu0
        %v2421 = vsel %vm1860, %v2190, 0
        %2423 = vmatpush.msra.mxu0 0.0
        %2424 = vmatpush.msra.mxu0 0.0
        %2425 = vmatpush.msra.mxu0 0.0
        %2426 = vmatpush.msra.mxu0 0.0
        %2427 = vmatpush.msra.mxu0 0.0
        %2428 = vmatpush.msra.mxu0 0.0
        %2429 = vmatpush.msra.mxu0 0.0
        %2430 = vmatpush.msra.mxu0 0.0
        %2431 = vmatpush.msra.mxu0 0.0
        %2432 = vmatpush.msra.mxu0 0.0
        %2433 = vmatpush.msra.mxu0 0.0
        %2434 = vmatpush.msra.mxu0 0.0
        %2435 = vmatpush.msra.mxu0 0.0
        %2436 = vmatpush.msra.mxu0 0.0
        %2437 = vmatpush.msra.mxu0 0.0
        %2438 = vmatpush.msra.mxu0 %v1016
        %2439 = vmatmul.f32.gmra.mxu0 %v2421
        %v2440 = vpop.f32.mrf.mxu0
        %v2441 = vadd.f32 0.0, %v2440
        %2442 = vdwg.mxu0
        %v2444 = vsel %vm1860, %v2191, 0
        %2446 = vmatpush.msra.mxu0 0.0
        %2447 = vmatpush.msra.mxu0 0.0
        %2448 = vmatpush.msra.mxu0 0.0
        %2449 = vmatpush.msra.mxu0 0.0
        %2450 = vmatpush.msra.mxu0 0.0
        %2451 = vmatpush.msra.mxu0 0.0
        %2452 = vmatpush.msra.mxu0 0.0
        %2453 = vmatpush.msra.mxu0 0.0
        %2454 = vmatpush.msra.mxu0 0.0
        %2455 = vmatpush.msra.mxu0 0.0
        %2456 = vmatpush.msra.mxu0 0.0
        %2457 = vmatpush.msra.mxu0 0.0
        %2458 = vmatpush.msra.mxu0 0.0
        %2459 = vmatpush.msra.mxu0 0.0
        %2460 = vmatpush.msra.mxu0 0.0
        %2461 = vmatpush.msra.mxu0 %v1018
        %2462 = vmatmul.f32.gmra.mxu0 %v2444
        %v2463 = vpop.f32.mrf.mxu0
        %v2464 = vadd.f32 0.0, %v2463
        %2465 = vdwg.mxu0
        %v2467 = vsel %vm1860, %v2192, 0
        %2469 = vmatpush.msra.mxu0 0.0
        %2470 = vmatpush.msra.mxu0 0.0
        %2471 = vmatpush.msra.mxu0 0.0
        %2472 = vmatpush.msra.mxu0 0.0
        %2473 = vmatpush.msra.mxu0 0.0
        %2474 = vmatpush.msra.mxu0 0.0
        %2475 = vmatpush.msra.mxu0 0.0
        %2476 = vmatpush.msra.mxu0 0.0
        %2477 = vmatpush.msra.mxu0 0.0
        %2478 = vmatpush.msra.mxu0 0.0
        %2479 = vmatpush.msra.mxu0 0.0
        %2480 = vmatpush.msra.mxu0 0.0
        %2481 = vmatpush.msra.mxu0 0.0
        %2482 = vmatpush.msra.mxu0 0.0
        %2483 = vmatpush.msra.mxu0 0.0
        %2484 = vmatpush.msra.mxu0 %v1020
        %2485 = vmatmul.f32.gmra.mxu0 %v2467
        %v2486 = vpop.f32.mrf.mxu0
        %v2487 = vadd.f32 0.0, %v2486
        %2488 = vdwg.mxu0
        %v2490 = vsel %vm1860, %v2193, 0
        %2492 = vmatpush.msra.mxu0 0.0
        %2493 = vmatpush.msra.mxu0 0.0
        %2494 = vmatpush.msra.mxu0 0.0
        %2495 = vmatpush.msra.mxu0 0.0
        %2496 = vmatpush.msra.mxu0 0.0
        %2497 = vmatpush.msra.mxu0 0.0
        %2498 = vmatpush.msra.mxu0 0.0
        %2499 = vmatpush.msra.mxu0 0.0
        %2500 = vmatpush.msra.mxu0 0.0
        %2501 = vmatpush.msra.mxu0 0.0
        %2502 = vmatpush.msra.mxu0 0.0
        %2503 = vmatpush.msra.mxu0 0.0
        %2504 = vmatpush.msra.mxu0 0.0
        %2505 = vmatpush.msra.mxu0 0.0
        %2506 = vmatpush.msra.mxu0 0.0
        %2507 = vmatpush.msra.mxu0 %v1022
        %2508 = vmatmul.f32.gmra.mxu0 %v2490
        %v2509 = vpop.f32.mrf.mxu0
        %v2510 = vadd.f32 0.0, %v2509
        %2511 = vdwg.mxu0
        %v2513 = vsel %vm1860, %v2194, 0
        %2515 = vmatpush.msra.mxu0 0.0
        %2516 = vmatpush.msra.mxu0 0.0
        %2517 = vmatpush.msra.mxu0 0.0
        %2518 = vmatpush.msra.mxu0 0.0
        %2519 = vmatpush.msra.mxu0 0.0
        %2520 = vmatpush.msra.mxu0 0.0
        %2521 = vmatpush.msra.mxu0 0.0
        %2522 = vmatpush.msra.mxu0 0.0
        %2523 = vmatpush.msra.mxu0 0.0
        %2524 = vmatpush.msra.mxu0 0.0
        %2525 = vmatpush.msra.mxu0 0.0
        %2526 = vmatpush.msra.mxu0 0.0
        %2527 = vmatpush.msra.mxu0 0.0
        %2528 = vmatpush.msra.mxu0 0.0
        %2529 = vmatpush.msra.mxu0 0.0
        %2530 = vmatpush.msra.mxu0 %v1024
        %2531 = vmatmul.f32.gmra.mxu0 %v2513
        %v2532 = vpop.f32.mrf.mxu0
        %v2533 = vadd.f32 0.0, %v2532
        %2534 = vdwg.mxu0
        %v2536 = vsel %vm1860, %v2195, 0
        %2538 = vmatpush.msra.mxu0 0.0
        %2539 = vmatpush.msra.mxu0 0.0
        %2540 = vmatpush.msra.mxu0 0.0
        %2541 = vmatpush.msra.mxu0 0.0
        %2542 = vmatpush.msra.mxu0 0.0
        %2543 = vmatpush.msra.mxu0 0.0
        %2544 = vmatpush.msra.mxu0 0.0
        %2545 = vmatpush.msra.mxu0 0.0
        %2546 = vmatpush.msra.mxu0 0.0
        %2547 = vmatpush.msra.mxu0 0.0
        %2548 = vmatpush.msra.mxu0 0.0
        %2549 = vmatpush.msra.mxu0 0.0
        %2550 = vmatpush.msra.mxu0 0.0
        %2551 = vmatpush.msra.mxu0 0.0
        %2552 = vmatpush.msra.mxu0 0.0
        %2553 = vmatpush.msra.mxu0 %v1026
        %2554 = vmatmul.f32.gmra.mxu0 %v2536
        %v2555 = vpop.f32.mrf.mxu0
        %v2556 = vadd.f32 0.0, %v2555
        %2557 = vdwg.mxu0
        %v2559 = vsel %vm1860, %v2196, 0
        %2561 = vmatpush.msra.mxu0 0.0
        %2562 = vmatpush.msra.mxu0 0.0
        %2563 = vmatpush.msra.mxu0 0.0
        %2564 = vmatpush.msra.mxu0 0.0
        %2565 = vmatpush.msra.mxu0 0.0
        %2566 = vmatpush.msra.mxu0 0.0
        %2567 = vmatpush.msra.mxu0 0.0
        %2568 = vmatpush.msra.mxu0 0.0
        %2569 = vmatpush.msra.mxu0 0.0
        %2570 = vmatpush.msra.mxu0 0.0
        %2571 = vmatpush.msra.mxu0 0.0
        %2572 = vmatpush.msra.mxu0 0.0
        %2573 = vmatpush.msra.mxu0 0.0
        %2574 = vmatpush.msra.mxu0 0.0
        %2575 = vmatpush.msra.mxu0 0.0
        %2576 = vmatpush.msra.mxu0 %v1028
        %2577 = vmatmul.f32.gmra.mxu0 %v2559
        %v2578 = vpop.f32.mrf.mxu0
        %v2579 = vadd.f32 0.0, %v2578
        %2580 = vdwg.mxu0
        %v2582 = vsel %vm1860, %v2197, 0
        %2584 = vmatpush.msra.mxu0 0.0
        %2585 = vmatpush.msra.mxu0 0.0
        %2586 = vmatpush.msra.mxu0 0.0
        %2587 = vmatpush.msra.mxu0 0.0
        %2588 = vmatpush.msra.mxu0 0.0
        %2589 = vmatpush.msra.mxu0 0.0
        %2590 = vmatpush.msra.mxu0 0.0
        %2591 = vmatpush.msra.mxu0 0.0
        %2592 = vmatpush.msra.mxu0 0.0
        %2593 = vmatpush.msra.mxu0 0.0
        %2594 = vmatpush.msra.mxu0 0.0
        %2595 = vmatpush.msra.mxu0 0.0
        %2596 = vmatpush.msra.mxu0 0.0
        %2597 = vmatpush.msra.mxu0 0.0
        %2598 = vmatpush.msra.mxu0 0.0
        %2599 = vmatpush.msra.mxu0 %v1038
        %2600 = vmatmul.f32.gmra.mxu0 %v2582
        %v2601 = vpop.f32.mrf.mxu0
        %v2602 = vadd.f32 0.0, %v2601
        %2603 = vdwg.mxu0
        %v2605 = vsel %vm1860, %v2198, 0
        %2607 = vmatpush.msra.mxu0 0.0
        %2608 = vmatpush.msra.mxu0 0.0
        %2609 = vmatpush.msra.mxu0 0.0
        %2610 = vmatpush.msra.mxu0 0.0
        %2611 = vmatpush.msra.mxu0 0.0
        %2612 = vmatpush.msra.mxu0 0.0
        %2613 = vmatpush.msra.mxu0 0.0
        %2614 = vmatpush.msra.mxu0 0.0
        %2615 = vmatpush.msra.mxu0 0.0
        %2616 = vmatpush.msra.mxu0 0.0
        %2617 = vmatpush.msra.mxu0 0.0
        %2618 = vmatpush.msra.mxu0 0.0
        %2619 = vmatpush.msra.mxu0 0.0
        %2620 = vmatpush.msra.mxu0 0.0
        %2621 = vmatpush.msra.mxu0 0.0
        %2622 = vmatpush.msra.mxu0 %v1040
        %2623 = vmatmul.f32.gmra.mxu0 %v2605
        %v2624 = vpop.f32.mrf.mxu0
        %v2625 = vadd.f32 0.0, %v2624
        %2626 = vdwg.mxu0
        %v2628 = vsel %vm1860, %v2199, 0
        %2630 = vmatpush.msra.mxu0 0.0
        %2631 = vmatpush.msra.mxu0 0.0
        %2632 = vmatpush.msra.mxu0 0.0
        %2633 = vmatpush.msra.mxu0 0.0
        %2634 = vmatpush.msra.mxu0 0.0
        %2635 = vmatpush.msra.mxu0 0.0
        %2636 = vmatpush.msra.mxu0 0.0
        %2637 = vmatpush.msra.mxu0 0.0
        %2638 = vmatpush.msra.mxu0 0.0
        %2639 = vmatpush.msra.mxu0 0.0
        %2640 = vmatpush.msra.mxu0 0.0
        %2641 = vmatpush.msra.mxu0 0.0
        %2642 = vmatpush.msra.mxu0 0.0
        %2643 = vmatpush.msra.mxu0 0.0
        %2644 = vmatpush.msra.mxu0 0.0
        %2645 = vmatpush.msra.mxu0 %v1042
        %2646 = vmatmul.f32.gmra.mxu0 %v2628
        %v2647 = vpop.f32.mrf.mxu0
        %v2648 = vadd.f32 0.0, %v2647
        %2649 = vdwg.mxu0
        %v2651 = vsel %vm1860, %v2200, 0
        %2653 = vmatpush.msra.mxu0 0.0
        %2654 = vmatpush.msra.mxu0 0.0
        %2655 = vmatpush.msra.mxu0 0.0
        %2656 = vmatpush.msra.mxu0 0.0
        %2657 = vmatpush.msra.mxu0 0.0
        %2658 = vmatpush.msra.mxu0 0.0
        %2659 = vmatpush.msra.mxu0 0.0
        %2660 = vmatpush.msra.mxu0 0.0
        %2661 = vmatpush.msra.mxu0 0.0
        %2662 = vmatpush.msra.mxu0 0.0
        %2663 = vmatpush.msra.mxu0 0.0
        %2664 = vmatpush.msra.mxu0 0.0
        %2665 = vmatpush.msra.mxu0 0.0
        %2666 = vmatpush.msra.mxu0 0.0
        %2667 = vmatpush.msra.mxu0 0.0
        %2668 = vmatpush.msra.mxu0 %v1044
        %2669 = vmatmul.f32.gmra.mxu0 %v2651
        %v2670 = vpop.f32.mrf.mxu0
        %v2671 = vadd.f32 0.0, %v2670
        %2672 = vdwg.mxu0
        %v2674 = vsel %vm1860, %v2201, 0
        %2676 = vmatpush.msra.mxu0 0.0
        %2677 = vmatpush.msra.mxu0 0.0
        %2678 = vmatpush.msra.mxu0 0.0
        %2679 = vmatpush.msra.mxu0 0.0
        %2680 = vmatpush.msra.mxu0 0.0
        %2681 = vmatpush.msra.mxu0 0.0
        %2682 = vmatpush.msra.mxu0 0.0
        %2683 = vmatpush.msra.mxu0 0.0
        %2684 = vmatpush.msra.mxu0 0.0
        %2685 = vmatpush.msra.mxu0 0.0
        %2686 = vmatpush.msra.mxu0 0.0
        %2687 = vmatpush.msra.mxu0 0.0
        %2688 = vmatpush.msra.mxu0 0.0
        %2689 = vmatpush.msra.mxu0 0.0
        %2690 = vmatpush.msra.mxu0 0.0
        %2691 = vmatpush.msra.mxu0 %v1046
        %2692 = vmatmul.f32.gmra.mxu0 %v2674
        %v2693 = vpop.f32.mrf.mxu0
        %v2694 = vadd.f32 0.0, %v2693
        %2695 = vdwg.mxu0
        %v2697 = vsel %vm1860, %v2202, 0
        %2699 = vmatpush.msra.mxu0 0.0
        %2700 = vmatpush.msra.mxu0 0.0
        %2701 = vmatpush.msra.mxu0 0.0
        %2702 = vmatpush.msra.mxu0 0.0
        %2703 = vmatpush.msra.mxu0 0.0
        %2704 = vmatpush.msra.mxu0 0.0
        %2705 = vmatpush.msra.mxu0 0.0
        %2706 = vmatpush.msra.mxu0 0.0
        %2707 = vmatpush.msra.mxu0 0.0
        %2708 = vmatpush.msra.mxu0 0.0
        %2709 = vmatpush.msra.mxu0 0.0
        %2710 = vmatpush.msra.mxu0 0.0
        %2711 = vmatpush.msra.mxu0 0.0
        %2712 = vmatpush.msra.mxu0 0.0
        %2713 = vmatpush.msra.mxu0 0.0
        %2714 = vmatpush.msra.mxu0 %v1048
        %2715 = vmatmul.f32.gmra.mxu0 %v2697
        %v2716 = vpop.f32.mrf.mxu0
        %v2717 = vadd.f32 0.0, %v2716
        %2718 = vdwg.mxu0
        %v2720 = vsel %vm1860, %v2203, 0
        %2722 = vmatpush.msra.mxu0 0.0
        %2723 = vmatpush.msra.mxu0 0.0
        %2724 = vmatpush.msra.mxu0 0.0
        %2725 = vmatpush.msra.mxu0 0.0
        %2726 = vmatpush.msra.mxu0 0.0
        %2727 = vmatpush.msra.mxu0 0.0
        %2728 = vmatpush.msra.mxu0 0.0
        %2729 = vmatpush.msra.mxu0 0.0
        %2730 = vmatpush.msra.mxu0 0.0
        %2731 = vmatpush.msra.mxu0 0.0
        %2732 = vmatpush.msra.mxu0 0.0
        %2733 = vmatpush.msra.mxu0 0.0
        %2734 = vmatpush.msra.mxu0 0.0
        %2735 = vmatpush.msra.mxu0 0.0
        %2736 = vmatpush.msra.mxu0 0.0
        %2737 = vmatpush.msra.mxu0 %v1050
        %2738 = vmatmul.f32.gmra.mxu0 %v2720
        %v2739 = vpop.f32.mrf.mxu0
        %v2740 = vadd.f32 0.0, %v2739
        %2741 = vdwg.mxu0
        %v2743 = vsel %vm1860, %v2204, 0
        %2745 = vmatpush.msra.mxu0 0.0
        %2746 = vmatpush.msra.mxu0 0.0
        %2747 = vmatpush.msra.mxu0 0.0
        %2748 = vmatpush.msra.mxu0 0.0
        %2749 = vmatpush.msra.mxu0 0.0
        %2750 = vmatpush.msra.mxu0 0.0
        %2751 = vmatpush.msra.mxu0 0.0
        %2752 = vmatpush.msra.mxu0 0.0
        %2753 = vmatpush.msra.mxu0 0.0
        %2754 = vmatpush.msra.mxu0 0.0
        %2755 = vmatpush.msra.mxu0 0.0
        %2756 = vmatpush.msra.mxu0 0.0
        %2757 = vmatpush.msra.mxu0 0.0
        %2758 = vmatpush.msra.mxu0 0.0
        %2759 = vmatpush.msra.mxu0 0.0
        %2760 = vmatpush.msra.mxu0 %v1052
        %2761 = vmatmul.f32.gmra.mxu0 %v2743
        %v2762 = vpop.f32.mrf.mxu0
        %v2763 = vadd.f32 0.0, %v2762
        %2764 = vdwg.mxu0
        %v2766 = vsel %vm1860, %v2205, 0
        %2768 = vmatpush.msra.mxu0 0.0
        %2769 = vmatpush.msra.mxu0 0.0
        %2770 = vmatpush.msra.mxu0 0.0
        %2771 = vmatpush.msra.mxu0 0.0
        %2772 = vmatpush.msra.mxu0 0.0
        %2773 = vmatpush.msra.mxu0 0.0
        %2774 = vmatpush.msra.mxu0 0.0
        %2775 = vmatpush.msra.mxu0 0.0
        %2776 = vmatpush.msra.mxu0 0.0
        %2777 = vmatpush.msra.mxu0 0.0
        %2778 = vmatpush.msra.mxu0 0.0
        %2779 = vmatpush.msra.mxu0 0.0
        %2780 = vmatpush.msra.mxu0 0.0
        %2781 = vmatpush.msra.mxu0 0.0
        %2782 = vmatpush.msra.mxu0 0.0
        %2783 = vmatpush.msra.mxu0 %v1062
        %2784 = vmatmul.f32.gmra.mxu0 %v2766
        %v2785 = vpop.f32.mrf.mxu0
        %v2786 = vadd.f32 0.0, %v2785
        %2787 = vdwg.mxu0
        %v2789 = vsel %vm1860, %v2206, 0
        %2791 = vmatpush.msra.mxu0 0.0
        %2792 = vmatpush.msra.mxu0 0.0
        %2793 = vmatpush.msra.mxu0 0.0
        %2794 = vmatpush.msra.mxu0 0.0
        %2795 = vmatpush.msra.mxu0 0.0
        %2796 = vmatpush.msra.mxu0 0.0
        %2797 = vmatpush.msra.mxu0 0.0
        %2798 = vmatpush.msra.mxu0 0.0
        %2799 = vmatpush.msra.mxu0 0.0
        %2800 = vmatpush.msra.mxu0 0.0
        %2801 = vmatpush.msra.mxu0 0.0
        %2802 = vmatpush.msra.mxu0 0.0
        %2803 = vmatpush.msra.mxu0 0.0
        %2804 = vmatpush.msra.mxu0 0.0
        %2805 = vmatpush.msra.mxu0 0.0
        %2806 = vmatpush.msra.mxu0 %v1064
        %2807 = vmatmul.f32.gmra.mxu0 %v2789
        %v2808 = vpop.f32.mrf.mxu0
        %v2809 = vadd.f32 0.0, %v2808
        %2810 = vdwg.mxu0
        %v2812 = vsel %vm1860, %v2207, 0
        %2814 = vmatpush.msra.mxu0 0.0
        %2815 = vmatpush.msra.mxu0 0.0
        %2816 = vmatpush.msra.mxu0 0.0
        %2817 = vmatpush.msra.mxu0 0.0
        %2818 = vmatpush.msra.mxu0 0.0
        %2819 = vmatpush.msra.mxu0 0.0
        %2820 = vmatpush.msra.mxu0 0.0
        %2821 = vmatpush.msra.mxu0 0.0
        %2822 = vmatpush.msra.mxu0 0.0
        %2823 = vmatpush.msra.mxu0 0.0
        %2824 = vmatpush.msra.mxu0 0.0
        %2825 = vmatpush.msra.mxu0 0.0
        %2826 = vmatpush.msra.mxu0 0.0
        %2827 = vmatpush.msra.mxu0 0.0
        %2828 = vmatpush.msra.mxu0 0.0
        %2829 = vmatpush.msra.mxu0 %v1066
        %2830 = vmatmul.f32.gmra.mxu0 %v2812
        %v2831 = vpop.f32.mrf.mxu0
        %v2832 = vadd.f32 0.0, %v2831
        %2833 = vdwg.mxu0
        %v2835 = vsel %vm1860, %v2208, 0
        %2837 = vmatpush.msra.mxu0 0.0
        %2838 = vmatpush.msra.mxu0 0.0
        %2839 = vmatpush.msra.mxu0 0.0
        %2840 = vmatpush.msra.mxu0 0.0
        %2841 = vmatpush.msra.mxu0 0.0
        %2842 = vmatpush.msra.mxu0 0.0
        %2843 = vmatpush.msra.mxu0 0.0
        %2844 = vmatpush.msra.mxu0 0.0
        %2845 = vmatpush.msra.mxu0 0.0
        %2846 = vmatpush.msra.mxu0 0.0
        %2847 = vmatpush.msra.mxu0 0.0
        %2848 = vmatpush.msra.mxu0 0.0
        %2849 = vmatpush.msra.mxu0 0.0
        %2850 = vmatpush.msra.mxu0 0.0
        %2851 = vmatpush.msra.mxu0 0.0
        %2852 = vmatpush.msra.mxu0 %v1068
        %2853 = vmatmul.f32.gmra.mxu0 %v2835
        %v2854 = vpop.f32.mrf.mxu0
        %v2855 = vadd.f32 0.0, %v2854
        %2856 = vdwg.mxu0
        %v2858 = vsel %vm1860, %v2209, 0
        %2860 = vmatpush.msra.mxu0 0.0
        %2861 = vmatpush.msra.mxu0 0.0
        %2862 = vmatpush.msra.mxu0 0.0
        %2863 = vmatpush.msra.mxu0 0.0
        %2864 = vmatpush.msra.mxu0 0.0
        %2865 = vmatpush.msra.mxu0 0.0
        %2866 = vmatpush.msra.mxu0 0.0
        %2867 = vmatpush.msra.mxu0 0.0
        %2868 = vmatpush.msra.mxu0 0.0
        %2869 = vmatpush.msra.mxu0 0.0
        %2870 = vmatpush.msra.mxu0 0.0
        %2871 = vmatpush.msra.mxu0 0.0
        %2872 = vmatpush.msra.mxu0 0.0
        %2873 = vmatpush.msra.mxu0 0.0
        %2874 = vmatpush.msra.mxu0 0.0
        %2875 = vmatpush.msra.mxu0 %v1070
        %2876 = vmatmul.f32.gmra.mxu0 %v2858
        %v2877 = vpop.f32.mrf.mxu0
        %v2878 = vadd.f32 0.0, %v2877
        %2879 = vdwg.mxu0
        %v2881 = vsel %vm1860, %v2210, 0
        %2883 = vmatpush.msra.mxu0 0.0
        %2884 = vmatpush.msra.mxu0 0.0
        %2885 = vmatpush.msra.mxu0 0.0
        %2886 = vmatpush.msra.mxu0 0.0
        %2887 = vmatpush.msra.mxu0 0.0
        %2888 = vmatpush.msra.mxu0 0.0
        %2889 = vmatpush.msra.mxu0 0.0
        %2890 = vmatpush.msra.mxu0 0.0
        %2891 = vmatpush.msra.mxu0 0.0
        %2892 = vmatpush.msra.mxu0 0.0
        %2893 = vmatpush.msra.mxu0 0.0
        %2894 = vmatpush.msra.mxu0 0.0
        %2895 = vmatpush.msra.mxu0 0.0
        %2896 = vmatpush.msra.mxu0 0.0
        %2897 = vmatpush.msra.mxu0 0.0
        %2898 = vmatpush.msra.mxu0 %v1072
        %2899 = vmatmul.f32.gmra.mxu0 %v2881
        %v2900 = vpop.f32.mrf.mxu0
        %v2901 = vadd.f32 0.0, %v2900
        %2902 = vdwg.mxu0
        %v2904 = vsel %vm1860, %v2211, 0
        %2906 = vmatpush.msra.mxu0 0.0
        %2907 = vmatpush.msra.mxu0 0.0
        %2908 = vmatpush.msra.mxu0 0.0
        %2909 = vmatpush.msra.mxu0 0.0
        %2910 = vmatpush.msra.mxu0 0.0
        %2911 = vmatpush.msra.mxu0 0.0
        %2912 = vmatpush.msra.mxu0 0.0
        %2913 = vmatpush.msra.mxu0 0.0
        %2914 = vmatpush.msra.mxu0 0.0
        %2915 = vmatpush.msra.mxu0 0.0
        %2916 = vmatpush.msra.mxu0 0.0
        %2917 = vmatpush.msra.mxu0 0.0
        %2918 = vmatpush.msra.mxu0 0.0
        %2919 = vmatpush.msra.mxu0 0.0
        %2920 = vmatpush.msra.mxu0 0.0
        %2921 = vmatpush.msra.mxu0 %v1074
        %2922 = vmatmul.f32.gmra.mxu0 %v2904
        %v2923 = vpop.f32.mrf.mxu0
        %v2924 = vadd.f32 0.0, %v2923
        %2925 = vdwg.mxu0
        %v2927 = vsel %vm1860, %v2212, 0
        %2929 = vmatpush.msra.mxu0 0.0
        %2930 = vmatpush.msra.mxu0 0.0
        %2931 = vmatpush.msra.mxu0 0.0
        %2932 = vmatpush.msra.mxu0 0.0
        %2933 = vmatpush.msra.mxu0 0.0
        %2934 = vmatpush.msra.mxu0 0.0
        %2935 = vmatpush.msra.mxu0 0.0
        %2936 = vmatpush.msra.mxu0 0.0
        %2937 = vmatpush.msra.mxu0 0.0
        %2938 = vmatpush.msra.mxu0 0.0
        %2939 = vmatpush.msra.mxu0 0.0
        %2940 = vmatpush.msra.mxu0 0.0
        %2941 = vmatpush.msra.mxu0 0.0
        %2942 = vmatpush.msra.mxu0 0.0
        %2943 = vmatpush.msra.mxu0 0.0
        %2944 = vmatpush.msra.mxu0 %v1076
        %2945 = vmatmul.f32.gmra.mxu0 %v2927
        %v2946 = vpop.f32.mrf.mxu0
        %v2947 = vadd.f32 0.0, %v2946
        %2948 = vdwg.mxu0
        %2957 = vrot.lane.b32.xlu0 %v2418, 32
        %v2958 = vpop.permute.xlu0 %2957
        %2959 = vrot.lane.b32.xlu0 %v2441, 32
        %v2960 = vpop.permute.xlu0 %2959
        %2961 = vrot.lane.b32.xlu0 %v2464, 32
        %v2962 = vpop.permute.xlu0 %2961
        %2963 = vrot.lane.b32.xlu0 %v2487, 32
        %v2964 = vpop.permute.xlu0 %2963
        %2965 = vrot.lane.b32.xlu0 %v2510, 32
        %v2966 = vpop.permute.xlu0 %2965
        %2967 = vrot.lane.b32.xlu0 %v2533, 32
        %v2968 = vpop.permute.xlu0 %2967
        %2969 = vrot.lane.b32.xlu0 %v2556, 32
        %v2970 = vpop.permute.xlu0 %2969
        %2971 = vrot.lane.b32.xlu0 %v2579, 32
        %v2972 = vpop.permute.xlu0 %2971
        %2989 = vrot.lane.b32.xlu0 %v2602, 64
        %v2990 = vpop.permute.xlu0 %2989
        %2991 = vrot.lane.b32.xlu0 %v2625, 64
        %v2992 = vpop.permute.xlu0 %2991
        %2993 = vrot.lane.b32.xlu0 %v2648, 64
        %v2994 = vpop.permute.xlu0 %2993
        %2995 = vrot.lane.b32.xlu0 %v2671, 64
        %v2996 = vpop.permute.xlu0 %2995
        %2997 = vrot.lane.b32.xlu0 %v2694, 64
        %v2998 = vpop.permute.xlu0 %2997
        %2999 = vrot.lane.b32.xlu0 %v2717, 64
        %v3000 = vpop.permute.xlu0 %2999
        %3001 = vrot.lane.b32.xlu0 %v2740, 64
        %v3002 = vpop.permute.xlu0 %3001
        %3003 = vrot.lane.b32.xlu0 %v2763, 64
        %v3004 = vpop.permute.xlu0 %3003
        %3021 = vrot.lane.b32.xlu0 %v2786, 96
        %v3022 = vpop.permute.xlu0 %3021
        %3023 = vrot.lane.b32.xlu0 %v2809, 96
        %v3024 = vpop.permute.xlu0 %3023
        %3025 = vrot.lane.b32.xlu0 %v2832, 96
        %v3026 = vpop.permute.xlu0 %3025
        %3027 = vrot.lane.b32.xlu0 %v2855, 96
        %v3028 = vpop.permute.xlu0 %3027
        %3029 = vrot.lane.b32.xlu0 %v2878, 96
        %v3030 = vpop.permute.xlu0 %3029
        %3031 = vrot.lane.b32.xlu0 %v2901, 96
        %v3032 = vpop.permute.xlu0 %3031
        %3033 = vrot.lane.b32.xlu0 %v2924, 96
        %v3034 = vpop.permute.xlu0 %3033
        %3035 = vrot.lane.b32.xlu0 %v2947, 96
        %v3036 = vpop.permute.xlu0 %3035
        %v3045 = vsel %vm1091, %v2234, %v2958
        %v3046 = vsel %vm1091, %v2257, %v2960
        %v3047 = vsel %vm1091, %v2280, %v2962
        %v3048 = vsel %vm1091, %v2303, %v2964
        %v3049 = vsel %vm1091, %v2326, %v2966
        %v3050 = vsel %vm1091, %v2349, %v2968
        %v3051 = vsel %vm1091, %v2372, %v2970
        %v3052 = vsel %vm1091, %v2395, %v2972
        %vm3053 = vcmask 523264
        %v3054 = vsel %vm3053, %v3045, %v2990
        %v3055 = vsel %vm3053, %v3046, %v2992
        %v3056 = vsel %vm3053, %v3047, %v2994
        %v3057 = vsel %vm3053, %v3048, %v2996
        %v3058 = vsel %vm3053, %v3049, %v2998
        %v3059 = vsel %vm3053, %v3050, %v3000
        %v3060 = vsel %vm3053, %v3051, %v3002
        %v3061 = vsel %vm3053, %v3052, %v3004
        %vm3062 = vcmask 785408
        %v3063 = vsel %vm3062, %v3054, %v3022
        %v3064 = vsel %vm3062, %v3055, %v3024
        %v3065 = vsel %vm3062, %v3056, %v3026
        %v3066 = vsel %vm3062, %v3057, %v3028
        %v3067 = vsel %vm3062, %v3058, %v3030
        %v3068 = vsel %vm3062, %v3059, %v3032
        %v3069 = vsel %vm3062, %v3060, %v3034
        %v3070 = vsel %vm3062, %v3061, %v3036
        %v3071 = vpack.c.bf16 %v3064, %v3063
        %v3072 = vpack.c.bf16 %v3066, %v3065
        %v3073 = vpack.c.bf16 %v3068, %v3067
        %v3074 = vpack.c.bf16 %v3070, %v3069
        %s3075 = smul.u32 %s29, 16
        %s3076 = smul.addr %s3075, 4
        %s3077 = scalar_lea.vmem [#allocation8], %s3076
        %v3078 = vld [vmem:[%s3077] sm:$0xf]
        %v3079 = vld [vmem:[%s3077 + $0x4] sm:$0xf]
        %v3080 = vld [vmem:[%s3077 + $0x8] sm:$0xf]
        %v3081 = vld [vmem:[%s3077 + $0xc] sm:$0xf]
        %v3082 = vld [vmem:[%s3077 + $0x10] sm:$0xf]
        %v3083 = vld [vmem:[%s3077 + $0x14] sm:$0xf]
        %v3084 = vld [vmem:[%s3077 + $0x18] sm:$0xf]
        %v3085 = vld [vmem:[%s3077 + $0x1c] sm:$0xf]
        %v3086 = vld [vmem:[%s3077 + $0x20] sm:$0xf]
        %v3087 = vld [vmem:[%s3077 + $0x24] sm:$0xf]
        %v3088 = vld [vmem:[%s3077 + $0x28] sm:$0xf]
        %v3089 = vld [vmem:[%s3077 + $0x2c] sm:$0xf]
        %v3090 = vld [vmem:[%s3077 + $0x30] sm:$0xf]
        %v3091 = vld [vmem:[%s3077 + $0x34] sm:$0xf]
        %v3092 = vld [vmem:[%s3077 + $0x38] sm:$0xf]
        %v3093 = vld [vmem:[%s3077 + $0x3c] sm:$0xf]
        %v3110 = vunpack.c.l.b16 %v3078
        %v3111 = vunpack.c.l.b16 %v3079
        %v3112 = vunpack.c.l.b16 %v3080
        %v3113 = vunpack.c.l.b16 %v3081
        %v3114 = vunpack.c.l.b16 %v3082
        %v3115 = vunpack.c.l.b16 %v3083
        %v3116 = vunpack.c.l.b16 %v3084
        %v3117 = vunpack.c.l.b16 %v3085
        %v3118 = vunpack.c.l.b16 %v3086
        %v3119 = vunpack.c.l.b16 %v3087
        %v3120 = vunpack.c.l.b16 %v3088
        %v3121 = vunpack.c.l.b16 %v3089
        %v3122 = vunpack.c.l.b16 %v3090
        %v3123 = vunpack.c.l.b16 %v3091
        %v3124 = vunpack.c.l.b16 %v3092
        %v3125 = vunpack.c.l.b16 %v3093
        %v3126 = vpack.c.b16 %v3111, %v3110
        %v3127 = vpack.c.b16 %v3113, %v3112
        %v3128 = vpack.c.b16 %v3115, %v3114
        %v3129 = vpack.c.b16 %v3117, %v3116
        %v3130 = vpack.c.b16 %v3119, %v3118
        %v3131 = vpack.c.b16 %v3121, %v3120
        %v3132 = vpack.c.b16 %v3123, %v3122
        %v3133 = vpack.c.b16 %v3125, %v3124
        %3142 = vmatpush.bf16.msra.mxu0 %v3133
        %3143 = vmatpush.bf16.msra.mxu0 %v3132
        %3144 = vmatpush.bf16.msra.mxu0 %v3131
        %3145 = vmatpush.bf16.msra.mxu0 %v3130
        %3146 = vmatpush.bf16.msra.mxu0 %v3129
        %3147 = vmatpush.bf16.msra.mxu0 %v3128
        %3148 = vmatpush.bf16.msra.mxu0 %v3127
        %3149 = vmatpush.bf16.msra.mxu0 %v3126
        %3150 = vmatmul.bf16.gmra.mxu0 %v3071
        %v3151 = vpop.f32.mrf.mxu0
        %v3152 = vadd.f32 0.0, %v3151
        %v3153 = vpop.f32.mrf.mxu0
        %v3154 = vadd.f32 0.0, %v3153
        %3155 = vmatmul.bf16.gmra.mxu0 %v3072
        %v3156 = vpop.f32.mrf.mxu0
        %v3157 = vadd.f32 0.0, %v3156
        %v3158 = vpop.f32.mrf.mxu0
        %v3159 = vadd.f32 0.0, %v3158
        %3160 = vmatmul.bf16.gmra.mxu0 %v3073
        %v3161 = vpop.f32.mrf.mxu0
        %v3162 = vadd.f32 0.0, %v3161
        %v3163 = vpop.f32.mrf.mxu0
        %v3164 = vadd.f32 0.0, %v3163
        %3165 = vmatmul.bf16.gmra.mxu0 %v3074
        %v3166 = vpop.f32.mrf.mxu0
        %v3167 = vadd.f32 0.0, %v3166
        %v3168 = vpop.f32.mrf.mxu0
        %v3169 = vadd.f32 0.0, %v3168
        %3170 = vdwg.mxu0
        %v3171 = vadd.f32 %v435, %v3152
        %v3172 = vadd.f32 %v436, %v3154
        %v3173 = vadd.f32 %v437, %v3157
        %v3174 = vadd.f32 %v438, %v3159
        %v3175 = vadd.f32 %v439, %v3162
        %v3176 = vadd.f32 %v440, %v3164
        %v3177 = vadd.f32 %v441, %v3167
        %v3178 = vadd.f32 %v442, %v3169
        %3179 = vadd.xlane.f32.xlu0 %v3171
        %v3180 = vpop.xlane.xlu0 %3179
        %3181 = vadd.xlane.f32.xlu0 %v3172
        %v3182 = vpop.xlane.xlu0 %3181
        %3183 = vadd.xlane.f32.xlu0 %v3173
        %v3184 = vpop.xlane.xlu0 %3183
        %3185 = vadd.xlane.f32.xlu0 %v3174
        %v3186 = vpop.xlane.xlu0 %3185
        %3187 = vadd.xlane.f32.xlu0 %v3175
        %v3188 = vpop.xlane.xlu0 %3187
        %3189 = vadd.xlane.f32.xlu0 %v3176
        %v3190 = vpop.xlane.xlu0 %3189
        %3191 = vadd.xlane.f32.xlu0 %v3177
        %v3192 = vpop.xlane.xlu0 %3191
        %3193 = vadd.xlane.f32.xlu0 %v3178
        %v3194 = vpop.xlane.xlu0 %3193
        %v3195 = vmul.f32 %v3180, %v468
        %v3196 = vmul.f32 %v3182, %v468
        %v3197 = vmul.f32 %v3184, %v468
        %v3198 = vmul.f32 %v3186, %v468
        %v3199 = vmul.f32 %v3188, %v468
        %v3200 = vmul.f32 %v3190, %v468
        %v3201 = vmul.f32 %v3192, %v468
        %v3202 = vmul.f32 %v3194, %v468
        %v3203 = vsub.f32 %v3171, %v3195
        %v3204 = vsub.f32 %v3172, %v3196
        %v3205 = vsub.f32 %v3173, %v3197
        %v3206 = vsub.f32 %v3174, %v3198
        %v3207 = vsub.f32 %v3175, %v3199
        %v3208 = vsub.f32 %v3176, %v3200
        %v3209 = vsub.f32 %v3177, %v3201
        %v3210 = vsub.f32 %v3178, %v3202
        %v3211 = vmul.f32 %v3203, %v3203
        %v3212 = vmul.f32 %v3204, %v3204
        %v3213 = vmul.f32 %v3205, %v3205
        %v3214 = vmul.f32 %v3206, %v3206
        %v3215 = vmul.f32 %v3207, %v3207
        %v3216 = vmul.f32 %v3208, %v3208
        %v3217 = vmul.f32 %v3209, %v3209
        %v3218 = vmul.f32 %v3210, %v3210
        %3219 = vadd.xlane.f32.xlu0 %v3211
        %v3220 = vpop.xlane.xlu0 %3219
        %3221 = vadd.xlane.f32.xlu0 %v3212
        %v3222 = vpop.xlane.xlu0 %3221
        %3223 = vadd.xlane.f32.xlu0 %v3213
        %v3224 = vpop.xlane.xlu0 %3223
        %3225 = vadd.xlane.f32.xlu0 %v3214
        %v3226 = vpop.xlane.xlu0 %3225
        %3227 = vadd.xlane.f32.xlu0 %v3215
        %v3228 = vpop.xlane.xlu0 %3227
        %3229 = vadd.xlane.f32.xlu0 %v3216
        %v3230 = vpop.xlane.xlu0 %3229
        %3231 = vadd.xlane.f32.xlu0 %v3217
        %v3232 = vpop.xlane.xlu0 %3231
        %3233 = vadd.xlane.f32.xlu0 %v3218
        %v3234 = vpop.xlane.xlu0 %3233
        %v3235 = vmul.f32 %v3220, %v468
        %v3236 = vmul.f32 %v3222, %v468
        %v3237 = vmul.f32 %v3224, %v468
        %v3238 = vmul.f32 %v3226, %v468
        %v3239 = vmul.f32 %v3228, %v468
        %v3240 = vmul.f32 %v3230, %v468
        %v3241 = vmul.f32 %v3232, %v468
        %v3242 = vmul.f32 %v3234, %v468
        %v3243 = vadd.f32 %v3235, 1e-05
        %v3244 = vadd.f32 %v3236, 1e-05
        %v3245 = vadd.f32 %v3237, 1e-05
        %v3246 = vadd.f32 %v3238, 1e-05
        %v3247 = vadd.f32 %v3239, 1e-05
        %v3248 = vadd.f32 %v3240, 1e-05
        %v3249 = vadd.f32 %v3241, 1e-05
        %v3250 = vadd.f32 %v3242, 1e-05
        %v3251 = vrsqrt.pop %v3243
        %v3252 = vmul.f32 %v3251, %v3243
        %v3253 = vmul.f32 %v3252, %v3251
        %v3254 = vmul.f32 0.5, %v3253
        %v3255 = vsub.f32 1.5, %v3254
        %v3256 = vmul.f32 %v3251, %v3255
        %vm3257 = vweird.f32 %v3243
        %vm3258 = vweird.f32 %v3251
        %vm3259 = vmor %vm3257, %vm3258
        %v3260 = vsel %vm3259, %v3251, %v3256
        %v3261 = vrsqrt.pop %v3244
        %v3262 = vmul.f32 %v3261, %v3244
        %v3263 = vmul.f32 %v3262, %v3261
        %v3264 = vmul.f32 0.5, %v3263
        %v3265 = vsub.f32 1.5, %v3264
        %v3266 = vmul.f32 %v3261, %v3265
        %vm3267 = vweird.f32 %v3244
        %vm3268 = vweird.f32 %v3261
        %vm3269 = vmor %vm3267, %vm3268
        %v3270 = vsel %vm3269, %v3261, %v3266
        %v3271 = vrsqrt.pop %v3245
        %v3272 = vmul.f32 %v3271, %v3245
        %v3273 = vmul.f32 %v3272, %v3271
        %v3274 = vmul.f32 0.5, %v3273
        %v3275 = vsub.f32 1.5, %v3274
        %v3276 = vmul.f32 %v3271, %v3275
        %vm3277 = vweird.f32 %v3245
        %vm3278 = vweird.f32 %v3271
        %vm3279 = vmor %vm3277, %vm3278
        %v3280 = vsel %vm3279, %v3271, %v3276
        %v3281 = vrsqrt.pop %v3246
        %v3282 = vmul.f32 %v3281, %v3246
        %v3283 = vmul.f32 %v3282, %v3281
        %v3284 = vmul.f32 0.5, %v3283
        %v3285 = vsub.f32 1.5, %v3284
        %v3286 = vmul.f32 %v3281, %v3285
        %vm3287 = vweird.f32 %v3246
        %vm3288 = vweird.f32 %v3281
        %vm3289 = vmor %vm3287, %vm3288
        %v3290 = vsel %vm3289, %v3281, %v3286
        %v3291 = vrsqrt.pop %v3247
        %v3292 = vmul.f32 %v3291, %v3247
        %v3293 = vmul.f32 %v3292, %v3291
        %v3294 = vmul.f32 0.5, %v3293
        %v3295 = vsub.f32 1.5, %v3294
        %v3296 = vmul.f32 %v3291, %v3295
        %vm3297 = vweird.f32 %v3247
        %vm3298 = vweird.f32 %v3291
        %vm3299 = vmor %vm3297, %vm3298
        %v3300 = vsel %vm3299, %v3291, %v3296
        %v3301 = vrsqrt.pop %v3248
        %v3302 = vmul.f32 %v3301, %v3248
        %v3303 = vmul.f32 %v3302, %v3301
        %v3304 = vmul.f32 0.5, %v3303
        %v3305 = vsub.f32 1.5, %v3304
        %v3306 = vmul.f32 %v3301, %v3305
        %vm3307 = vweird.f32 %v3248
        %vm3308 = vweird.f32 %v3301
        %vm3309 = vmor %vm3307, %vm3308
        %v3310 = vsel %vm3309, %v3301, %v3306
        %v3311 = vrsqrt.pop %v3249
        %v3312 = vmul.f32 %v3311, %v3249
        %v3313 = vmul.f32 %v3312, %v3311
        %v3314 = vmul.f32 0.5, %v3313
        %v3315 = vsub.f32 1.5, %v3314
        %v3316 = vmul.f32 %v3311, %v3315
        %vm3317 = vweird.f32 %v3249
        %vm3318 = vweird.f32 %v3311
        %vm3319 = vmor %vm3317, %vm3318
        %v3320 = vsel %vm3319, %v3311, %v3316
        %v3321 = vrsqrt.pop %v3250
        %v3322 = vmul.f32 %v3321, %v3250
        %v3323 = vmul.f32 %v3322, %v3321
        %v3324 = vmul.f32 0.5, %v3323
        %v3325 = vsub.f32 1.5, %v3324
        %v3326 = vmul.f32 %v3321, %v3325
        %vm3327 = vweird.f32 %v3250
        %vm3328 = vweird.f32 %v3321
        %vm3329 = vmor %vm3327, %vm3328
        %v3330 = vsel %vm3329, %v3321, %v3326
        %v3331 = vmul.f32 %v3203, %v3260
        %v3332 = vmul.f32 %v3204, %v3270
        %v3333 = vmul.f32 %v3205, %v3280
        %v3334 = vmul.f32 %v3206, %v3290
        %v3335 = vmul.f32 %v3207, %v3300
        %v3336 = vmul.f32 %v3208, %v3310
        %v3337 = vmul.f32 %v3209, %v3320
        %v3338 = vmul.f32 %v3210, %v3330
        %v3339 = vperm.slane %v445, 2
        %v3340 = vmul.f32 %v3331, %v3339
        %v3341 = vmul.f32 %v3332, %v3339
        %v3342 = vmul.f32 %v3333, %v3339
        %v3343 = vmul.f32 %v3334, %v3339
        %v3344 = vmul.f32 %v3335, %v3339
        %v3345 = vmul.f32 %v3336, %v3339
        %v3346 = vmul.f32 %v3337, %v3339
        %v3347 = vmul.f32 %v3338, %v3339
        %v3348 = vperm.slane %v445, 3
        %v3349 = vadd.f32 %v3340, %v3348
        %v3350 = vadd.f32 %v3341, %v3348
        %v3351 = vadd.f32 %v3342, %v3348
        %v3352 = vadd.f32 %v3343, %v3348
        %v3353 = vadd.f32 %v3344, %v3348
        %v3354 = vadd.f32 %v3345, %v3348
        %v3355 = vadd.f32 %v3346, %v3348
        %v3356 = vadd.f32 %v3347, %v3348
        %v3357 = vpack.c.bf16 %v3350, %v3349
        %v3358 = vpack.c.bf16 %v3352, %v3351
        %v3359 = vpack.c.bf16 %v3354, %v3353
        %v3360 = vpack.c.bf16 %v3356, %v3355
        %s3361 = smul.u32 %s29, 64
        %s3362 = smul.addr %s3361, 4
        %s3363 = scalar_lea.vmem [#allocation9], %s3362
        %v3364 = vld [vmem:[%s3363] sm:$0xff]
        %v3365 = vld [vmem:[%s3363 + $0x8] sm:$0xff]
        %v3366 = vld [vmem:[%s3363 + $0x10] sm:$0xff]
        %v3367 = vld [vmem:[%s3363 + $0x18] sm:$0xff]
        %v3368 = vld [vmem:[%s3363 + $0x20] sm:$0xff]
        %v3369 = vld [vmem:[%s3363 + $0x28] sm:$0xff]
        %v3370 = vld [vmem:[%s3363 + $0x30] sm:$0xff]
        %v3371 = vld [vmem:[%s3363 + $0x38] sm:$0xff]
        %v3372 = vld [vmem:[%s3363 + $0x40] sm:$0xff]
        %v3373 = vld [vmem:[%s3363 + $0x48] sm:$0xff]
        %v3374 = vld [vmem:[%s3363 + $0x50] sm:$0xff]
        %v3375 = vld [vmem:[%s3363 + $0x58] sm:$0xff]
        %v3376 = vld [vmem:[%s3363 + $0x60] sm:$0xff]
        %v3377 = vld [vmem:[%s3363 + $0x68] sm:$0xff]
        %v3378 = vld [vmem:[%s3363 + $0x70] sm:$0xff]
        %v3379 = vld [vmem:[%s3363 + $0x78] sm:$0xff]
        %v3380 = vld [vmem:[%s3363 + $0x80] sm:$0xff]
        %v3381 = vld [vmem:[%s3363 + $0x88] sm:$0xff]
        %v3382 = vld [vmem:[%s3363 + $0x90] sm:$0xff]
        %v3383 = vld [vmem:[%s3363 + $0x98] sm:$0xff]
        %v3384 = vld [vmem:[%s3363 + $0xa0] sm:$0xff]
        %v3385 = vld [vmem:[%s3363 + $0xa8] sm:$0xff]
        %v3386 = vld [vmem:[%s3363 + $0xb0] sm:$0xff]
        %v3387 = vld [vmem:[%s3363 + $0xb8] sm:$0xff]
        %v3388 = vld [vmem:[%s3363 + $0xc0] sm:$0xff]
        %v3389 = vld [vmem:[%s3363 + $0xc8] sm:$0xff]
        %v3390 = vld [vmem:[%s3363 + $0xd0] sm:$0xff]
        %v3391 = vld [vmem:[%s3363 + $0xd8] sm:$0xff]
        %v3392 = vld [vmem:[%s3363 + $0xe0] sm:$0xff]
        %v3393 = vld [vmem:[%s3363 + $0xe8] sm:$0xff]
        %v3394 = vld [vmem:[%s3363 + $0xf0] sm:$0xff]
        %v3395 = vld [vmem:[%s3363 + $0xf8] sm:$0xff]
        %v3428 = vunpack.c.l.b16 %v3364
        %v3429 = vunpack.c.h.b16 %v3364
        %v3430 = vunpack.c.l.b16 %v3365
        %v3431 = vunpack.c.h.b16 %v3365
        %v3432 = vunpack.c.l.b16 %v3366
        %v3433 = vunpack.c.h.b16 %v3366
        %v3434 = vunpack.c.l.b16 %v3367
        %v3435 = vunpack.c.h.b16 %v3367
        %v3436 = vunpack.c.l.b16 %v3368
        %v3437 = vunpack.c.h.b16 %v3368
        %v3438 = vunpack.c.l.b16 %v3369
        %v3439 = vunpack.c.h.b16 %v3369
        %v3440 = vunpack.c.l.b16 %v3370
        %v3441 = vunpack.c.h.b16 %v3370
        %v3442 = vunpack.c.l.b16 %v3371
        %v3443 = vunpack.c.h.b16 %v3371
        %v3444 = vunpack.c.l.b16 %v3372
        %v3445 = vunpack.c.h.b16 %v3372
        %v3446 = vunpack.c.l.b16 %v3373
        %v3447 = vunpack.c.h.b16 %v3373
        %v3448 = vunpack.c.l.b16 %v3374
        %v3449 = vunpack.c.h.b16 %v3374
        %v3450 = vunpack.c.l.b16 %v3375
        %v3451 = vunpack.c.h.b16 %v3375
        %v3452 = vunpack.c.l.b16 %v3376
        %v3453 = vunpack.c.h.b16 %v3376
        %v3454 = vunpack.c.l.b16 %v3377
        %v3455 = vunpack.c.h.b16 %v3377
        %v3456 = vunpack.c.l.b16 %v3378
        %v3457 = vunpack.c.h.b16 %v3378
        %v3458 = vunpack.c.l.b16 %v3379
        %v3459 = vunpack.c.h.b16 %v3379
        %v3460 = vunpack.c.l.b16 %v3380
        %v3461 = vunpack.c.h.b16 %v3380
        %v3462 = vunpack.c.l.b16 %v3381
        %v3463 = vunpack.c.h.b16 %v3381
        %v3464 = vunpack.c.l.b16 %v3382
        %v3465 = vunpack.c.h.b16 %v3382
        %v3466 = vunpack.c.l.b16 %v3383
        %v3467 = vunpack.c.h.b16 %v3383
        %v3468 = vunpack.c.l.b16 %v3384
        %v3469 = vunpack.c.h.b16 %v3384
        %v3470 = vunpack.c.l.b16 %v3385
        %v3471 = vunpack.c.h.b16 %v3385
        %v3472 = vunpack.c.l.b16 %v3386
        %v3473 = vunpack.c.h.b16 %v3386
        %v3474 = vunpack.c.l.b16 %v3387
        %v3475 = vunpack.c.h.b16 %v3387
        %v3476 = vunpack.c.l.b16 %v3388
        %v3477 = vunpack.c.h.b16 %v3388
        %v3478 = vunpack.c.l.b16 %v3389
        %v3479 = vunpack.c.h.b16 %v3389
        %v3480 = vunpack.c.l.b16 %v3390
        %v3481 = vunpack.c.h.b16 %v3390
        %v3482 = vunpack.c.l.b16 %v3391
        %v3483 = vunpack.c.h.b16 %v3391
        %v3484 = vunpack.c.l.b16 %v3392
        %v3485 = vunpack.c.h.b16 %v3392
        %v3486 = vunpack.c.l.b16 %v3393
        %v3487 = vunpack.c.h.b16 %v3393
        %v3488 = vunpack.c.l.b16 %v3394
        %v3489 = vunpack.c.h.b16 %v3394
        %v3490 = vunpack.c.l.b16 %v3395
        %v3491 = vunpack.c.h.b16 %v3395
        %v3492 = vpack.c.b16 %v3432, %v3428
        %v3493 = vpack.c.b16 %v3433, %v3429
        %v3494 = vpack.c.b16 %v3434, %v3430
        %v3495 = vpack.c.b16 %v3435, %v3431
        %v3496 = vpack.c.b16 %v3440, %v3436
        %v3497 = vpack.c.b16 %v3441, %v3437
        %v3498 = vpack.c.b16 %v3442, %v3438
        %v3499 = vpack.c.b16 %v3443, %v3439
        %v3500 = vpack.c.b16 %v3448, %v3444
        %v3501 = vpack.c.b16 %v3449, %v3445
        %v3502 = vpack.c.b16 %v3450, %v3446
        %v3503 = vpack.c.b16 %v3451, %v3447
        %v3504 = vpack.c.b16 %v3456, %v3452
        %v3505 = vpack.c.b16 %v3457, %v3453
        %v3506 = vpack.c.b16 %v3458, %v3454
        %v3507 = vpack.c.b16 %v3459, %v3455
        %v3508 = vpack.c.b16 %v3464, %v3460
        %v3509 = vpack.c.b16 %v3465, %v3461
        %v3510 = vpack.c.b16 %v3466, %v3462
        %v3511 = vpack.c.b16 %v3467, %v3463
        %v3512 = vpack.c.b16 %v3472, %v3468
        %v3513 = vpack.c.b16 %v3473, %v3469
        %v3514 = vpack.c.b16 %v3474, %v3470
        %v3515 = vpack.c.b16 %v3475, %v3471
        %v3516 = vpack.c.b16 %v3480, %v3476
        %v3517 = vpack.c.b16 %v3481, %v3477
        %v3518 = vpack.c.b16 %v3482, %v3478
        %v3519 = vpack.c.b16 %v3483, %v3479
        %v3520 = vpack.c.b16 %v3488, %v3484
        %v3521 = vpack.c.b16 %v3489, %v3485
        %v3522 = vpack.c.b16 %v3490, %v3486
        %v3523 = vpack.c.b16 %v3491, %v3487
        %3556 = vmatpush.bf16.msra.mxu0 %v3520
        %3557 = vmatpush.bf16.msra.mxu0 %v3516
        %3558 = vmatpush.bf16.msra.mxu0 %v3512
        %3559 = vmatpush.bf16.msra.mxu0 %v3508
        %3560 = vmatpush.bf16.msra.mxu0 %v3504
        %3561 = vmatpush.bf16.msra.mxu0 %v3500
        %3562 = vmatpush.bf16.msra.mxu0 %v3496
        %3563 = vmatpush.bf16.msra.mxu0 %v3492
        %3564 = vmatmul.bf16.gmra.mxu0 %v3357
        %v3565 = vpop.f32.mrf.mxu0
        %v3566 = vadd.f32 0.0, %v3565
        %v3567 = vpop.f32.mrf.mxu0
        %v3568 = vadd.f32 0.0, %v3567
        %3569 = vmatmul.bf16.gmra.mxu0 %v3358
        %v3570 = vpop.f32.mrf.mxu0
        %v3571 = vadd.f32 0.0, %v3570
        %v3572 = vpop.f32.mrf.mxu0
        %v3573 = vadd.f32 0.0, %v3572
        %3574 = vmatmul.bf16.gmra.mxu0 %v3359
        %v3575 = vpop.f32.mrf.mxu0
        %v3576 = vadd.f32 0.0, %v3575
        %v3577 = vpop.f32.mrf.mxu0
        %v3578 = vadd.f32 0.0, %v3577
        %3579 = vmatmul.bf16.gmra.mxu0 %v3360
        %v3580 = vpop.f32.mrf.mxu0
        %v3581 = vadd.f32 0.0, %v3580
        %v3582 = vpop.f32.mrf.mxu0
        %v3583 = vadd.f32 0.0, %v3582
        %3584 = vdwg.mxu0
        %3585 = vmatpush.bf16.msra.mxu0 %v3521
        %3586 = vmatpush.bf16.msra.mxu0 %v3517
        %3587 = vmatpush.bf16.msra.mxu0 %v3513
        %3588 = vmatpush.bf16.msra.mxu0 %v3509
        %3589 = vmatpush.bf16.msra.mxu0 %v3505
        %3590 = vmatpush.bf16.msra.mxu0 %v3501
        %3591 = vmatpush.bf16.msra.mxu0 %v3497
        %3592 = vmatpush.bf16.msra.mxu0 %v3493
        %3593 = vmatmul.bf16.gmra.mxu0 %v3357
        %v3594 = vpop.f32.mrf.mxu0
        %v3595 = vadd.f32 0.0, %v3594
        %v3596 = vpop.f32.mrf.mxu0
        %v3597 = vadd.f32 0.0, %v3596
        %3598 = vmatmul.bf16.gmra.mxu0 %v3358
        %v3599 = vpop.f32.mrf.mxu0
        %v3600 = vadd.f32 0.0, %v3599
        %v3601 = vpop.f32.mrf.mxu0
        %v3602 = vadd.f32 0.0, %v3601
        %3603 = vmatmul.bf16.gmra.mxu0 %v3359
        %v3604 = vpop.f32.mrf.mxu0
        %v3605 = vadd.f32 0.0, %v3604
        %v3606 = vpop.f32.mrf.mxu0
        %v3607 = vadd.f32 0.0, %v3606
        %3608 = vmatmul.bf16.gmra.mxu0 %v3360
        %v3609 = vpop.f32.mrf.mxu0
        %v3610 = vadd.f32 0.0, %v3609
        %v3611 = vpop.f32.mrf.mxu0
        %v3612 = vadd.f32 0.0, %v3611
        %3613 = vdwg.mxu0
        %3614 = vmatpush.bf16.msra.mxu0 %v3522
        %3615 = vmatpush.bf16.msra.mxu0 %v3518
        %3616 = vmatpush.bf16.msra.mxu0 %v3514
        %3617 = vmatpush.bf16.msra.mxu0 %v3510
        %3618 = vmatpush.bf16.msra.mxu0 %v3506
        %3619 = vmatpush.bf16.msra.mxu0 %v3502
        %3620 = vmatpush.bf16.msra.mxu0 %v3498
        %3621 = vmatpush.bf16.msra.mxu0 %v3494
        %3622 = vmatmul.bf16.gmra.mxu0 %v3357
        %v3623 = vpop.f32.mrf.mxu0
        %v3624 = vadd.f32 0.0, %v3623
        %v3625 = vpop.f32.mrf.mxu0
        %v3626 = vadd.f32 0.0, %v3625
        %3627 = vmatmul.bf16.gmra.mxu0 %v3358
        %v3628 = vpop.f32.mrf.mxu0
        %v3629 = vadd.f32 0.0, %v3628
        %v3630 = vpop.f32.mrf.mxu0
        %v3631 = vadd.f32 0.0, %v3630
        %3632 = vmatmul.bf16.gmra.mxu0 %v3359
        %v3633 = vpop.f32.mrf.mxu0
        %v3634 = vadd.f32 0.0, %v3633
        %v3635 = vpop.f32.mrf.mxu0
        %v3636 = vadd.f32 0.0, %v3635
        %3637 = vmatmul.bf16.gmra.mxu0 %v3360
        %v3638 = vpop.f32.mrf.mxu0
        %v3639 = vadd.f32 0.0, %v3638
        %v3640 = vpop.f32.mrf.mxu0
        %v3641 = vadd.f32 0.0, %v3640
        %3642 = vdwg.mxu0
        %3643 = vmatpush.bf16.msra.mxu0 %v3523
        %3644 = vmatpush.bf16.msra.mxu0 %v3519
        %3645 = vmatpush.bf16.msra.mxu0 %v3515
        %3646 = vmatpush.bf16.msra.mxu0 %v3511
        %3647 = vmatpush.bf16.msra.mxu0 %v3507
        %3648 = vmatpush.bf16.msra.mxu0 %v3503
        %3649 = vmatpush.bf16.msra.mxu0 %v3499
        %3650 = vmatpush.bf16.msra.mxu0 %v3495
        %3651 = vmatmul.bf16.gmra.mxu0 %v3357
        %v3652 = vpop.f32.mrf.mxu0
        %v3653 = vadd.f32 0.0, %v3652
        %v3654 = vpop.f32.mrf.mxu0
        %v3655 = vadd.f32 0.0, %v3654
        %3656 = vmatmul.bf16.gmra.mxu0 %v3358
        %v3657 = vpop.f32.mrf.mxu0
        %v3658 = vadd.f32 0.0, %v3657
        %v3659 = vpop.f32.mrf.mxu0
        %v3660 = vadd.f32 0.0, %v3659
        %3661 = vmatmul.bf16.gmra.mxu0 %v3359
        %v3662 = vpop.f32.mrf.mxu0
        %v3663 = vadd.f32 0.0, %v3662
        %v3664 = vpop.f32.mrf.mxu0
        %v3665 = vadd.f32 0.0, %v3664
        %3666 = vmatmul.bf16.gmra.mxu0 %v3360
        %v3667 = vpop.f32.mrf.mxu0
        %v3668 = vadd.f32 0.0, %v3667
        %v3669 = vpop.f32.mrf.mxu0
        %v3670 = vadd.f32 0.0, %v3669
        %3671 = vdwg.mxu0
        %v3672 = vmul.f32 %v3566, 0.5
        %v3673 = vmul.f32 %v3595, 0.5
        %v3674 = vmul.f32 %v3624, 0.5
        %v3675 = vmul.f32 %v3653, 0.5
        %v3676 = vmul.f32 %v3568, 0.5
        %v3677 = vmul.f32 %v3597, 0.5
        %v3678 = vmul.f32 %v3626, 0.5
        %v3679 = vmul.f32 %v3655, 0.5
        %v3680 = vmul.f32 %v3571, 0.5
        %v3681 = vmul.f32 %v3600, 0.5
        %v3682 = vmul.f32 %v3629, 0.5
        %v3683 = vmul.f32 %v3658, 0.5
        %v3684 = vmul.f32 %v3573, 0.5
        %v3685 = vmul.f32 %v3602, 0.5
        %v3686 = vmul.f32 %v3631, 0.5
        %v3687 = vmul.f32 %v3660, 0.5
        %v3688 = vmul.f32 %v3576, 0.5
        %v3689 = vmul.f32 %v3605, 0.5
        %v3690 = vmul.f32 %v3634, 0.5
        %v3691 = vmul.f32 %v3663, 0.5
        %v3692 = vmul.f32 %v3578, 0.5
        %v3693 = vmul.f32 %v3607, 0.5
        %v3694 = vmul.f32 %v3636, 0.5
        %v3695 = vmul.f32 %v3665, 0.5
        %v3696 = vmul.f32 %v3581, 0.5
        %v3697 = vmul.f32 %v3610, 0.5
        %v3698 = vmul.f32 %v3639, 0.5
        %v3699 = vmul.f32 %v3668, 0.5
        %v3700 = vmul.f32 %v3583, 0.5
        %v3701 = vmul.f32 %v3612, 0.5
        %v3702 = vmul.f32 %v3641, 0.5
        %v3703 = vmul.f32 %v3670, 0.5
        %v3704 = vmul.f32 %v3566, 0.044715
        %v3705 = vmul.f32 %v3595, 0.044715
        %v3706 = vmul.f32 %v3624, 0.044715
        %v3707 = vmul.f32 %v3653, 0.044715
        %v3708 = vmul.f32 %v3568, 0.044715
        %v3709 = vmul.f32 %v3597, 0.044715
        %v3710 = vmul.f32 %v3626, 0.044715
        %v3711 = vmul.f32 %v3655, 0.044715
        %v3712 = vmul.f32 %v3571, 0.044715
        %v3713 = vmul.f32 %v3600, 0.044715
        %v3714 = vmul.f32 %v3629, 0.044715
        %v3715 = vmul.f32 %v3658, 0.044715
        %v3716 = vmul.f32 %v3573, 0.044715
        %v3717 = vmul.f32 %v3602, 0.044715
        %v3718 = vmul.f32 %v3631, 0.044715
        %v3719 = vmul.f32 %v3660, 0.044715
        %v3720 = vmul.f32 %v3576, 0.044715
        %v3721 = vmul.f32 %v3605, 0.044715
        %v3722 = vmul.f32 %v3634, 0.044715
        %v3723 = vmul.f32 %v3663, 0.044715
        %v3724 = vmul.f32 %v3578, 0.044715
        %v3725 = vmul.f32 %v3607, 0.044715
        %v3726 = vmul.f32 %v3636, 0.044715
        %v3727 = vmul.f32 %v3665, 0.044715
        %v3728 = vmul.f32 %v3581, 0.044715
        %v3729 = vmul.f32 %v3610, 0.044715
        %v3730 = vmul.f32 %v3639, 0.044715
        %v3731 = vmul.f32 %v3668, 0.044715
        %v3732 = vmul.f32 %v3583, 0.044715
        %v3733 = vmul.f32 %v3612, 0.044715
        %v3734 = vmul.f32 %v3641, 0.044715
        %v3735 = vmul.f32 %v3670, 0.044715
        %v3736 = vmul.f32 %v3704, %v3566
        %v3737 = vmul.f32 %v3705, %v3595
        %v3738 = vmul.f32 %v3706, %v3624
        %v3739 = vmul.f32 %v3707, %v3653
        %v3740 = vmul.f32 %v3708, %v3568
        %v3741 = vmul.f32 %v3709, %v3597
        %v3742 = vmul.f32 %v3710, %v3626
        %v3743 = vmul.f32 %v3711, %v3655
        %v3744 = vmul.f32 %v3712, %v3571
        %v3745 = vmul.f32 %v3713, %v3600
        %v3746 = vmul.f32 %v3714, %v3629
        %v3747 = vmul.f32 %v3715, %v3658
        %v3748 = vmul.f32 %v3716, %v3573
        %v3749 = vmul.f32 %v3717, %v3602
        %v3750 = vmul.f32 %v3718, %v3631
        %v3751 = vmul.f32 %v3719, %v3660
        %v3752 = vmul.f32 %v3720, %v3576
        %v3753 = vmul.f32 %v3721, %v3605
        %v3754 = vmul.f32 %v3722, %v3634
        %v3755 = vmul.f32 %v3723, %v3663
        %v3756 = vmul.f32 %v3724, %v3578
        %v3757 = vmul.f32 %v3725, %v3607
        %v3758 = vmul.f32 %v3726, %v3636
        %v3759 = vmul.f32 %v3727, %v3665
        %v3760 = vmul.f32 %v3728, %v3581
        %v3761 = vmul.f32 %v3729, %v3610
        %v3762 = vmul.f32 %v3730, %v3639
        %v3763 = vmul.f32 %v3731, %v3668
        %v3764 = vmul.f32 %v3732, %v3583
        %v3765 = vmul.f32 %v3733, %v3612
        %v3766 = vmul.f32 %v3734, %v3641
        %v3767 = vmul.f32 %v3735, %v3670
        %v3768 = vmul.f32 %v3736, %v3566
        %v3769 = vmul.f32 %v3737, %v3595
        %v3770 = vmul.f32 %v3738, %v3624
        %v3771 = vmul.f32 %v3739, %v3653
        %v3772 = vmul.f32 %v3740, %v3568
        %v3773 = vmul.f32 %v3741, %v3597
        %v3774 = vmul.f32 %v3742, %v3626
        %v3775 = vmul.f32 %v3743, %v3655
        %v3776 = vmul.f32 %v3744, %v3571
        %v3777 = vmul.f32 %v3745, %v3600
        %v3778 = vmul.f32 %v3746, %v3629
        %v3779 = vmul.f32 %v3747, %v3658
        %v3780 = vmul.f32 %v3748, %v3573
        %v3781 = vmul.f32 %v3749, %v3602
        %v3782 = vmul.f32 %v3750, %v3631
        %v3783 = vmul.f32 %v3751, %v3660
        %v3784 = vmul.f32 %v3752, %v3576
        %v3785 = vmul.f32 %v3753, %v3605
        %v3786 = vmul.f32 %v3754, %v3634
        %v3787 = vmul.f32 %v3755, %v3663
        %v3788 = vmul.f32 %v3756, %v3578
        %v3789 = vmul.f32 %v3757, %v3607
        %v3790 = vmul.f32 %v3758, %v3636
        %v3791 = vmul.f32 %v3759, %v3665
        %v3792 = vmul.f32 %v3760, %v3581
        %v3793 = vmul.f32 %v3761, %v3610
        %v3794 = vmul.f32 %v3762, %v3639
        %v3795 = vmul.f32 %v3763, %v3668
        %v3796 = vmul.f32 %v3764, %v3583
        %v3797 = vmul.f32 %v3765, %v3612
        %v3798 = vmul.f32 %v3766, %v3641
        %v3799 = vmul.f32 %v3767, %v3670
        %v3800 = vadd.f32 %v3566, %v3768
        %v3801 = vadd.f32 %v3595, %v3769
        %v3802 = vadd.f32 %v3624, %v3770
        %v3803 = vadd.f32 %v3653, %v3771
        %v3804 = vadd.f32 %v3568, %v3772
        %v3805 = vadd.f32 %v3597, %v3773
        %v3806 = vadd.f32 %v3626, %v3774
        %v3807 = vadd.f32 %v3655, %v3775
        %v3808 = vadd.f32 %v3571, %v3776
        %v3809 = vadd.f32 %v3600, %v3777
        %v3810 = vadd.f32 %v3629, %v3778
        %v3811 = vadd.f32 %v3658, %v3779
        %v3812 = vadd.f32 %v3573, %v3780
        %v3813 = vadd.f32 %v3602, %v3781
        %v3814 = vadd.f32 %v3631, %v3782
        %v3815 = vadd.f32 %v3660, %v3783
        %v3816 = vadd.f32 %v3576, %v3784
        %v3817 = vadd.f32 %v3605, %v3785
        %v3818 = vadd.f32 %v3634, %v3786
        %v3819 = vadd.f32 %v3663, %v3787
        %v3820 = vadd.f32 %v3578, %v3788
        %v3821 = vadd.f32 %v3607, %v3789
        %v3822 = vadd.f32 %v3636, %v3790
        %v3823 = vadd.f32 %v3665, %v3791
        %v3824 = vadd.f32 %v3581, %v3792
        %v3825 = vadd.f32 %v3610, %v3793
        %v3826 = vadd.f32 %v3639, %v3794
        %v3827 = vadd.f32 %v3668, %v3795
        %v3828 = vadd.f32 %v3583, %v3796
        %v3829 = vadd.f32 %v3612, %v3797
        %v3830 = vadd.f32 %v3641, %v3798
        %v3831 = vadd.f32 %v3670, %v3799
        %v3832 = vmul.f32 %v3800, 0.7978846
        %v3833 = vmul.f32 %v3801, 0.7978846
        %v3834 = vmul.f32 %v3802, 0.7978846
        %v3835 = vmul.f32 %v3803, 0.7978846
        %v3836 = vmul.f32 %v3804, 0.7978846
        %v3837 = vmul.f32 %v3805, 0.7978846
        %v3838 = vmul.f32 %v3806, 0.7978846
        %v3839 = vmul.f32 %v3807, 0.7978846
        %v3840 = vmul.f32 %v3808, 0.7978846
        %v3841 = vmul.f32 %v3809, 0.7978846
        %v3842 = vmul.f32 %v3810, 0.7978846
        %v3843 = vmul.f32 %v3811, 0.7978846
        %v3844 = vmul.f32 %v3812, 0.7978846
        %v3845 = vmul.f32 %v3813, 0.7978846
        %v3846 = vmul.f32 %v3814, 0.7978846
        %v3847 = vmul.f32 %v3815, 0.7978846
        %v3848 = vmul.f32 %v3816, 0.7978846
        %v3849 = vmul.f32 %v3817, 0.7978846
        %v3850 = vmul.f32 %v3818, 0.7978846
        %v3851 = vmul.f32 %v3819, 0.7978846
        %v3852 = vmul.f32 %v3820, 0.7978846
        %v3853 = vmul.f32 %v3821, 0.7978846
        %v3854 = vmul.f32 %v3822, 0.7978846
        %v3855 = vmul.f32 %v3823, 0.7978846
        %v3856 = vmul.f32 %v3824, 0.7978846
        %v3857 = vmul.f32 %v3825, 0.7978846
        %v3858 = vmul.f32 %v3826, 0.7978846
        %v3859 = vmul.f32 %v3827, 0.7978846
        %v3860 = vmul.f32 %v3828, 0.7978846
        %v3861 = vmul.f32 %v3829, 0.7978846
        %v3862 = vmul.f32 %v3830, 0.7978846
        %v3863 = vmul.f32 %v3831, 0.7978846
        %v3864 = vtanh.pop %v3832
        %v3865 = vtanh.pop %v3833
        %v3866 = vtanh.pop %v3834
        %v3867 = vtanh.pop %v3835
        %v3868 = vtanh.pop %v3836
        %v3869 = vtanh.pop %v3837
        %v3870 = vtanh.pop %v3838
        %v3871 = vtanh.pop %v3839
        %v3872 = vtanh.pop %v3840
        %v3873 = vtanh.pop %v3841
        %v3874 = vtanh.pop %v3842
        %v3875 = vtanh.pop %v3843
        %v3876 = vtanh.pop %v3844
        %v3877 = vtanh.pop %v3845
        %v3878 = vtanh.pop %v3846
        %v3879 = vtanh.pop %v3847
        %v3880 = vtanh.pop %v3848
        %v3881 = vtanh.pop %v3849
        %v3882 = vtanh.pop %v3850
        %v3883 = vtanh.pop %v3851
        %v3884 = vtanh.pop %v3852
        %v3885 = vtanh.pop %v3853
        %v3886 = vtanh.pop %v3854
        %v3887 = vtanh.pop %v3855
        %v3888 = vtanh.pop %v3856
        %v3889 = vtanh.pop %v3857
        %v3890 = vtanh.pop %v3858
        %v3891 = vtanh.pop %v3859
        %v3892 = vtanh.pop %v3860
        %v3893 = vtanh.pop %v3861
        %v3894 = vtanh.pop %v3862
        %v3895 = vtanh.pop %v3863
        %v3896 = vadd.f32 %v3864, 1.0
        %v3897 = vadd.f32 %v3865, 1.0
        %v3898 = vadd.f32 %v3866, 1.0
        %v3899 = vadd.f32 %v3867, 1.0
        %v3900 = vadd.f32 %v3868, 1.0
        %v3901 = vadd.f32 %v3869, 1.0
        %v3902 = vadd.f32 %v3870, 1.0
        %v3903 = vadd.f32 %v3871, 1.0
        %v3904 = vadd.f32 %v3872, 1.0
        %v3905 = vadd.f32 %v3873, 1.0
        %v3906 = vadd.f32 %v3874, 1.0
        %v3907 = vadd.f32 %v3875, 1.0
        %v3908 = vadd.f32 %v3876, 1.0
        %v3909 = vadd.f32 %v3877, 1.0
        %v3910 = vadd.f32 %v3878, 1.0
        %v3911 = vadd.f32 %v3879, 1.0
        %v3912 = vadd.f32 %v3880, 1.0
        %v3913 = vadd.f32 %v3881, 1.0
        %v3914 = vadd.f32 %v3882, 1.0
        %v3915 = vadd.f32 %v3883, 1.0
        %v3916 = vadd.f32 %v3884, 1.0
        %v3917 = vadd.f32 %v3885, 1.0
        %v3918 = vadd.f32 %v3886, 1.0
        %v3919 = vadd.f32 %v3887, 1.0
        %v3920 = vadd.f32 %v3888, 1.0
        %v3921 = vadd.f32 %v3889, 1.0
        %v3922 = vadd.f32 %v3890, 1.0
        %v3923 = vadd.f32 %v3891, 1.0
        %v3924 = vadd.f32 %v3892, 1.0
        %v3925 = vadd.f32 %v3893, 1.0
        %v3926 = vadd.f32 %v3894, 1.0
        %v3927 = vadd.f32 %v3895, 1.0
        %v3928 = vmul.f32 %v3672, %v3896
        %v3929 = vmul.f32 %v3673, %v3897
        %v3930 = vmul.f32 %v3674, %v3898
        %v3931 = vmul.f32 %v3675, %v3899
        %v3932 = vmul.f32 %v3676, %v3900
        %v3933 = vmul.f32 %v3677, %v3901
        %v3934 = vmul.f32 %v3678, %v3902
        %v3935 = vmul.f32 %v3679, %v3903
        %v3936 = vmul.f32 %v3680, %v3904
        %v3937 = vmul.f32 %v3681, %v3905
        %v3938 = vmul.f32 %v3682, %v3906
        %v3939 = vmul.f32 %v3683, %v3907
        %v3940 = vmul.f32 %v3684, %v3908
        %v3941 = vmul.f32 %v3685, %v3909
        %v3942 = vmul.f32 %v3686, %v3910
        %v3943 = vmul.f32 %v3687, %v3911
        %v3944 = vmul.f32 %v3688, %v3912
        %v3945 = vmul.f32 %v3689, %v3913
        %v3946 = vmul.f32 %v3690, %v3914
        %v3947 = vmul.f32 %v3691, %v3915
        %v3948 = vmul.f32 %v3692, %v3916
        %v3949 = vmul.f32 %v3693, %v3917
        %v3950 = vmul.f32 %v3694, %v3918
        %v3951 = vmul.f32 %v3695, %v3919
        %v3952 = vmul.f32 %v3696, %v3920
        %v3953 = vmul.f32 %v3697, %v3921
        %v3954 = vmul.f32 %v3698, %v3922
        %v3955 = vmul.f32 %v3699, %v3923
        %v3956 = vmul.f32 %v3700, %v3924
        %v3957 = vmul.f32 %v3701, %v3925
        %v3958 = vmul.f32 %v3702, %v3926
        %v3959 = vmul.f32 %v3703, %v3927
        %v3960 = vpack.c.bf16 %v3932, %v3928
        %v3961 = vpack.c.bf16 %v3933, %v3929
        %v3962 = vpack.c.bf16 %v3934, %v3930
        %v3963 = vpack.c.bf16 %v3935, %v3931
        %v3964 = vpack.c.bf16 %v3940, %v3936
        %v3965 = vpack.c.bf16 %v3941, %v3937
        %v3966 = vpack.c.bf16 %v3942, %v3938
        %v3967 = vpack.c.bf16 %v3943, %v3939
        %v3968 = vpack.c.bf16 %v3948, %v3944
        %v3969 = vpack.c.bf16 %v3949, %v3945
        %v3970 = vpack.c.bf16 %v3950, %v3946
        %v3971 = vpack.c.bf16 %v3951, %v3947
        %v3972 = vpack.c.bf16 %v3956, %v3952
        %v3973 = vpack.c.bf16 %v3957, %v3953
        %v3974 = vpack.c.bf16 %v3958, %v3954
        %v3975 = vpack.c.bf16 %v3959, %v3955
        %s3976 = smul.addr %s3361, 4
        %s3977 = scalar_lea.vmem [#allocation11], %s3976
        %v3978 = vld [vmem:[%s3977] sm:$0xf]
        %v3979 = vld [vmem:[%s3977 + $0x4] sm:$0xf]
        %v3980 = vld [vmem:[%s3977 + $0x8] sm:$0xf]
        %v3981 = vld [vmem:[%s3977 + $0xc] sm:$0xf]
        %v3982 = vld [vmem:[%s3977 + $0x10] sm:$0xf]
        %v3983 = vld [vmem:[%s3977 + $0x14] sm:$0xf]
        %v3984 = vld [vmem:[%s3977 + $0x18] sm:$0xf]
        %v3985 = vld [vmem:[%s3977 + $0x1c] sm:$0xf]
        %v3986 = vld [vmem:[%s3977 + $0x20] sm:$0xf]
        %v3987 = vld [vmem:[%s3977 + $0x24] sm:$0xf]
        %v3988 = vld [vmem:[%s3977 + $0x28] sm:$0xf]
        %v3989 = vld [vmem:[%s3977 + $0x2c] sm:$0xf]
        %v3990 = vld [vmem:[%s3977 + $0x30] sm:$0xf]
        %v3991 = vld [vmem:[%s3977 + $0x34] sm:$0xf]
        %v3992 = vld [vmem:[%s3977 + $0x38] sm:$0xf]
        %v3993 = vld [vmem:[%s3977 + $0x3c] sm:$0xf]
        %v3994 = vld [vmem:[%s3977 + $0x40] sm:$0xf]
        %v3995 = vld [vmem:[%s3977 + $0x44] sm:$0xf]
        %v3996 = vld [vmem:[%s3977 + $0x48] sm:$0xf]
        %v3997 = vld [vmem:[%s3977 + $0x4c] sm:$0xf]
        %v3998 = vld [vmem:[%s3977 + $0x50] sm:$0xf]
        %v3999 = vld [vmem:[%s3977 + $0x54] sm:$0xf]
        %v4000 = vld [vmem:[%s3977 + $0x58] sm:$0xf]
        %v4001 = vld [vmem:[%s3977 + $0x5c] sm:$0xf]
        %v4002 = vld [vmem:[%s3977 + $0x60] sm:$0xf]
        %v4003 = vld [vmem:[%s3977 + $0x64] sm:$0xf]
        %v4004 = vld [vmem:[%s3977 + $0x68] sm:$0xf]
        %v4005 = vld [vmem:[%s3977 + $0x6c] sm:$0xf]
        %v4006 = vld [vmem:[%s3977 + $0x70] sm:$0xf]
        %v4007 = vld [vmem:[%s3977 + $0x74] sm:$0xf]
        %v4008 = vld [vmem:[%s3977 + $0x78] sm:$0xf]
        %v4009 = vld [vmem:[%s3977 + $0x7c] sm:$0xf]
        %v4010 = vld [vmem:[%s3977 + $0x80] sm:$0xf]
        %v4011 = vld [vmem:[%s3977 + $0x84] sm:$0xf]
        %v4012 = vld [vmem:[%s3977 + $0x88] sm:$0xf]
        %v4013 = vld [vmem:[%s3977 + $0x8c] sm:$0xf]
        %v4014 = vld [vmem:[%s3977 + $0x90] sm:$0xf]
        %v4015 = vld [vmem:[%s3977 + $0x94] sm:$0xf]
        %v4016 = vld [vmem:[%s3977 + $0x98] sm:$0xf]
        %v4017 = vld [vmem:[%s3977 + $0x9c] sm:$0xf]
        %v4018 = vld [vmem:[%s3977 + $0xa0] sm:$0xf]
        %v4019 = vld [vmem:[%s3977 + $0xa4] sm:$0xf]
        %v4020 = vld [vmem:[%s3977 + $0xa8] sm:$0xf]
        %v4021 = vld [vmem:[%s3977 + $0xac] sm:$0xf]
        %v4022 = vld [vmem:[%s3977 + $0xb0] sm:$0xf]
        %v4023 = vld [vmem:[%s3977 + $0xb4] sm:$0xf]
        %v4024 = vld [vmem:[%s3977 + $0xb8] sm:$0xf]
        %v4025 = vld [vmem:[%s3977 + $0xbc] sm:$0xf]
        %v4026 = vld [vmem:[%s3977 + $0xc0] sm:$0xf]
        %v4027 = vld [vmem:[%s3977 + $0xc4] sm:$0xf]
        %v4028 = vld [vmem:[%s3977 + $0xc8] sm:$0xf]
        %v4029 = vld [vmem:[%s3977 + $0xcc] sm:$0xf]
        %v4030 = vld [vmem:[%s3977 + $0xd0] sm:$0xf]
        %v4031 = vld [vmem:[%s3977 + $0xd4] sm:$0xf]
        %v4032 = vld [vmem:[%s3977 + $0xd8] sm:$0xf]
        %v4033 = vld [vmem:[%s3977 + $0xdc] sm:$0xf]
        %v4034 = vld [vmem:[%s3977 + $0xe0] sm:$0xf]
        %v4035 = vld [vmem:[%s3977 + $0xe4] sm:$0xf]
        %v4036 = vld [vmem:[%s3977 + $0xe8] sm:$0xf]
        %v4037 = vld [vmem:[%s3977 + $0xec] sm:$0xf]
        %v4038 = vld [vmem:[%s3977 + $0xf0] sm:$0xf]
        %v4039 = vld [vmem:[%s3977 + $0xf4] sm:$0xf]
        %v4040 = vld [vmem:[%s3977 + $0xf8] sm:$0xf]
        %v4041 = vld [vmem:[%s3977 + $0xfc] sm:$0xf]
        %v4106 = vunpack.c.l.b16 %v3978
        %v4107 = vunpack.c.l.b16 %v3979
        %v4108 = vunpack.c.l.b16 %v3980
        %v4109 = vunpack.c.l.b16 %v3981
        %v4110 = vunpack.c.l.b16 %v3982
        %v4111 = vunpack.c.l.b16 %v3983
        %v4112 = vunpack.c.l.b16 %v3984
        %v4113 = vunpack.c.l.b16 %v3985
        %v4114 = vunpack.c.l.b16 %v3986
        %v4115 = vunpack.c.l.b16 %v3987
        %v4116 = vunpack.c.l.b16 %v3988
        %v4117 = vunpack.c.l.b16 %v3989
        %v4118 = vunpack.c.l.b16 %v3990
        %v4119 = vunpack.c.l.b16 %v3991
        %v4120 = vunpack.c.l.b16 %v3992
        %v4121 = vunpack.c.l.b16 %v3993
        %v4122 = vunpack.c.l.b16 %v3994
        %v4123 = vunpack.c.l.b16 %v3995
        %v4124 = vunpack.c.l.b16 %v3996
        %v4125 = vunpack.c.l.b16 %v3997
        %v4126 = vunpack.c.l.b16 %v3998
        %v4127 = vunpack.c.l.b16 %v3999
        %v4128 = vunpack.c.l.b16 %v4000
        %v4129 = vunpack.c.l.b16 %v4001
        %v4130 = vunpack.c.l.b16 %v4002
        %v4131 = vunpack.c.l.b16 %v4003
        %v4132 = vunpack.c.l.b16 %v4004
        %v4133 = vunpack.c.l.b16 %v4005
        %v4134 = vunpack.c.l.b16 %v4006
        %v4135 = vunpack.c.l.b16 %v4007
        %v4136 = vunpack.c.l.b16 %v4008
        %v4137 = vunpack.c.l.b16 %v4009
        %v4138 = vunpack.c.l.b16 %v4010
        %v4139 = vunpack.c.l.b16 %v4011
        %v4140 = vunpack.c.l.b16 %v4012
        %v4141 = vunpack.c.l.b16 %v4013
        %v4142 = vunpack.c.l.b16 %v4014
        %v4143 = vunpack.c.l.b16 %v4015
        %v4144 = vunpack.c.l.b16 %v4016
        %v4145 = vunpack.c.l.b16 %v4017
        %v4146 = vunpack.c.l.b16 %v4018
        %v4147 = vunpack.c.l.b16 %v4019
        %v4148 = vunpack.c.l.b16 %v4020
        %v4149 = vunpack.c.l.b16 %v4021
        %v4150 = vunpack.c.l.b16 %v4022
        %v4151 = vunpack.c.l.b16 %v4023
        %v4152 = vunpack.c.l.b16 %v4024
        %v4153 = vunpack.c.l.b16 %v4025
        %v4154 = vunpack.c.l.b16 %v4026
        %v4155 = vunpack.c.l.b16 %v4027
        %v4156 = vunpack.c.l.b16 %v4028
        %v4157 = vunpack.c.l.b16 %v4029
        %v4158 = vunpack.c.l.b16 %v4030
        %v4159 = vunpack.c.l.b16 %v4031
        %v4160 = vunpack.c.l.b16 %v4032
        %v4161 = vunpack.c.l.b16 %v4033
        %v4162 = vunpack.c.l.b16 %v4034
        %v4163 = vunpack.c.l.b16 %v4035
        %v4164 = vunpack.c.l.b16 %v4036
        %v4165 = vunpack.c.l.b16 %v4037
        %v4166 = vunpack.c.l.b16 %v4038
        %v4167 = vunpack.c.l.b16 %v4039
        %v4168 = vunpack.c.l.b16 %v4040
        %v4169 = vunpack.c.l.b16 %v4041
        %v4170 = vpack.c.b16 %v4107, %v4106
        %v4171 = vpack.c.b16 %v4109, %v4108
        %v4172 = vpack.c.b16 %v4111, %v4110
        %v4173 = vpack.c.b16 %v4113, %v4112
        %v4174 = vpack.c.b16 %v4115, %v4114
        %v4175 = vpack.c.b16 %v4117, %v4116
        %v4176 = vpack.c.b16 %v4119, %v4118
        %v4177 = vpack.c.b16 %v4121, %v4120
        %v4178 = vpack.c.b16 %v4123, %v4122
        %v4179 = vpack.c.b16 %v4125, %v4124
        %v4180 = vpack.c.b16 %v4127, %v4126
        %v4181 = vpack.c.b16 %v4129, %v4128
        %v4182 = vpack.c.b16 %v4131, %v4130
        %v4183 = vpack.c.b16 %v4133, %v4132
        %v4184 = vpack.c.b16 %v4135, %v4134
        %v4185 = vpack.c.b16 %v4137, %v4136
        %v4186 = vpack.c.b16 %v4139, %v4138
        %v4187 = vpack.c.b16 %v4141, %v4140
        %v4188 = vpack.c.b16 %v4143, %v4142
        %v4189 = vpack.c.b16 %v4145, %v4144
        %v4190 = vpack.c.b16 %v4147, %v4146
        %v4191 = vpack.c.b16 %v4149, %v4148
        %v4192 = vpack.c.b16 %v4151, %v4150
        %v4193 = vpack.c.b16 %v4153, %v4152
        %v4194 = vpack.c.b16 %v4155, %v4154
        %v4195 = vpack.c.b16 %v4157, %v4156
        %v4196 = vpack.c.b16 %v4159, %v4158
        %v4197 = vpack.c.b16 %v4161, %v4160
        %v4198 = vpack.c.b16 %v4163, %v4162
        %v4199 = vpack.c.b16 %v4165, %v4164
        %v4200 = vpack.c.b16 %v4167, %v4166
        %v4201 = vpack.c.b16 %v4169, %v4168
        %4234 = vmatpush.bf16.msra.mxu0 %v4177
        %4235 = vmatpush.bf16.msra.mxu0 %v4176
        %4236 = vmatpush.bf16.msra.mxu0 %v4175
        %4237 = vmatpush.bf16.msra.mxu0 %v4174
        %4238 = vmatpush.bf16.msra.mxu0 %v4173
        %4239 = vmatpush.bf16.msra.mxu0 %v4172
        %4240 = vmatpush.bf16.msra.mxu0 %v4171
        %4241 = vmatpush.bf16.msra.mxu0 %v4170
        %4242 = vmatmul.bf16.gmra.mxu0 %v3960
        %v4243 = vpop.f32.mrf.mxu0
        %v4244 = vadd.f32 0.0, %v4243
        %v4245 = vpop.f32.mrf.mxu0
        %v4246 = vadd.f32 0.0, %v4245
        %4247 = vmatmul.bf16.gmra.mxu0 %v3964
        %v4248 = vpop.f32.mrf.mxu0
        %v4249 = vadd.f32 0.0, %v4248
        %v4250 = vpop.f32.mrf.mxu0
        %v4251 = vadd.f32 0.0, %v4250
        %4252 = vmatmul.bf16.gmra.mxu0 %v3968
        %v4253 = vpop.f32.mrf.mxu0
        %v4254 = vadd.f32 0.0, %v4253
        %v4255 = vpop.f32.mrf.mxu0
        %v4256 = vadd.f32 0.0, %v4255
        %4257 = vmatmul.bf16.gmra.mxu0 %v3972
        %v4258 = vpop.f32.mrf.mxu0
        %v4259 = vadd.f32 0.0, %v4258
        %v4260 = vpop.f32.mrf.mxu0
        %v4261 = vadd.f32 0.0, %v4260
        %4262 = vdwg.mxu0
        %4263 = vmatpush.bf16.msra.mxu0 %v4185
        %4264 = vmatpush.bf16.msra.mxu0 %v4184
        %4265 = vmatpush.bf16.msra.mxu0 %v4183
        %4266 = vmatpush.bf16.msra.mxu0 %v4182
        %4267 = vmatpush.bf16.msra.mxu0 %v4181
        %4268 = vmatpush.bf16.msra.mxu0 %v4180
        %4269 = vmatpush.bf16.msra.mxu0 %v4179
        %4270 = vmatpush.bf16.msra.mxu0 %v4178
        %4271 = vmatmul.bf16.gmra.mxu0 %v3961
        %v4272 = vpop.f32.mrf.mxu0
        %v4273 = vadd.f32 %v4244, %v4272
        %v4274 = vpop.f32.mrf.mxu0
        %v4275 = vadd.f32 %v4246, %v4274
        %4276 = vmatmul.bf16.gmra.mxu0 %v3965
        %v4277 = vpop.f32.mrf.mxu0
        %v4278 = vadd.f32 %v4249, %v4277
        %v4279 = vpop.f32.mrf.mxu0
        %v4280 = vadd.f32 %v4251, %v4279
        %4281 = vmatmul.bf16.gmra.mxu0 %v3969
        %v4282 = vpop.f32.mrf.mxu0
        %v4283 = vadd.f32 %v4254, %v4282
        %v4284 = vpop.f32.mrf.mxu0
        %v4285 = vadd.f32 %v4256, %v4284
        %4286 = vmatmul.bf16.gmra.mxu0 %v3973
        %v4287 = vpop.f32.mrf.mxu0
        %v4288 = vadd.f32 %v4259, %v4287
        %v4289 = vpop.f32.mrf.mxu0
        %v4290 = vadd.f32 %v4261, %v4289
        %4291 = vdwg.mxu0
        %4292 = vmatpush.bf16.msra.mxu0 %v4193
        %4293 = vmatpush.bf16.msra.mxu0 %v4192
        %4294 = vmatpush.bf16.msra.mxu0 %v4191
        %4295 = vmatpush.bf16.msra.mxu0 %v4190
        %4296 = vmatpush.bf16.msra.mxu0 %v4189
        %4297 = vmatpush.bf16.msra.mxu0 %v4188
        %4298 = vmatpush.bf16.msra.mxu0 %v4187
        %4299 = vmatpush.bf16.msra.mxu0 %v4186
        %4300 = vmatmul.bf16.gmra.mxu0 %v3962
        %v4301 = vpop.f32.mrf.mxu0
        %v4302 = vadd.f32 %v4273, %v4301
        %v4303 = vpop.f32.mrf.mxu0
        %v4304 = vadd.f32 %v4275, %v4303
        %4305 = vmatmul.bf16.gmra.mxu0 %v3966
        %v4306 = vpop.f32.mrf.mxu0
        %v4307 = vadd.f32 %v4278, %v4306
        %v4308 = vpop.f32.mrf.mxu0
        %v4309 = vadd.f32 %v4280, %v4308
        %4310 = vmatmul.bf16.gmra.mxu0 %v3970
        %v4311 = vpop.f32.mrf.mxu0
        %v4312 = vadd.f32 %v4283, %v4311
        %v4313 = vpop.f32.mrf.mxu0
        %v4314 = vadd.f32 %v4285, %v4313
        %4315 = vmatmul.bf16.gmra.mxu0 %v3974
        %v4316 = vpop.f32.mrf.mxu0
        %v4317 = vadd.f32 %v4288, %v4316
        %v4318 = vpop.f32.mrf.mxu0
        %v4319 = vadd.f32 %v4290, %v4318
        %4320 = vdwg.mxu0
        %4321 = vmatpush.bf16.msra.mxu0 %v4201
        %4322 = vmatpush.bf16.msra.mxu0 %v4200
        %4323 = vmatpush.bf16.msra.mxu0 %v4199
        %4324 = vmatpush.bf16.msra.mxu0 %v4198
        %4325 = vmatpush.bf16.msra.mxu0 %v4197
        %4326 = vmatpush.bf16.msra.mxu0 %v4196
        %4327 = vmatpush.bf16.msra.mxu0 %v4195
        %4328 = vmatpush.bf16.msra.mxu0 %v4194
        %4329 = vmatmul.bf16.gmra.mxu0 %v3963
        %v4330 = vpop.f32.mrf.mxu0
        %v4331 = vadd.f32 %v4302, %v4330
        %v4332 = vpop.f32.mrf.mxu0
        %v4333 = vadd.f32 %v4304, %v4332
        %4334 = vmatmul.bf16.gmra.mxu0 %v3967
        %v4335 = vpop.f32.mrf.mxu0
        %v4336 = vadd.f32 %v4307, %v4335
        %v4337 = vpop.f32.mrf.mxu0
        %v4338 = vadd.f32 %v4309, %v4337
        %4339 = vmatmul.bf16.gmra.mxu0 %v3971
        %v4340 = vpop.f32.mrf.mxu0
        %v4341 = vadd.f32 %v4312, %v4340
        %v4342 = vpop.f32.mrf.mxu0
        %v4343 = vadd.f32 %v4314, %v4342
        %4344 = vmatmul.bf16.gmra.mxu0 %v3975
        %v4345 = vpop.f32.mrf.mxu0
        %v4346 = vadd.f32 %v4317, %v4345
        %v4347 = vpop.f32.mrf.mxu0
        %v4348 = vadd.f32 %v4319, %v4347
        %4349 = vdwg.mxu0
        %v4350 = vadd.f32 %v3171, %v4331
        %v4351 = vadd.f32 %v3172, %v4333
        %v4352 = vadd.f32 %v3173, %v4336
        %v4353 = vadd.f32 %v3174, %v4338
        %v4354 = vadd.f32 %v3175, %v4341
        %v4355 = vadd.f32 %v3176, %v4343
        %v4356 = vadd.f32 %v3177, %v4346
        %v4357 = vadd.f32 %v3178, %v4348
        %4358 = vst [vmem:[#allocation2] sm:$0xff] %v4350
        %4359 = vst [vmem:[#allocation2 + $0x8] sm:$0xff] %v4351
        %4360 = vst [vmem:[#allocation2 + $0x10] sm:$0xff] %v4352
        %4361 = vst [vmem:[#allocation2 + $0x18] sm:$0xff] %v4353
        %4362 = vst [vmem:[#allocation2 + $0x20] sm:$0xff] %v4354
        %4363 = vst [vmem:[#allocation2 + $0x28] sm:$0xff] %v4355
        %4364 = vst [vmem:[#allocation2 + $0x30] sm:$0xff] %v4356
        %4365 = vst [vmem:[#allocation2 + $0x38] sm:$0xff] %v4357
        %p4366 = scmp.eq.s32.totalorder %s29, 3
        // Predicated region
        $region85: #{tpu_custom_call.1} parent=51 // pred_check
          %p4367 = pneg %p4366
        $region86: #{tpu_custom_call.1} parent=51 // pred_check_branch
          %4369 = sbr.rel (%p4367) target = $region88
        $region87: #{tpu_custom_call.1} parent=51 // pred_region
          %v4370 = vld [vmem:[%s6] sm:$0x1]
          %v4371 = vld [vmem:[%s6 + $0x1] sm:$0x1]
          %4372 = vadd.xlane.f32.xlu0 %v4350
          %v4373 = vpop.xlane.xlu0 %4372
          %4374 = vadd.xlane.f32.xlu0 %v4351
          %v4375 = vpop.xlane.xlu0 %4374
          %4376 = vadd.xlane.f32.xlu0 %v4352
          %v4377 = vpop.xlane.xlu0 %4376
          %4378 = vadd.xlane.f32.xlu0 %v4353
          %v4379 = vpop.xlane.xlu0 %4378
          %4380 = vadd.xlane.f32.xlu0 %v4354
          %v4381 = vpop.xlane.xlu0 %4380
          %4382 = vadd.xlane.f32.xlu0 %v4355
          %v4383 = vpop.xlane.xlu0 %4382
          %4384 = vadd.xlane.f32.xlu0 %v4356
          %v4385 = vpop.xlane.xlu0 %4384
          %4386 = vadd.xlane.f32.xlu0 %v4357
          %v4387 = vpop.xlane.xlu0 %4386
          %v4388 = vmul.f32 %v4373, %v468
          %v4389 = vmul.f32 %v4375, %v468
          %v4390 = vmul.f32 %v4377, %v468
          %v4391 = vmul.f32 %v4379, %v468
          %v4392 = vmul.f32 %v4381, %v468
          %v4393 = vmul.f32 %v4383, %v468
          %v4394 = vmul.f32 %v4385, %v468
          %v4395 = vmul.f32 %v4387, %v468
          %v4396 = vsub.f32 %v4350, %v4388
          %v4397 = vsub.f32 %v4351, %v4389
          %v4398 = vsub.f32 %v4352, %v4390
          %v4399 = vsub.f32 %v4353, %v4391
          %v4400 = vsub.f32 %v4354, %v4392
          %v4401 = vsub.f32 %v4355, %v4393
          %v4402 = vsub.f32 %v4356, %v4394
          %v4403 = vsub.f32 %v4357, %v4395
          %v4404 = vmul.f32 %v4396, %v4396
          %v4405 = vmul.f32 %v4397, %v4397
          %v4406 = vmul.f32 %v4398, %v4398
          %v4407 = vmul.f32 %v4399, %v4399
          %v4408 = vmul.f32 %v4400, %v4400
          %v4409 = vmul.f32 %v4401, %v4401
          %v4410 = vmul.f32 %v4402, %v4402
          %v4411 = vmul.f32 %v4403, %v4403
          %4412 = vadd.xlane.f32.xlu0 %v4404
          %v4413 = vpop.xlane.xlu0 %4412
          %4414 = vadd.xlane.f32.xlu0 %v4405
          %v4415 = vpop.xlane.xlu0 %4414
          %4416 = vadd.xlane.f32.xlu0 %v4406
          %v4417 = vpop.xlane.xlu0 %4416
          %4418 = vadd.xlane.f32.xlu0 %v4407
          %v4419 = vpop.xlane.xlu0 %4418
          %4420 = vadd.xlane.f32.xlu0 %v4408
          %v4421 = vpop.xlane.xlu0 %4420
          %4422 = vadd.xlane.f32.xlu0 %v4409
          %v4423 = vpop.xlane.xlu0 %4422
          %4424 = vadd.xlane.f32.xlu0 %v4410
          %v4425 = vpop.xlane.xlu0 %4424
          %4426 = vadd.xlane.f32.xlu0 %v4411
          %v4427 = vpop.xlane.xlu0 %4426
          %v4428 = vmul.f32 %v4413, %v468
          %v4429 = vmul.f32 %v4415, %v468
          %v4430 = vmul.f32 %v4417, %v468
          %v4431 = vmul.f32 %v4419, %v468
          %v4432 = vmul.f32 %v4421, %v468
          %v4433 = vmul.f32 %v4423, %v468
          %v4434 = vmul.f32 %v4425, %v468
          %v4435 = vmul.f32 %v4427, %v468
          %v4436 = vadd.f32 %v4428, 1e-05
          %v4437 = vadd.f32 %v4429, 1e-05
          %v4438 = vadd.f32 %v4430, 1e-05
          %v4439 = vadd.f32 %v4431, 1e-05
          %v4440 = vadd.f32 %v4432, 1e-05
          %v4441 = vadd.f32 %v4433, 1e-05
          %v4442 = vadd.f32 %v4434, 1e-05
          %v4443 = vadd.f32 %v4435, 1e-05
          %v4444 = vrsqrt.pop %v4436
          %v4445 = vmul.f32 %v4444, %v4436
          %v4446 = vmul.f32 %v4445, %v4444
          %v4447 = vmul.f32 0.5, %v4446
          %v4448 = vsub.f32 1.5, %v4447
          %v4449 = vmul.f32 %v4444, %v4448
          %vm4450 = vweird.f32 %v4436
          %vm4451 = vweird.f32 %v4444
          %vm4452 = vmor %vm4450, %vm4451
          %v4453 = vsel %vm4452, %v4444, %v4449
          %v4454 = vrsqrt.pop %v4437
          %v4455 = vmul.f32 %v4454, %v4437
          %v4456 = vmul.f32 %v4455, %v4454
          %v4457 = vmul.f32 0.5, %v4456
          %v4458 = vsub.f32 1.5, %v4457
          %v4459 = vmul.f32 %v4454, %v4458
          %vm4460 = vweird.f32 %v4437
          %vm4461 = vweird.f32 %v4454
          %vm4462 = vmor %vm4460, %vm4461
          %v4463 = vsel %vm4462, %v4454, %v4459
          %v4464 = vrsqrt.pop %v4438
          %v4465 = vmul.f32 %v4464, %v4438
          %v4466 = vmul.f32 %v4465, %v4464
          %v4467 = vmul.f32 0.5, %v4466
          %v4468 = vsub.f32 1.5, %v4467
          %v4469 = vmul.f32 %v4464, %v4468
          %vm4470 = vweird.f32 %v4438
          %vm4471 = vweird.f32 %v4464
          %vm4472 = vmor %vm4470, %vm4471
          %v4473 = vsel %vm4472, %v4464, %v4469
          %v4474 = vrsqrt.pop %v4439
          %v4475 = vmul.f32 %v4474, %v4439
          %v4476 = vmul.f32 %v4475, %v4474
          %v4477 = vmul.f32 0.5, %v4476
          %v4478 = vsub.f32 1.5, %v4477
          %v4479 = vmul.f32 %v4474, %v4478
          %vm4480 = vweird.f32 %v4439
          %vm4481 = vweird.f32 %v4474
          %vm4482 = vmor %vm4480, %vm4481
          %v4483 = vsel %vm4482, %v4474, %v4479
          %v4484 = vrsqrt.pop %v4440
          %v4485 = vmul.f32 %v4484, %v4440
          %v4486 = vmul.f32 %v4485, %v4484
          %v4487 = vmul.f32 0.5, %v4486
          %v4488 = vsub.f32 1.5, %v4487
          %v4489 = vmul.f32 %v4484, %v4488
          %vm4490 = vweird.f32 %v4440
          %vm4491 = vweird.f32 %v4484
          %vm4492 = vmor %vm4490, %vm4491
          %v4493 = vsel %vm4492, %v4484, %v4489
          %v4494 = vrsqrt.pop %v4441
          %v4495 = vmul.f32 %v4494, %v4441
          %v4496 = vmul.f32 %v4495, %v4494
          %v4497 = vmul.f32 0.5, %v4496
          %v4498 = vsub.f32 1.5, %v4497
          %v4499 = vmul.f32 %v4494, %v4498
          %vm4500 = vweird.f32 %v4441
          %vm4501 = vweird.f32 %v4494
          %vm4502 = vmor %vm4500, %vm4501
          %v4503 = vsel %vm4502, %v4494, %v4499
          %v4504 = vrsqrt.pop %v4442
          %v4505 = vmul.f32 %v4504, %v4442
          %v4506 = vmul.f32 %v4505, %v4504
          %v4507 = vmul.f32 0.5, %v4506
          %v4508 = vsub.f32 1.5, %v4507
          %v4509 = vmul.f32 %v4504, %v4508
          %vm4510 = vweird.f32 %v4442
          %vm4511 = vweird.f32 %v4504
          %vm4512 = vmor %vm4510, %vm4511
          %v4513 = vsel %vm4512, %v4504, %v4509
          %v4514 = vrsqrt.pop %v4443
          %v4515 = vmul.f32 %v4514, %v4443
          %v4516 = vmul.f32 %v4515, %v4514
          %v4517 = vmul.f32 0.5, %v4516
          %v4518 = vsub.f32 1.5, %v4517
          %v4519 = vmul.f32 %v4514, %v4518
          %vm4520 = vweird.f32 %v4443
          %vm4521 = vweird.f32 %v4514
          %vm4522 = vmor %vm4520, %vm4521
          %v4523 = vsel %vm4522, %v4514, %v4519
          %v4524 = vmul.f32 %v4396, %v4453
          %v4525 = vmul.f32 %v4397, %v4463
          %v4526 = vmul.f32 %v4398, %v4473
          %v4527 = vmul.f32 %v4399, %v4483
          %v4528 = vmul.f32 %v4400, %v4493
          %v4529 = vmul.f32 %v4401, %v4503
          %v4530 = vmul.f32 %v4402, %v4513
          %v4531 = vmul.f32 %v4403, %v4523
          %v4532 = vperm.slane %v4370, 0
          %v4533 = vmul.f32 %v4524, %v4532
          %v4534 = vmul.f32 %v4525, %v4532
          %v4535 = vmul.f32 %v4526, %v4532
          %v4536 = vmul.f32 %v4527, %v4532
          %v4537 = vmul.f32 %v4528, %v4532
          %v4538 = vmul.f32 %v4529, %v4532
          %v4539 = vmul.f32 %v4530, %v4532
          %v4540 = vmul.f32 %v4531, %v4532
          %v4541 = vperm.slane %v4371, 0
          %v4542 = vadd.f32 %v4533, %v4541
          %v4543 = vadd.f32 %v4534, %v4541
          %v4544 = vadd.f32 %v4535, %v4541
          %v4545 = vadd.f32 %v4536, %v4541
          %v4546 = vadd.f32 %v4537, %v4541
          %v4547 = vadd.f32 %v4538, %v4541
          %v4548 = vadd.f32 %v4539, %v4541
          %v4549 = vadd.f32 %v4540, %v4541
          %v4550 = vpack.c.bf16 %v4543, %v4542
          %v4551 = vpack.c.bf16 %v4545, %v4544
          %v4552 = vpack.c.bf16 %v4547, %v4546
          %v4553 = vpack.c.bf16 %v4549, %v4548
          %v4554 = vld [vmem:[#allocation14] sm:$0xf]
          %v4555 = vld [vmem:[#allocation14 + $0x4] sm:$0xf]
          %v4556 = vld [vmem:[#allocation14 + $0x8] sm:$0xf]
          %v4557 = vld [vmem:[#allocation14 + $0xc] sm:$0xf]
          %v4558 = vld [vmem:[#allocation14 + $0x10] sm:$0xf]
          %v4559 = vld [vmem:[#allocation14 + $0x14] sm:$0xf]
          %v4560 = vld [vmem:[#allocation14 + $0x18] sm:$0xf]
          %v4561 = vld [vmem:[#allocation14 + $0x1c] sm:$0xf]
          %v4562 = vld [vmem:[#allocation14 + $0x20] sm:$0xf]
          %v4563 = vld [vmem:[#allocation14 + $0x24] sm:$0xf]
          %v4564 = vld [vmem:[#allocation14 + $0x28] sm:$0xf]
          %v4565 = vld [vmem:[#allocation14 + $0x2c] sm:$0xf]
          %v4566 = vld [vmem:[#allocation14 + $0x30] sm:$0xf]
          %v4567 = vld [vmem:[#allocation14 + $0x34] sm:$0xf]
          %v4568 = vld [vmem:[#allocation14 + $0x38] sm:$0xf]
          %v4569 = vld [vmem:[#allocation14 + $0x3c] sm:$0xf]
          %v4586 = vunpack.c.l.b16 %v4554
          %v4587 = vunpack.c.l.b16 %v4555
          %v4588 = vunpack.c.l.b16 %v4556
          %v4589 = vunpack.c.l.b16 %v4557
          %v4590 = vunpack.c.l.b16 %v4558
          %v4591 = vunpack.c.l.b16 %v4559
          %v4592 = vunpack.c.l.b16 %v4560
          %v4593 = vunpack.c.l.b16 %v4561
          %v4594 = vunpack.c.l.b16 %v4562
          %v4595 = vunpack.c.l.b16 %v4563
          %v4596 = vunpack.c.l.b16 %v4564
          %v4597 = vunpack.c.l.b16 %v4565
          %v4598 = vunpack.c.l.b16 %v4566
          %v4599 = vunpack.c.l.b16 %v4567
          %v4600 = vunpack.c.l.b16 %v4568
          %v4601 = vunpack.c.l.b16 %v4569
          %v4602 = vpack.c.b16 %v4587, %v4586
          %v4603 = vpack.c.b16 %v4589, %v4588
          %v4604 = vpack.c.b16 %v4591, %v4590
          %v4605 = vpack.c.b16 %v4593, %v4592
          %v4606 = vpack.c.b16 %v4595, %v4594
          %v4607 = vpack.c.b16 %v4597, %v4596
          %v4608 = vpack.c.b16 %v4599, %v4598
          %v4609 = vpack.c.b16 %v4601, %v4600
          %4618 = vmatpush.bf16.msra.mxu0 %v4609
          %4619 = vmatpush.bf16.msra.mxu0 %v4608
          %4620 = vmatpush.bf16.msra.mxu0 %v4607
          %4621 = vmatpush.bf16.msra.mxu0 %v4606
          %4622 = vmatpush.bf16.msra.mxu0 %v4605
          %4623 = vmatpush.bf16.msra.mxu0 %v4604
          %4624 = vmatpush.bf16.msra.mxu0 %v4603
          %4625 = vmatpush.bf16.msra.mxu0 %v4602
          %4626 = vmatmul.bf16.gmra.mxu0 %v4550
          %v4627 = vpop.f32.mrf.mxu0
          %v4628 = vadd.f32 0.0, %v4627
          %v4629 = vpop.f32.mrf.mxu0
          %v4630 = vadd.f32 0.0, %v4629
          %4631 = vmatmul.bf16.gmra.mxu0 %v4551
          %v4632 = vpop.f32.mrf.mxu0
          %v4633 = vadd.f32 0.0, %v4632
          %v4634 = vpop.f32.mrf.mxu0
          %v4635 = vadd.f32 0.0, %v4634
          %4636 = vmatmul.bf16.gmra.mxu0 %v4552
          %v4637 = vpop.f32.mrf.mxu0
          %v4638 = vadd.f32 0.0, %v4637
          %v4639 = vpop.f32.mrf.mxu0
          %v4640 = vadd.f32 0.0, %v4639
          %4641 = vmatmul.bf16.gmra.mxu0 %v4553
          %v4642 = vpop.f32.mrf.mxu0
          %v4643 = vadd.f32 0.0, %v4642
          %v4644 = vpop.f32.mrf.mxu0
          %v4645 = vadd.f32 0.0, %v4644
          %4646 = vdwg.mxu0
          %4647 = vst [vmem:[#allocation15] sm:$0xff] %v4628
          %4648 = vst [vmem:[#allocation15 + $0x8] sm:$0xff] %v4630
          %4649 = vst [vmem:[#allocation15 + $0x10] sm:$0xff] %v4633
          %4650 = vst [vmem:[#allocation15 + $0x18] sm:$0xff] %v4635
          %4651 = vst [vmem:[#allocation15 + $0x20] sm:$0xff] %v4638
          %4652 = vst [vmem:[#allocation15 + $0x28] sm:$0xff] %v4640
          %4653 = vst [vmem:[#allocation15 + $0x30] sm:$0xff] %v4643
          %4654 = vst [vmem:[#allocation15 + $0x38] sm:$0xff] %v4645
        $region88: #{tpu_custom_call.1} parent=51 // pred_fallthru
          _
        // Predicated region
        $region89: #{tpu_custom_call.1} parent=51 // pred_check
          %p4655 = pneg %p227
        $region90: #{tpu_custom_call.1} parent=51 // pred_check_branch
          %4657 = sbr.rel (%p4655) target = $region92
        $region91: #{tpu_custom_call.1} parent=51 // pred_region
          %s4658 = smul.u32 8, %s28
          %4660 = vsyncadd [#allocation5], 0
          %s4661 = smul.addr %s4658, 8
          %s4662 = scalar_lea.hbm %s8, %s4661
          %s4663 = sshll.u32 [#allocation15], 4
          %s4664 = int_to_ptr.vmem [resolvable:$true] %s4663
          %s4665 = sshll.u32 %s4662, 4
          %s4666 = int_to_ptr.hbm [resolvable:$true] %s4665
          %4671 = dma.vmem_to_hbm [thread:$0]  %s4664, 1024, %s4666, [#allocation5], 128, 128, 8
        $region92: #{tpu_custom_call.1} parent=51 // pred_fallthru
          _
        // Predicated region
        $region93: #{tpu_custom_call.1} parent=51 // pred_check
          %p4672 = pneg %p227
        $region94: #{tpu_custom_call.1} parent=51 // pred_check_branch
          %4674 = sbr.rel (%p4672) target = $region96
        $region95: #{tpu_custom_call.1} parent=51 // pred_region
          %4676 = dma.done [#allocation5], 1024
        $region96: #{tpu_custom_call.1} parent=51 // pred_fallthru
          _
      $region52: #{tpu_custom_call.1} parent=5 // pred_fallthru
        _
      %p4677 = scmp.le.s32.totalorder 2, %s19
      // Predicated region
      $region97: #{tpu_custom_call.1} parent=5 // pred_check
        %p4678 = pneg %p4677
      $region98: #{tpu_custom_call.1} parent=5 // pred_check_branch
        %4680 = sbr.rel (%p4678) target = $region100
      $region99: #{tpu_custom_call.1} parent=5 // pred_region
        %s4681 = ssub.s32 %s19, 2
      $region100: #{tpu_custom_call.1} parent=5 // pred_fallthru
        _
    $region6: #{tpu_custom_call.1} parent=1 // loop_footer
      %s23 = sadd.s32 1, %s19
    $region7: #{tpu_custom_call.1} parent=1 // loop_footer_branch
      %18 = sbr.rel target = $region3
    $region8: #{tpu_custom_call.1} parent=1 // loop_exit
      _
    %4682 = vsyncpa [#allocation4], 1
    %s4683 = scalar_lea.sflag [#allocation4], 1
    %4684 = vsyncpa %s4683, 1
    %4685 = vsyncpa [#allocation7], 1
    %4686 = vsyncpa [#allocation10], 1
    %4687 = vsyncpa [#allocation13], 1
    %4688 = vsyncpa [#allocation5], 1
    %s4689 = scalar_lea.sflag [#allocation5], 1
    %4690 = vsyncpa %s4689, 1

</llo_original>
